<compile_context>
chip_gen: v5e
topology: v5e:2x2
jax: 0.10.0
libtpu: 0.0.40
codegen_flags: <defaults>
</compile_context>

<pallas_src>
import math
import functools

import jax
import jax.numpy as jnp
from jax import lax
from jax.experimental import pallas as pl
from jax.experimental.pallas import tpu as pltpu


def _mha_kernel(q_ref, k_ref, v_ref, mask_ref,
                wq_ref, bq_ref, wk_ref, bk_ref, wv_ref, bv_ref,
                wo_ref, bo_ref,
                out_ref, *rest,
                h, d_k, with_attn):
    """One grid step = (batch b, query-row tile qi); all heads processed here."""
    if with_attn:
        attn_ref, kp_ref, vp_ref, ctx_ref = rest
    else:
        attn_ref = None
        kp_ref, vp_ref, ctx_ref = rest

    qi = pl.program_id(1)

    # K/V projections: compute once per batch row and cache in VMEM scratch.
    # (qi axis is "arbitrary", so qi==0 runs first for every batch row.)
    @pl.when(qi == 0)
    def _():
        kp = jnp.dot(k_ref[0], wk_ref[...],
                     preferred_element_type=jnp.float32) + bk_ref[...]
        vp = jnp.dot(v_ref[0], wv_ref[...],
                     preferred_element_type=jnp.float32) + bv_ref[...]
        kp_ref[...] = kp.astype(jnp.bfloat16)
        vp_ref[...] = vp.astype(jnp.bfloat16)

    # Q projection for this tile (1/sqrt(d_k) already folded into Wq/bq).
    qp = jnp.dot(q_ref[0], wq_ref[...],
                 preferred_element_type=jnp.float32) + bq_ref[...]     # (TQ, D) f32

    # Additive mask bias, computed once per tile (hoisted out of head loop).
    mbias = jnp.where(mask_ref[0].astype(jnp.int32) == 0,
                      -1000000000.0, 0.0)                              # (TQ, S) f32

    kp = kp_ref[...]                                                   # (S, D) bf16
    vp = vp_ref[...]                                                   # (S, D) bf16

    for hh in range(h):                      # static (unrolled) loop over heads
        sl = slice(hh * d_k, (hh + 1) * d_k)
        q_h = qp[:, sl].astype(jnp.bfloat16)   # (TQ, d_k)
        k_h = kp[:, sl]                        # (S , d_k)
        v_h = vp[:, sl]                        # (S , d_k)

        # q @ k^T via transposed contraction -- no materialized transpose.
        scores = lax.dot_general(q_h, k_h, (((1,), (1,)), ((), ())),
                                 preferred_element_type=jnp.float32) + mbias

        # Numerically-stabilized softmax; reciprocal goes to the EUP slot.
        scores = scores - jnp.max(scores, axis=-1, keepdims=True)
        e = jnp.exp(scores)
        p = e * pl.reciprocal(jnp.sum(e, axis=-1, keepdims=True), approx=True)

        if with_attn:
            attn_ref[0, hh] = p.astype(jnp.bfloat16)

        # Per-head context goes straight into the (TQ, D) scratch accumulator.
        ctx_ref[:, sl] = jnp.dot(p.astype(jnp.bfloat16), v_h,
                                 preferred_element_type=jnp.float32)

    # One wide output projection (K = D) instead of h skinny K = d_k matmuls.
    out = jnp.dot(ctx_ref[...].astype(jnp.bfloat16), wo_ref[...],
                  preferred_element_type=jnp.float32) + bo_ref[...]
    out_ref[0] = out.astype(out_ref.dtype)


def multi_headed_attention(query, key, value, mask, params, h,
                           *, return_attn=True, block_q=None):
    """query/key/value: (B, S, D) float32; mask: (B, S, S) (0 = masked)."""
    B, S, D = query.shape
    assert D % h == 0
    d_k = D // h
    Wq, bq, Wk, bk, Wv, bv, Wo, bo = params

    # Fold 1/sqrt(d_k) into the Q projection; bf16 weights (native MXU rate,
    # half the weight DMA).  Biases stay f32.
    scale = 1.0 / math.sqrt(d_k)
    wq = (Wq * scale).astype(jnp.bfloat16)
    wk = Wk.astype(jnp.bfloat16)
    wv = Wv.astype(jnp.bfloat16)
    wo = Wo.astype(jnp.bfloat16)
    bq_r = (bq * scale).reshape(1, D).astype(jnp.float32)
    bk_r = bk.reshape(1, D).astype(jnp.float32)
    bv_r = bv.reshape(1, D).astype(jnp.float32)
    bo_r = bo.reshape(1, D).astype(jnp.float32)

    # Stream activations in bf16; compact int8 mask.
    q_in = query.astype(jnp.bfloat16)
    k_in = key.astype(jnp.bfloat16)
    v_in = value.astype(jnp.bfloat16)
    mask_i8 = (mask != 0).astype(jnp.int8)

    # --- Tile sizing / VMEM budgeting ------------------------------------
    try:
        vmem_cap = int(pltpu.get_tpu_info().vmem_capacity_bytes)
    except Exception:
        vmem_cap = 64 * 1024 * 1024          # conservative (v7x per-TC VMEM)
    budget = min(int(vmem_cap * 0.75), 112 * 1024 * 1024)

    def round_up(x, m):
        return ((x + m - 1) // m) * m

    def footprint(tq, s_pad):
        by = 4 * D * D * 2 * 2 + 4 * D * 4 * 2          # weights+biases (<=2 bufs)
        by += 2 * tq * D * 2                            # q block (double-buffered)
        by += 2 * 2 * s_pad * D * 2                     # k, v blocks (bf16)
        by += 2 * tq * s_pad * 1                        # mask block (int8)
        by += 2 * tq * D * 4                            # out block (f32)
        if return_attn:
            by += 2 * h * tq * s_pad * 2                # attn block (bf16)
        by += 2 * s_pad * D * 2 + tq * D * 4            # kp/vp/ctx scratch
        return by

    if block_q is None:
        block_q = 256
    TQ = max(8, round_up(min(block_q, round_up(S, 8)), 8))
    S_pad = round_up(S, TQ)
    while TQ > 8 and footprint(TQ, S_pad) > budget:
        TQ = max(8, round_up(TQ // 2, 8))
        S_pad = round_up(S, TQ)
    vmem_limit = int(min(max(footprint(TQ, S_pad) + (8 << 20), 32 << 20), budget))
    nq = S_pad // TQ

    # Pad ragged S (padded key columns are masked; padded query rows sliced off).
    if S_pad != S:
        pad = S_pad - S
        q_in = jnp.pad(q_in, ((0, 0), (0, pad), (0, 0)))
        k_in = jnp.pad(k_in, ((0, 0), (0, pad), (0, 0)))
        v_in = jnp.pad(v_in, ((0, 0), (0, pad), (0, 0)))
        mask_i8 = jnp.pad(mask_i8, ((0, 0), (0, pad), (0, pad)))

    kernel = functools.partial(_mha_kernel, h=h, d_k=d_k, with_attn=return_attn)

    out_shapes = [jax.ShapeDtypeStruct((B, S_pad, D), jnp.float32)]
    if return_attn:
        out_shapes.append(jax.ShapeDtypeStruct((B, h, S_pad, S_pad), jnp.bfloat16))

    def make_call(single_buffer_weights):
        w_kwargs = dict(pipeline_mode=pl.Buffered(1)) if single_buffer_weights else {}
        w_spec = pl.BlockSpec((D, D), lambda b, qi: (0, 0), **w_kwargs)
        b_spec = pl.BlockSpec((1, D), lambda b, qi: (0, 0), **w_kwargs)
        q_spec = pl.BlockSpec((1, TQ, D), lambda b, qi: (b, qi, 0))
        kv_spec = pl.BlockSpec((1, S_pad, D), lambda b, qi: (b, 0, 0))
        mask_spec = pl.BlockSpec((1, TQ, S_pad), lambda b, qi: (b, qi, 0))
        out_specs = [pl.BlockSpec((1, TQ, D), lambda b, qi: (b, qi, 0))]
        if return_attn:
            out_specs.append(
                pl.BlockSpec((1, h, TQ, S_pad), lambda b, qi: (b, 0, qi, 0)))
        return pl.pallas_call(
            kernel,
            out_shape=tuple(out_shapes),
            grid_spec=pltpu.PrefetchScalarGridSpec(
                num_scalar_prefetch=0,
                grid=(B, nq),
                in_specs=[q_spec, kv_spec, kv_spec, mask_spec,
                          w_spec, b_spec, w_spec, b_spec, w_spec, b_spec,
                          w_spec, b_spec],
                out_specs=tuple(out_specs),
                scratch_shapes=[pltpu.VMEM((S_pad, D), jnp.bfloat16),   # kp cache
                                pltpu.VMEM((S_pad, D), jnp.bfloat16),   # vp cache
                                pltpu.VMEM((TQ, D), jnp.float32)]),     # ctx accum
            compiler_params=pltpu.CompilerParams(
                # batch stays "parallel" (v7x megacore); qi must be "arbitrary"
                # so the per-batch kp/vp scratch cache is reused in order.
                dimension_semantics=("parallel", "arbitrary"),
                vmem_limit_bytes=vmem_limit),
        )

    args = (q_in, k_in, v_in, mask_i8,
            wq, bq_r, wk, bk_r, wv, bv_r, wo, bo_r)
    try:
        results = make_call(True)(*args)      # single-buffered resident weights
    except Exception:
        results = make_call(False)(*args)     # fallback: default buffering

    if return_attn:
        out, attn = results
    else:
        out, attn = results[0], None

    if S_pad != S:
        out = out[:, :S, :]
        if attn is not None:
            attn = attn[:, :, :S, :S]
    return out, attn


def mha_reference(query, key, value, mask, params, h):
    """Plain-JAX (f32) mirror of the PyTorch forward (eval mode)."""
    B, S, D = query.shape
    d_k = D // h
    Wq, bq, Wk, bk, Wv, bv, Wo, bo = params

    def proj(x, W, b):
        y = x @ W + b
        return y.reshape(B, S, h, d_k).transpose(0, 2, 1, 3)

    Q, K, V = proj(query, Wq, bq), proj(key, Wk, bk), proj(value, Wv, bv)
    scores = jnp.einsum('bhqd,bhkd->bhqk', Q, K) / math.sqrt(d_k)
    scores = jnp.where(mask[:, None, :, :] == 0.0, -1000000000.0, scores)
    p = jax.nn.softmax(scores, axis=-1)
    ctx = jnp.einsum('bhqk,bhkd->bhqd', p, V)
    ctx = ctx.transpose(0, 2, 1, 3).reshape(B, S, D)
    return ctx @ Wo + bo, p


if __name__ == "__main__":
    B, S, D, H = 2, 8, 32, 4

    key0 = jax.random.PRNGKey(0)
    keys = jax.random.split(key0, 16)

    # Deterministic "checkpoint": 4 Linear(d_model, d_model) layers.
    # Convention: y = x @ W + b  (W == torch_weight.T).
    bound = 1.0 / math.sqrt(D)

    def init_linear(kw, kb):
        W = jax.random.uniform(kw, (D, D), jnp.float32, -bound, bound)
        b = jax.random.uniform(kb, (D,), jnp.float32, -bound, bound)
        return W, b

    Wq, bq = init_linear(keys[0], keys[1])
    Wk, bk = init_linear(keys[2], keys[3])
    Wv, bv = init_linear(keys[4], keys[5])
    Wo, bo = init_linear(keys[6], keys[7])
    params = (Wq, bq, Wk, bk, Wv, bv, Wo, bo)

    query = jax.random.normal(keys[8], (B, S, D), jnp.float32)
    key_ = jax.random.normal(keys[9], (B, S, D), jnp.float32)
    value = jax.random.normal(keys[10], (B, S, D), jnp.float32)

    # Causal mask (B, S, S), 0 = masked (matches the 3-D torch mask before unsqueeze(1)).
    mask = jnp.tril(jnp.ones((S, S), jnp.float32))[None].repeat(B, axis=0)

    out, attn = multi_headed_attention(query, key_, value, mask, params, H,
                                       return_attn=True)
    out = jax.block_until_ready(out)
    attn = jax.block_until_ready(attn)

    # Fast path: no attention-probability writeback.
    out_noattn, _ = multi_headed_attention(query, key_, value, mask, params, H,
                                           return_attn=False)
    out_noattn = jax.block_until_ready(out_noattn)

    out_ref, attn_ref = mha_reference(query, key_, value, mask, params, H)

    # bf16 MXU operands + bf16 attn output + approx reciprocal -> loosened tol.
    assert out.shape == (B, S, D) and attn.shape == (B, H, S, S)
    assert jnp.allclose(out, out_ref, rtol=2e-2, atol=2e-2)
    assert jnp.allclose(attn.astype(jnp.float32), attn_ref, rtol=2e-2, atol=2e-2)
    assert jnp.allclose(out_noattn, out_ref, rtol=2e-2, atol=2e-2)
    print("KERNEL_OK")
</pallas_src>

<mosaic_0001>
module attributes {stable_mosaic.version = 11 : i64} {
  func.func @_mha_kernel(%arg0: i32, %arg1: i32, %arg2: memref<1x8x32xbf16, #tpu.memory_space<vmem>>, %arg3: memref<1x8x32xbf16, #tpu.memory_space<vmem>>, %arg4: memref<1x8x32xbf16, #tpu.memory_space<vmem>>, %arg5: memref<1x8x8xi8, #tpu.memory_space<vmem>>, %arg6: memref<32x32xbf16, #tpu.memory_space<vmem>>, %arg7: memref<1x32xf32, #tpu.memory_space<vmem>>, %arg8: memref<32x32xbf16, #tpu.memory_space<vmem>>, %arg9: memref<1x32xf32, #tpu.memory_space<vmem>>, %arg10: memref<32x32xbf16, #tpu.memory_space<vmem>>, %arg11: memref<1x32xf32, #tpu.memory_space<vmem>>, %arg12: memref<32x32xbf16, #tpu.memory_space<vmem>>, %arg13: memref<1x32xf32, #tpu.memory_space<vmem>>, %arg14: memref<1x8x32xf32, #tpu.memory_space<vmem>>, %arg15: memref<1x4x8x8xbf16, #tpu.memory_space<vmem>>, %arg16: memref<8x32xbf16, #tpu.memory_space<vmem>>, %arg17: memref<8x32xbf16, #tpu.memory_space<vmem>>, %arg18: memref<8x32xf32, #tpu.memory_space<vmem>>) attributes {dimension_semantics = [#tpu.dimension_semantics<parallel>, #tpu.dimension_semantics<arbitrary>], iteration_bounds = array<i64: 2, 1>, scalar_prefetch = 0 : i64, scratch_operands = 3 : i64, tpu.core_type = #tpu.core_type<tc>, window_params = [{transform_indices = @transform_0, window_bounds = array<i64: 1, 8, 32>}, {transform_indices = @transform_1, window_bounds = array<i64: 1, 8, 32>}, {transform_indices = @transform_2, window_bounds = array<i64: 1, 8, 32>}, {transform_indices = @transform_3, window_bounds = array<i64: 1, 8, 8>}, {pipeline_mode = #tpu.pipeline_mode<synchronous>, transform_indices = @transform_4, window_bounds = array<i64: 32, 32>}, {pipeline_mode = #tpu.pipeline_mode<synchronous>, transform_indices = @transform_5, window_bounds = array<i64: 1, 32>}, {pipeline_mode = #tpu.pipeline_mode<synchronous>, transform_indices = @transform_6, window_bounds = array<i64: 32, 32>}, {pipeline_mode = #tpu.pipeline_mode<synchronous>, transform_indices = @transform_7, window_bounds = array<i64: 1, 32>}, {pipeline_mode = #tpu.pipeline_mode<synchronous>, transform_indices = @transform_8, window_bounds = array<i64: 32, 32>}, {pipeline_mode = #tpu.pipeline_mode<synchronous>, transform_indices = @transform_9, window_bounds = array<i64: 1, 32>}, {pipeline_mode = #tpu.pipeline_mode<synchronous>, transform_indices = @transform_10, window_bounds = array<i64: 32, 32>}, {pipeline_mode = #tpu.pipeline_mode<synchronous>, transform_indices = @transform_11, window_bounds = array<i64: 1, 32>}, {transform_indices = @transform_12, window_bounds = array<i64: 1, 8, 32>}, {transform_indices = @transform_13, window_bounds = array<i64: 1, 4, 8, 8>}]} {
    %c0_i32 = arith.constant 0 : i32
    %0 = arith.cmpi eq, %arg1, %c0_i32 : i32
    %1 = arith.extui %0 : i1 to i32
    %c0_i32_0 = arith.constant 0 : i32
    %2 = arith.cmpi ne, %1, %c0_i32_0 : i32
    scf.if %2 {
      %c0_61 = arith.constant 0 : index
      %c0_62 = arith.constant 0 : index
      %c0_63 = arith.constant 0 : index
      %122 = vector.load %arg3[%c0_61, %c0_62, %c0_63] : memref<1x8x32xbf16, #tpu.memory_space<vmem>>, vector<1x8x32xbf16>
      %123 = vector.shape_cast %122 : vector<1x8x32xbf16> to vector<8x32xbf16>
      %c0_64 = arith.constant 0 : index
      %c0_65 = arith.constant 0 : index
      %124 = vector.load %arg8[%c0_64, %c0_65] : memref<32x32xbf16, #tpu.memory_space<vmem>>, vector<32x32xbf16>
      %cst_66 = arith.constant dense<0.000000e+00> : vector<8x32xf32>
      %125 = tpu.matmul %123, %124, %cst_66 {dimension_numbers = #tpu.dot_dimension_numbers<[1], [0], [0], [1], [0, 0, 1, 1], [], []>} : vector<8x32xbf16>, vector<32x32xbf16>, vector<8x32xf32> -> vector<8x32xf32>
      %c0_67 = arith.constant 0 : index
      %c0_68 = arith.constant 0 : index
      %126 = vector.load %arg9[%c0_67, %c0_68] : memref<1x32xf32, #tpu.memory_space<vmem>>, vector<1x32xf32>
      %127 = vector.broadcast %126 : vector<1x32xf32> to vector<8x32xf32>
      %128 = arith.addf %125, %127 : vector<8x32xf32>
      %c0_69 = arith.constant 0 : index
      %c0_70 = arith.constant 0 : index
      %c0_71 = arith.constant 0 : index
      %129 = vector.load %arg4[%c0_69, %c0_70, %c0_71] : memref<1x8x32xbf16, #tpu.memory_space<vmem>>, vector<1x8x32xbf16>
      %130 = vector.shape_cast %129 : vector<1x8x32xbf16> to vector<8x32xbf16>
      %c0_72 = arith.constant 0 : index
      %c0_73 = arith.constant 0 : index
      %131 = vector.load %arg10[%c0_72, %c0_73] : memref<32x32xbf16, #tpu.memory_space<vmem>>, vector<32x32xbf16>
      %cst_74 = arith.constant dense<0.000000e+00> : vector<8x32xf32>
      %132 = tpu.matmul %130, %131, %cst_74 {dimension_numbers = #tpu.dot_dimension_numbers<[1], [0], [0], [1], [0, 0, 1, 1], [], []>} : vector<8x32xbf16>, vector<32x32xbf16>, vector<8x32xf32> -> vector<8x32xf32>
      %c0_75 = arith.constant 0 : index
      %c0_76 = arith.constant 0 : index
      %133 = vector.load %arg11[%c0_75, %c0_76] : memref<1x32xf32, #tpu.memory_space<vmem>>, vector<1x32xf32>
      %134 = vector.broadcast %133 : vector<1x32xf32> to vector<8x32xf32>
      %135 = arith.addf %132, %134 : vector<8x32xf32>
      %136 = arith.truncf %128 : vector<8x32xf32> to vector<8x32xbf16>
      %c0_77 = arith.constant 0 : index
      %c0_78 = arith.constant 0 : index
      %137 = vector.load %arg16[%c0_77, %c0_78] : memref<8x32xbf16, #tpu.memory_space<vmem>>, vector<8x32xbf16>
      tpu.vector_store %arg16[%c0_77, %c0_78], %136 {strides = array<i32>} : memref<8x32xbf16, #tpu.memory_space<vmem>>, vector<8x32xbf16>,
      %138 = arith.truncf %135 : vector<8x32xf32> to vector<8x32xbf16>
      %c0_79 = arith.constant 0 : index
      %c0_80 = arith.constant 0 : index
      %139 = vector.load %arg17[%c0_79, %c0_80] : memref<8x32xbf16, #tpu.memory_space<vmem>>, vector<8x32xbf16>
      tpu.vector_store %arg17[%c0_79, %c0_80], %138 {strides = array<i32>} : memref<8x32xbf16, #tpu.memory_space<vmem>>, vector<8x32xbf16>,
    } else {
    }
    %c0 = arith.constant 0 : index
    %c0_1 = arith.constant 0 : index
    %c0_2 = arith.constant 0 : index
    %3 = vector.load %arg2[%c0, %c0_1, %c0_2] : memref<1x8x32xbf16, #tpu.memory_space<vmem>>, vector<1x8x32xbf16>
    %4 = vector.shape_cast %3 : vector<1x8x32xbf16> to vector<8x32xbf16>
    %c0_3 = arith.constant 0 : index
    %c0_4 = arith.constant 0 : index
    %5 = vector.load %arg6[%c0_3, %c0_4] : memref<32x32xbf16, #tpu.memory_space<vmem>>, vector<32x32xbf16>
    %cst = arith.constant dense<0.000000e+00> : vector<8x32xf32>
    %6 = tpu.matmul %4, %5, %cst {dimension_numbers = #tpu.dot_dimension_numbers<[1], [0], [0], [1], [0, 0, 1, 1], [], []>} : vector<8x32xbf16>, vector<32x32xbf16>, vector<8x32xf32> -> vector<8x32xf32>
    %c0_5 = arith.constant 0 : index
    %c0_6 = arith.constant 0 : index
    %7 = vector.load %arg7[%c0_5, %c0_6] : memref<1x32xf32, #tpu.memory_space<vmem>>, vector<1x32xf32>
    %8 = vector.broadcast %7 : vector<1x32xf32> to vector<8x32xf32>
    %9 = arith.addf %6, %8 : vector<8x32xf32>
    %c0_7 = arith.constant 0 : index
    %c0_8 = arith.constant 0 : index
    %c0_9 = arith.constant 0 : index
    %10 = vector.load %arg5[%c0_7, %c0_8, %c0_9] : memref<1x8x8xi8, #tpu.memory_space<vmem>>, vector<1x8x8xi8>
    %11 = vector.shape_cast %10 : vector<1x8x8xi8> to vector<8x8xi8>
    %12 = arith.extsi %11 : vector<8x8xi8> to vector<8x8xi32>
    %c0_i32_10 = arith.constant 0 : i32
    %13 = vector.broadcast %c0_i32_10 : i32 to vector<8x8xi32>
    %14 = arith.cmpi eq, %12, %13 : vector<8x8xi32>
    %cst_11 = arith.constant -1.000000e+09 : f32
    %cst_12 = arith.constant 0.000000e+00 : f32
    %15 = vector.broadcast %cst_11 : f32 to vector<8x8xf32>
    %16 = vector.broadcast %cst_12 : f32 to vector<8x8xf32>
    %17 = arith.select %14, %15, %16 : vector<8x8xi1>, vector<8x8xf32>
    %c0_13 = arith.constant 0 : index
    %c0_14 = arith.constant 0 : index
    %18 = vector.load %arg16[%c0_13, %c0_14] : memref<8x32xbf16, #tpu.memory_space<vmem>>, vector<8x32xbf16>
    %c0_15 = arith.constant 0 : index
    %c0_16 = arith.constant 0 : index
    %19 = vector.load %arg17[%c0_15, %c0_16] : memref<8x32xbf16, #tpu.memory_space<vmem>>, vector<8x32xbf16>
    %20 = vector.extract_strided_slice %9 {offsets = [0, 0], sizes = [8, 8], strides = [1, 1]} : vector<8x32xf32> to vector<8x8xf32>
    %21 = arith.truncf %20 : vector<8x8xf32> to vector<8x8xbf16>
    %22 = vector.extract_strided_slice %18 {offsets = [0, 0], sizes = [8, 8], strides = [1, 1]} : vector<8x32xbf16> to vector<8x8xbf16>
    %23 = vector.extract_strided_slice %19 {offsets = [0, 0], sizes = [8, 8], strides = [1, 1]} : vector<8x32xbf16> to vector<8x8xbf16>
    %cst_17 = arith.constant dense<0.000000e+00> : vector<8x8xf32>
    %24 = tpu.matmul %21, %22, %cst_17 {dimension_numbers = #tpu.dot_dimension_numbers<[1], [1], [0], [0], [0, 0, 1, 0], [], []>} : vector<8x8xbf16>, vector<8x8xbf16>, vector<8x8xf32> -> vector<8x8xf32>
    %25 = arith.addf %24, %17 : vector<8x8xf32>
    %cst_18 = arith.constant dense<0xFF800000> : vector<8xf32>
    %26 = vector.multi_reduction <maximumf>, %25, %cst_18 [1] : vector<8x8xf32> to vector<8xf32>
    %27 = vector.shape_cast %26 : vector<8xf32> to vector<8x1xf32>
    %28 = vector.broadcast %27 : vector<8x1xf32> to vector<8x8xf32>
    %29 = arith.subf %25, %28 : vector<8x8xf32>
    %30 = math.exp %29 : vector<8x8xf32>
    %cst_19 = arith.constant dense<0.000000e+00> : vector<8xf32>
    %31 = vector.multi_reduction <add>, %30, %cst_19 [1] : vector<8x8xf32> to vector<8xf32>
    %32 = vector.shape_cast %31 : vector<8xf32> to vector<8x1xf32>
    %33 = tpu.reciprocal %32 {approx = true} : vector<8x1xf32> -> vector<8x1xf32>
    %34 = vector.broadcast %33 : vector<8x1xf32> to vector<8x8xf32>
    %35 = arith.mulf %30, %34 : vector<8x8xf32>
    %36 = arith.truncf %35 : vector<8x8xf32> to vector<8x8xbf16>
    %c0_20 = arith.constant 0 : index
    %c0_21 = arith.constant 0 : index
    %c0_22 = arith.constant 0 : index
    %c0_23 = arith.constant 0 : index
    %37 = vector.load %arg15[%c0_20, %c0_21, %c0_22, %c0_23] : memref<1x4x8x8xbf16, #tpu.memory_space<vmem>>, vector<1x1x8x8xbf16>
    %38 = vector.shape_cast %37 : vector<1x1x8x8xbf16> to vector<8x8xbf16>
    %39 = vector.shape_cast %36 : vector<8x8xbf16> to vector<1x1x8x8xbf16>
    tpu.vector_store %arg15[%c0_20, %c0_21, %c0_22, %c0_23], %39 {strides = array<i32>} : memref<1x4x8x8xbf16, #tpu.memory_space<vmem>>, vector<1x1x8x8xbf16>,
    %40 = arith.truncf %35 : vector<8x8xf32> to vector<8x8xbf16>
    %cst_24 = arith.constant dense<0.000000e+00> : vector<8x8xf32>
    %41 = tpu.matmul %40, %23, %cst_24 {dimension_numbers = #tpu.dot_dimension_numbers<[1], [0], [0], [1], [0, 0, 1, 1], [], []>} : vector<8x8xbf16>, vector<8x8xbf16>, vector<8x8xf32> -> vector<8x8xf32>
    %c0_25 = arith.constant 0 : index
    %c0_26 = arith.constant 0 : index
    %42 = vector.load %arg18[%c0_25, %c0_26] : memref<8x32xf32, #tpu.memory_space<vmem>>, vector<8x8xf32>
    tpu.vector_store %arg18[%c0_25, %c0_26], %41 {strides = array<i32>} : memref<8x32xf32, #tpu.memory_space<vmem>>, vector<8x8xf32>,
    %43 = vector.extract_strided_slice %9 {offsets = [0, 8], sizes = [8, 8], strides = [1, 1]} : vector<8x32xf32> to vector<8x8xf32>
    %44 = arith.truncf %43 : vector<8x8xf32> to vector<8x8xbf16>
    %45 = vector.extract_strided_slice %18 {offsets = [0, 8], sizes = [8, 8], strides = [1, 1]} : vector<8x32xbf16> to vector<8x8xbf16>
    %46 = vector.extract_strided_slice %19 {offsets = [0, 8], sizes = [8, 8], strides = [1, 1]} : vector<8x32xbf16> to vector<8x8xbf16>
    %cst_27 = arith.constant dense<0.000000e+00> : vector<8x8xf32>
    %47 = tpu.matmul %44, %45, %cst_27 {dimension_numbers = #tpu.dot_dimension_numbers<[1], [1], [0], [0], [0, 0, 1, 0], [], []>} : vector<8x8xbf16>, vector<8x8xbf16>, vector<8x8xf32> -> vector<8x8xf32>
    %48 = arith.addf %47, %17 : vector<8x8xf32>
    %cst_28 = arith.constant dense<0xFF800000> : vector<8xf32>
    %49 = vector.multi_reduction <maximumf>, %48, %cst_28 [1] : vector<8x8xf32> to vector<8xf32>
    %50 = vector.shape_cast %49 : vector<8xf32> to vector<8x1xf32>
    %51 = vector.broadcast %50 : vector<8x1xf32> to vector<8x8xf32>
    %52 = arith.subf %48, %51 : vector<8x8xf32>
    %53 = math.exp %52 : vector<8x8xf32>
    %cst_29 = arith.constant dense<0.000000e+00> : vector<8xf32>
    %54 = vector.multi_reduction <add>, %53, %cst_29 [1] : vector<8x8xf32> to vector<8xf32>
    %55 = vector.shape_cast %54 : vector<8xf32> to vector<8x1xf32>
    %56 = tpu.reciprocal %55 {approx = true} : vector<8x1xf32> -> vector<8x1xf32>
    %57 = vector.broadcast %56 : vector<8x1xf32> to vector<8x8xf32>
    %58 = arith.mulf %53, %57 : vector<8x8xf32>
    %59 = arith.truncf %58 : vector<8x8xf32> to vector<8x8xbf16>
    %c0_30 = arith.constant 0 : index
    %c1 = arith.constant 1 : index
    %c0_31 = arith.constant 0 : index
    %c0_32 = arith.constant 0 : index
    %60 = vector.load %arg15[%c0_30, %c1, %c0_31, %c0_32] : memref<1x4x8x8xbf16, #tpu.memory_space<vmem>>, vector<1x1x8x8xbf16>
    %61 = vector.shape_cast %60 : vector<1x1x8x8xbf16> to vector<8x8xbf16>
    %62 = vector.shape_cast %59 : vector<8x8xbf16> to vector<1x1x8x8xbf16>
    tpu.vector_store %arg15[%c0_30, %c1, %c0_31, %c0_32], %62 {strides = array<i32>} : memref<1x4x8x8xbf16, #tpu.memory_space<vmem>>, vector<1x1x8x8xbf16>,
    %63 = arith.truncf %58 : vector<8x8xf32> to vector<8x8xbf16>
    %cst_33 = arith.constant dense<0.000000e+00> : vector<8x8xf32>
    %64 = tpu.matmul %63, %46, %cst_33 {dimension_numbers = #tpu.dot_dimension_numbers<[1], [0], [0], [1], [0, 0, 1, 1], [], []>} : vector<8x8xbf16>, vector<8x8xbf16>, vector<8x8xf32> -> vector<8x8xf32>
    %c0_34 = arith.constant 0 : index
    %c8 = arith.constant 8 : index
    %65 = vector.load %arg18[%c0_34, %c8] : memref<8x32xf32, #tpu.memory_space<vmem>>, vector<8x8xf32>
    tpu.vector_store %arg18[%c0_34, %c8], %64 {strides = array<i32>} : memref<8x32xf32, #tpu.memory_space<vmem>>, vector<8x8xf32>,
    %66 = vector.extract_strided_slice %9 {offsets = [0, 16], sizes = [8, 8], strides = [1, 1]} : vector<8x32xf32> to vector<8x8xf32>
    %67 = arith.truncf %66 : vector<8x8xf32> to vector<8x8xbf16>
    %68 = vector.extract_strided_slice %18 {offsets = [0, 16], sizes = [8, 8], strides = [1, 1]} : vector<8x32xbf16> to vector<8x8xbf16>
    %69 = vector.extract_strided_slice %19 {offsets = [0, 16], sizes = [8, 8], strides = [1, 1]} : vector<8x32xbf16> to vector<8x8xbf16>
    %cst_35 = arith.constant dense<0.000000e+00> : vector<8x8xf32>
    %70 = tpu.matmul %67, %68, %cst_35 {dimension_numbers = #tpu.dot_dimension_numbers<[1], [1], [0], [0], [0, 0, 1, 0], [], []>} : vector<8x8xbf16>, vector<8x8xbf16>, vector<8x8xf32> -> vector<8x8xf32>
    %71 = arith.addf %70, %17 : vector<8x8xf32>
    %cst_36 = arith.constant dense<0xFF800000> : vector<8xf32>
    %72 = vector.multi_reduction <maximumf>, %71, %cst_36 [1] : vector<8x8xf32> to vector<8xf32>
    %73 = vector.shape_cast %72 : vector<8xf32> to vector<8x1xf32>
    %74 = vector.broadcast %73 : vector<8x1xf32> to vector<8x8xf32>
    %75 = arith.subf %71, %74 : vector<8x8xf32>
    %76 = math.exp %75 : vector<8x8xf32>
    %cst_37 = arith.constant dense<0.000000e+00> : vector<8xf32>
    %77 = vector.multi_reduction <add>, %76, %cst_37 [1] : vector<8x8xf32> to vector<8xf32>
    %78 = vector.shape_cast %77 : vector<8xf32> to vector<8x1xf32>
    %79 = tpu.reciprocal %78 {approx = true} : vector<8x1xf32> -> vector<8x1xf32>
    %80 = vector.broadcast %79 : vector<8x1xf32> to vector<8x8xf32>
    %81 = arith.mulf %76, %80 : vector<8x8xf32>
    %82 = arith.truncf %81 : vector<8x8xf32> to vector<8x8xbf16>
    %c0_38 = arith.constant 0 : index
    %c2 = arith.constant 2 : index
    %c0_39 = arith.constant 0 : index
    %c0_40 = arith.constant 0 : index
    %83 = vector.load %arg15[%c0_38, %c2, %c0_39, %c0_40] : memref<1x4x8x8xbf16, #tpu.memory_space<vmem>>, vector<1x1x8x8xbf16>
    %84 = vector.shape_cast %83 : vector<1x1x8x8xbf16> to vector<8x8xbf16>
    %85 = vector.shape_cast %82 : vector<8x8xbf16> to vector<1x1x8x8xbf16>
    tpu.vector_store %arg15[%c0_38, %c2, %c0_39, %c0_40], %85 {strides = array<i32>} : memref<1x4x8x8xbf16, #tpu.memory_space<vmem>>, vector<1x1x8x8xbf16>,
    %86 = arith.truncf %81 : vector<8x8xf32> to vector<8x8xbf16>
    %cst_41 = arith.constant dense<0.000000e+00> : vector<8x8xf32>
    %87 = tpu.matmul %86, %69, %cst_41 {dimension_numbers = #tpu.dot_dimension_numbers<[1], [0], [0], [1], [0, 0, 1, 1], [], []>} : vector<8x8xbf16>, vector<8x8xbf16>, vector<8x8xf32> -> vector<8x8xf32>
    %c0_42 = arith.constant 0 : index
    %c16 = arith.constant 16 : index
    %88 = vector.load %arg18[%c0_42, %c16] : memref<8x32xf32, #tpu.memory_space<vmem>>, vector<8x8xf32>
    tpu.vector_store %arg18[%c0_42, %c16], %87 {strides = array<i32>} : memref<8x32xf32, #tpu.memory_space<vmem>>, vector<8x8xf32>,
    %89 = vector.extract_strided_slice %9 {offsets = [0, 24], sizes = [8, 8], strides = [1, 1]} : vector<8x32xf32> to vector<8x8xf32>
    %90 = arith.truncf %89 : vector<8x8xf32> to vector<8x8xbf16>
    %91 = vector.extract_strided_slice %18 {offsets = [0, 24], sizes = [8, 8], strides = [1, 1]} : vector<8x32xbf16> to vector<8x8xbf16>
    %92 = vector.extract_strided_slice %19 {offsets = [0, 24], sizes = [8, 8], strides = [1, 1]} : vector<8x32xbf16> to vector<8x8xbf16>
    %cst_43 = arith.constant dense<0.000000e+00> : vector<8x8xf32>
    %93 = tpu.matmul %90, %91, %cst_43 {dimension_numbers = #tpu.dot_dimension_numbers<[1], [1], [0], [0], [0, 0, 1, 0], [], []>} : vector<8x8xbf16>, vector<8x8xbf16>, vector<8x8xf32> -> vector<8x8xf32>
    %94 = arith.addf %93, %17 : vector<8x8xf32>
    %cst_44 = arith.constant dense<0xFF800000> : vector<8xf32>
    %95 = vector.multi_reduction <maximumf>, %94, %cst_44 [1] : vector<8x8xf32> to vector<8xf32>
    %96 = vector.shape_cast %95 : vector<8xf32> to vector<8x1xf32>
    %97 = vector.broadcast %96 : vector<8x1xf32> to vector<8x8xf32>
    %98 = arith.subf %94, %97 : vector<8x8xf32>
    %99 = math.exp %98 : vector<8x8xf32>
    %cst_45 = arith.constant dense<0.000000e+00> : vector<8xf32>
    %100 = vector.multi_reduction <add>, %99, %cst_45 [1] : vector<8x8xf32> to vector<8xf32>
    %101 = vector.shape_cast %100 : vector<8xf32> to vector<8x1xf32>
    %102 = tpu.reciprocal %101 {approx = true} : vector<8x1xf32> -> vector<8x1xf32>
    %103 = vector.broadcast %102 : vector<8x1xf32> to vector<8x8xf32>
    %104 = arith.mulf %99, %103 : vector<8x8xf32>
    %105 = arith.truncf %104 : vector<8x8xf32> to vector<8x8xbf16>
    %c0_46 = arith.constant 0 : index
    %c3 = arith.constant 3 : index
    %c0_47 = arith.constant 0 : index
    %c0_48 = arith.constant 0 : index
    %106 = vector.load %arg15[%c0_46, %c3, %c0_47, %c0_48] : memref<1x4x8x8xbf16, #tpu.memory_space<vmem>>, vector<1x1x8x8xbf16>
    %107 = vector.shape_cast %106 : vector<1x1x8x8xbf16> to vector<8x8xbf16>
    %108 = vector.shape_cast %105 : vector<8x8xbf16> to vector<1x1x8x8xbf16>
    tpu.vector_store %arg15[%c0_46, %c3, %c0_47, %c0_48], %108 {strides = array<i32>} : memref<1x4x8x8xbf16, #tpu.memory_space<vmem>>, vector<1x1x8x8xbf16>,
    %109 = arith.truncf %104 : vector<8x8xf32> to vector<8x8xbf16>
    %cst_49 = arith.constant dense<0.000000e+00> : vector<8x8xf32>
    %110 = tpu.matmul %109, %92, %cst_49 {dimension_numbers = #tpu.dot_dimension_numbers<[1], [0], [0], [1], [0, 0, 1, 1], [], []>} : vector<8x8xbf16>, vector<8x8xbf16>, vector<8x8xf32> -> vector<8x8xf32>
    %c0_50 = arith.constant 0 : index
    %c24 = arith.constant 24 : index
    %111 = vector.load %arg18[%c0_50, %c24] : memref<8x32xf32, #tpu.memory_space<vmem>>, vector<8x8xf32>
    tpu.vector_store %arg18[%c0_50, %c24], %110 {strides = array<i32>} : memref<8x32xf32, #tpu.memory_space<vmem>>, vector<8x8xf32>,
    %c0_51 = arith.constant 0 : index
    %c0_52 = arith.constant 0 : index
    %112 = vector.load %arg18[%c0_51, %c0_52] : memref<8x32xf32, #tpu.memory_space<vmem>>, vector<8x32xf32>
    %113 = arith.truncf %112 : vector<8x32xf32> to vector<8x32xbf16>
    %c0_53 = arith.constant 0 : index
    %c0_54 = arith.constant 0 : index
    %114 = vector.load %arg12[%c0_53, %c0_54] : memref<32x32xbf16, #tpu.memory_space<vmem>>, vector<32x32xbf16>
    %cst_55 = arith.constant dense<0.000000e+00> : vector<8x32xf32>
    %115 = tpu.matmul %113, %114, %cst_55 {dimension_numbers = #tpu.dot_dimension_numbers<[1], [0], [0], [1], [0, 0, 1, 1], [], []>} : vector<8x32xbf16>, vector<32x32xbf16>, vector<8x32xf32> -> vector<8x32xf32>
    %c0_56 = arith.constant 0 : index
    %c0_57 = arith.constant 0 : index
    %116 = vector.load %arg13[%c0_56, %c0_57] : memref<1x32xf32, #tpu.memory_space<vmem>>, vector<1x32xf32>
    %117 = vector.broadcast %116 : vector<1x32xf32> to vector<8x32xf32>
    %118 = arith.addf %115, %117 : vector<8x32xf32>
    %c0_58 = arith.constant 0 : index
    %c0_59 = arith.constant 0 : index
    %c0_60 = arith.constant 0 : index
    %119 = vector.load %arg14[%c0_58, %c0_59, %c0_60] : memref<1x8x32xf32, #tpu.memory_space<vmem>>, vector<1x8x32xf32>
    %120 = vector.shape_cast %119 : vector<1x8x32xf32> to vector<8x32xf32>
    %121 = vector.shape_cast %118 : vector<8x32xf32> to vector<1x8x32xf32>
    tpu.vector_store %arg14[%c0_58, %c0_59, %c0_60], %121 {strides = array<i32>} : memref<1x8x32xf32, #tpu.memory_space<vmem>>, vector<1x8x32xf32>,
    return
  }
  func.func @transform_0(%arg0: i32, %arg1: i32) -> (i32, i32, i32) {
    %c0_i32 = arith.constant 0 : i32
    %c0_i32_0 = arith.constant 0 : i32
    return %arg0, %arg1, %c0_i32 : i32, i32, i32
  }
  func.func @transform_1(%arg0: i32, %arg1: i32) -> (i32, i32, i32) {
    %c0_i32 = arith.constant 0 : i32
    %c0_i32_0 = arith.constant 0 : i32
    %c0_i32_1 = arith.constant 0 : i32
    return %arg0, %c0_i32, %c0_i32_0 : i32, i32, i32
  }
  func.func @transform_2(%arg0: i32, %arg1: i32) -> (i32, i32, i32) {
    %c0_i32 = arith.constant 0 : i32
    %c0_i32_0 = arith.constant 0 : i32
    %c0_i32_1 = arith.constant 0 : i32
    return %arg0, %c0_i32, %c0_i32_0 : i32, i32, i32
  }
  func.func @transform_3(%arg0: i32, %arg1: i32) -> (i32, i32, i32) {
    %c0_i32 = arith.constant 0 : i32
    %c0_i32_0 = arith.constant 0 : i32
    return %arg0, %arg1, %c0_i32 : i32, i32, i32
  }
  func.func @transform_4(%arg0: i32, %arg1: i32) -> (i32, i32) {
    %c0_i32 = arith.constant 0 : i32
    %c0_i32_0 = arith.constant 0 : i32
    %c0_i32_1 = arith.constant 0 : i32
    return %c0_i32, %c0_i32_0 : i32, i32
  }
  func.func @transform_5(%arg0: i32, %arg1: i32) -> (i32, i32) {
    %c0_i32 = arith.constant 0 : i32
    %c0_i32_0 = arith.constant 0 : i32
    %c0_i32_1 = arith.constant 0 : i32
    return %c0_i32, %c0_i32_0 : i32, i32
  }
  func.func @transform_6(%arg0: i32, %arg1: i32) -> (i32, i32) {
    %c0_i32 = arith.constant 0 : i32
    %c0_i32_0 = arith.constant 0 : i32
    %c0_i32_1 = arith.constant 0 : i32
    return %c0_i32, %c0_i32_0 : i32, i32
  }
  func.func @transform_7(%arg0: i32, %arg1: i32) -> (i32, i32) {
    %c0_i32 = arith.constant 0 : i32
    %c0_i32_0 = arith.constant 0 : i32
    %c0_i32_1 = arith.constant 0 : i32
    return %c0_i32, %c0_i32_0 : i32, i32
  }
  func.func @transform_8(%arg0: i32, %arg1: i32) -> (i32, i32) {
    %c0_i32 = arith.constant 0 : i32
    %c0_i32_0 = arith.constant 0 : i32
    %c0_i32_1 = arith.constant 0 : i32
    return %c0_i32, %c0_i32_0 : i32, i32
  }
  func.func @transform_9(%arg0: i32, %arg1: i32) -> (i32, i32) {
    %c0_i32 = arith.constant 0 : i32
    %c0_i32_0 = arith.constant 0 : i32
    %c0_i32_1 = arith.constant 0 : i32
    return %c0_i32, %c0_i32_0 : i32, i32
  }
  func.func @transform_10(%arg0: i32, %arg1: i32) -> (i32, i32) {
    %c0_i32 = arith.constant 0 : i32
    %c0_i32_0 = arith.constant 0 : i32
    %c0_i32_1 = arith.constant 0 : i32
    return %c0_i32, %c0_i32_0 : i32, i32
  }
  func.func @transform_11(%arg0: i32, %arg1: i32) -> (i32, i32) {
    %c0_i32 = arith.constant 0 : i32
    %c0_i32_0 = arith.constant 0 : i32
    %c0_i32_1 = arith.constant 0 : i32
    return %c0_i32, %c0_i32_0 : i32, i32
  }
  func.func @transform_12(%arg0: i32, %arg1: i32) -> (i32, i32, i32) {
    %c0_i32 = arith.constant 0 : i32
    %c0_i32_0 = arith.constant 0 : i32
    return %arg0, %arg1, %c0_i32 : i32, i32, i32
  }
  func.func @transform_13(%arg0: i32, %arg1: i32) -> (i32, i32, i32, i32) {
    %c0_i32 = arith.constant 0 : i32
    %c0_i32_0 = arith.constant 0 : i32
    %c0_i32_1 = arith.constant 0 : i32
    return %arg0, %c0_i32, %arg1, %c0_i32_0 : i32, i32, i32, i32
  }
}

module attributes {stable_mosaic.version = 11 : i64} {
  func.func @_mha_kernel(%arg0: i32, %arg1: i32, %arg2: memref<1x8x32xbf16, #tpu.memory_space<vmem>>, %arg3: memref<1x8x32xbf16, #tpu.memory_space<vmem>>, %arg4: memref<1x8x32xbf16, #tpu.memory_space<vmem>>, %arg5: memref<1x8x8xi8, #tpu.memory_space<vmem>>, %arg6: memref<32x32xbf16, #tpu.memory_space<vmem>>, %arg7: memref<1x32xf32, #tpu.memory_space<vmem>>, %arg8: memref<32x32xbf16, #tpu.memory_space<vmem>>, %arg9: memref<1x32xf32, #tpu.memory_space<vmem>>, %arg10: memref<32x32xbf16, #tpu.memory_space<vmem>>, %arg11: memref<1x32xf32, #tpu.memory_space<vmem>>, %arg12: memref<32x32xbf16, #tpu.memory_space<vmem>>, %arg13: memref<1x32xf32, #tpu.memory_space<vmem>>, %arg14: memref<1x8x32xf32, #tpu.memory_space<vmem>>, %arg15: memref<1x4x8x8xbf16, #tpu.memory_space<vmem>>, %arg16: memref<8x32xbf16, #tpu.memory_space<vmem>>, %arg17: memref<8x32xbf16, #tpu.memory_space<vmem>>, %arg18: memref<8x32xf32, #tpu.memory_space<vmem>>) attributes {dimension_semantics = [#tpu.dimension_semantics<parallel>, #tpu.dimension_semantics<arbitrary>], iteration_bounds = array<i64: 2, 1>, scalar_prefetch = 0 : i64, scratch_operands = 3 : i64, tpu.core_type = #tpu.core_type<tc>, window_params = [{transform_indices = @transform_0, window_bounds = array<i64: 1, 8, 32>}, {transform_indices = @transform_1, window_bounds = array<i64: 1, 8, 32>}, {transform_indices = @transform_2, window_bounds = array<i64: 1, 8, 32>}, {transform_indices = @transform_3, window_bounds = array<i64: 1, 8, 8>}, {pipeline_mode = #tpu.pipeline_mode<synchronous>, transform_indices = @transform_4, window_bounds = array<i64: 32, 32>}, {pipeline_mode = #tpu.pipeline_mode<synchronous>, transform_indices = @transform_5, window_bounds = array<i64: 1, 32>}, {pipeline_mode = #tpu.pipeline_mode<synchronous>, transform_indices = @transform_6, window_bounds = array<i64: 32, 32>}, {pipeline_mode = #tpu.pipeline_mode<synchronous>, transform_indices = @transform_7, window_bounds = array<i64: 1, 32>}, {pipeline_mode = #tpu.pipeline_mode<synchronous>, transform_indices = @transform_8, window_bounds = array<i64: 32, 32>}, {pipeline_mode = #tpu.pipeline_mode<synchronous>, transform_indices = @transform_9, window_bounds = array<i64: 1, 32>}, {pipeline_mode = #tpu.pipeline_mode<synchronous>, transform_indices = @transform_10, window_bounds = array<i64: 32, 32>}, {pipeline_mode = #tpu.pipeline_mode<synchronous>, transform_indices = @transform_11, window_bounds = array<i64: 1, 32>}, {transform_indices = @transform_12, window_bounds = array<i64: 1, 8, 32>}, {transform_indices = @transform_13, window_bounds = array<i64: 1, 4, 8, 8>}]} {
    %c0_i32 = arith.constant 0 : i32
    %0 = arith.cmpi eq, %arg1, %c0_i32 : i32
    %1 = arith.extui %0 : i1 to i32
    %c0_i32_0 = arith.constant 0 : i32
    %2 = arith.cmpi ne, %1, %c0_i32_0 : i32
    scf.if %2 {
      %c0_61 = arith.constant 0 : index
      %c0_62 = arith.constant 0 : index
      %c0_63 = arith.constant 0 : index
      %122 = vector.load %arg3[%c0_61, %c0_62, %c0_63] : memref<1x8x32xbf16, #tpu.memory_space<vmem>>, vector<1x8x32xbf16>
      %123 = vector.shape_cast %122 : vector<1x8x32xbf16> to vector<8x32xbf16>
      %c0_64 = arith.constant 0 : index
      %c0_65 = arith.constant 0 : index
      %124 = vector.load %arg8[%c0_64, %c0_65] : memref<32x32xbf16, #tpu.memory_space<vmem>>, vector<32x32xbf16>
      %cst_66 = arith.constant dense<0.000000e+00> : vector<8x32xf32>
      %125 = tpu.matmul %123, %124, %cst_66 {dimension_numbers = #tpu.dot_dimension_numbers<[1], [0], [0], [1], [0, 0, 1, 1], [], []>} : vector<8x32xbf16>, vector<32x32xbf16>, vector<8x32xf32> -> vector<8x32xf32>
      %c0_67 = arith.constant 0 : index
      %c0_68 = arith.constant 0 : index
      %126 = vector.load %arg9[%c0_67, %c0_68] : memref<1x32xf32, #tpu.memory_space<vmem>>, vector<1x32xf32>
      %127 = vector.broadcast %126 : vector<1x32xf32> to vector<8x32xf32>
      %128 = arith.addf %125, %127 : vector<8x32xf32>
      %c0_69 = arith.constant 0 : index
      %c0_70 = arith.constant 0 : index
      %c0_71 = arith.constant 0 : index
      %129 = vector.load %arg4[%c0_69, %c0_70, %c0_71] : memref<1x8x32xbf16, #tpu.memory_space<vmem>>, vector<1x8x32xbf16>
      %130 = vector.shape_cast %129 : vector<1x8x32xbf16> to vector<8x32xbf16>
      %c0_72 = arith.constant 0 : index
      %c0_73 = arith.constant 0 : index
      %131 = vector.load %arg10[%c0_72, %c0_73] : memref<32x32xbf16, #tpu.memory_space<vmem>>, vector<32x32xbf16>
      %cst_74 = arith.constant dense<0.000000e+00> : vector<8x32xf32>
      %132 = tpu.matmul %130, %131, %cst_74 {dimension_numbers = #tpu.dot_dimension_numbers<[1], [0], [0], [1], [0, 0, 1, 1], [], []>} : vector<8x32xbf16>, vector<32x32xbf16>, vector<8x32xf32> -> vector<8x32xf32>
      %c0_75 = arith.constant 0 : index
      %c0_76 = arith.constant 0 : index
      %133 = vector.load %arg11[%c0_75, %c0_76] : memref<1x32xf32, #tpu.memory_space<vmem>>, vector<1x32xf32>
      %134 = vector.broadcast %133 : vector<1x32xf32> to vector<8x32xf32>
      %135 = arith.addf %132, %134 : vector<8x32xf32>
      %136 = arith.truncf %128 : vector<8x32xf32> to vector<8x32xbf16>
      %c0_77 = arith.constant 0 : index
      %c0_78 = arith.constant 0 : index
      %137 = vector.load %arg16[%c0_77, %c0_78] : memref<8x32xbf16, #tpu.memory_space<vmem>>, vector<8x32xbf16>
      tpu.vector_store %arg16[%c0_77, %c0_78], %136 {strides = array<i32>} : memref<8x32xbf16, #tpu.memory_space<vmem>>, vector<8x32xbf16>,
      %138 = arith.truncf %135 : vector<8x32xf32> to vector<8x32xbf16>
      %c0_79 = arith.constant 0 : index
      %c0_80 = arith.constant 0 : index
      %139 = vector.load %arg17[%c0_79, %c0_80] : memref<8x32xbf16, #tpu.memory_space<vmem>>, vector<8x32xbf16>
      tpu.vector_store %arg17[%c0_79, %c0_80], %138 {strides = array<i32>} : memref<8x32xbf16, #tpu.memory_space<vmem>>, vector<8x32xbf16>,
    } else {
    }
    %c0 = arith.constant 0 : index
    %c0_1 = arith.constant 0 : index
    %c0_2 = arith.constant 0 : index
    %3 = vector.load %arg2[%c0, %c0_1, %c0_2] : memref<1x8x32xbf16, #tpu.memory_space<vmem>>, vector<1x8x32xbf16>
    %4 = vector.shape_cast %3 : vector<1x8x32xbf16> to vector<8x32xbf16>
    %c0_3 = arith.constant 0 : index
    %c0_4 = arith.constant 0 : index
    %5 = vector.load %arg6[%c0_3, %c0_4] : memref<32x32xbf16, #tpu.memory_space<vmem>>, vector<32x32xbf16>
    %cst = arith.constant dense<0.000000e+00> : vector<8x32xf32>
    %6 = tpu.matmul %4, %5, %cst {dimension_numbers = #tpu.dot_dimension_numbers<[1], [0], [0], [1], [0, 0, 1, 1], [], []>} : vector<8x32xbf16>, vector<32x32xbf16>, vector<8x32xf32> -> vector<8x32xf32>
    %c0_5 = arith.constant 0 : index
    %c0_6 = arith.constant 0 : index
    %7 = vector.load %arg7[%c0_5, %c0_6] : memref<1x32xf32, #tpu.memory_space<vmem>>, vector<1x32xf32>
    %8 = vector.broadcast %7 : vector<1x32xf32> to vector<8x32xf32>
    %9 = arith.addf %6, %8 : vector<8x32xf32>
    %c0_7 = arith.constant 0 : index
    %c0_8 = arith.constant 0 : index
    %c0_9 = arith.constant 0 : index
    %10 = vector.load %arg5[%c0_7, %c0_8, %c0_9] : memref<1x8x8xi8, #tpu.memory_space<vmem>>, vector<1x8x8xi8>
    %11 = vector.shape_cast %10 : vector<1x8x8xi8> to vector<8x8xi8>
    %12 = arith.extsi %11 : vector<8x8xi8> to vector<8x8xi32>
    %c0_i32_10 = arith.constant 0 : i32
    %13 = vector.broadcast %c0_i32_10 : i32 to vector<8x8xi32>
    %14 = arith.cmpi eq, %12, %13 : vector<8x8xi32>
    %cst_11 = arith.constant -1.000000e+09 : f32
    %cst_12 = arith.constant 0.000000e+00 : f32
    %15 = vector.broadcast %cst_11 : f32 to vector<8x8xf32>
    %16 = vector.broadcast %cst_12 : f32 to vector<8x8xf32>
    %17 = arith.select %14, %15, %16 : vector<8x8xi1>, vector<8x8xf32>
    %c0_13 = arith.constant 0 : index
    %c0_14 = arith.constant 0 : index
    %18 = vector.load %arg16[%c0_13, %c0_14] : memref<8x32xbf16, #tpu.memory_space<vmem>>, vector<8x32xbf16>
    %c0_15 = arith.constant 0 : index
    %c0_16 = arith.constant 0 : index
    %19 = vector.load %arg17[%c0_15, %c0_16] : memref<8x32xbf16, #tpu.memory_space<vmem>>, vector<8x32xbf16>
    %20 = vector.extract_strided_slice %9 {offsets = [0, 0], sizes = [8, 8], strides = [1, 1]} : vector<8x32xf32> to vector<8x8xf32>
    %21 = arith.truncf %20 : vector<8x8xf32> to vector<8x8xbf16>
    %22 = vector.extract_strided_slice %18 {offsets = [0, 0], sizes = [8, 8], strides = [1, 1]} : vector<8x32xbf16> to vector<8x8xbf16>
    %23 = vector.extract_strided_slice %19 {offsets = [0, 0], sizes = [8, 8], strides = [1, 1]} : vector<8x32xbf16> to vector<8x8xbf16>
    %cst_17 = arith.constant dense<0.000000e+00> : vector<8x8xf32>
    %24 = tpu.matmul %21, %22, %cst_17 {dimension_numbers = #tpu.dot_dimension_numbers<[1], [1], [0], [0], [0, 0, 1, 0], [], []>} : vector<8x8xbf16>, vector<8x8xbf16>, vector<8x8xf32> -> vector<8x8xf32>
    %25 = arith.addf %24, %17 : vector<8x8xf32>
    %cst_18 = arith.constant dense<0xFF800000> : vector<8xf32>
    %26 = vector.multi_reduction <maximumf>, %25, %cst_18 [1] : vector<8x8xf32> to vector<8xf32>
    %27 = vector.shape_cast %26 : vector<8xf32> to vector<8x1xf32>
    %28 = vector.broadcast %27 : vector<8x1xf32> to vector<8x8xf32>
    %29 = arith.subf %25, %28 : vector<8x8xf32>
    %30 = math.exp %29 : vector<8x8xf32>
    %cst_19 = arith.constant dense<0.000000e+00> : vector<8xf32>
    %31 = vector.multi_reduction <add>, %30, %cst_19 [1] : vector<8x8xf32> to vector<8xf32>
    %32 = vector.shape_cast %31 : vector<8xf32> to vector<8x1xf32>
    %33 = tpu.reciprocal %32 {approx = true} : vector<8x1xf32> -> vector<8x1xf32>
    %34 = vector.broadcast %33 : vector<8x1xf32> to vector<8x8xf32>
    %35 = arith.mulf %30, %34 : vector<8x8xf32>
    %36 = arith.truncf %35 : vector<8x8xf32> to vector<8x8xbf16>
    %c0_20 = arith.constant 0 : index
    %c0_21 = arith.constant 0 : index
    %c0_22 = arith.constant 0 : index
    %c0_23 = arith.constant 0 : index
    %37 = vector.load %arg15[%c0_20, %c0_21, %c0_22, %c0_23] : memref<1x4x8x8xbf16, #tpu.memory_space<vmem>>, vector<1x1x8x8xbf16>
    %38 = vector.shape_cast %37 : vector<1x1x8x8xbf16> to vector<8x8xbf16>
    %39 = vector.shape_cast %36 : vector<8x8xbf16> to vector<1x1x8x8xbf16>
    tpu.vector_store %arg15[%c0_20, %c0_21, %c0_22, %c0_23], %39 {strides = array<i32>} : memref<1x4x8x8xbf16, #tpu.memory_space<vmem>>, vector<1x1x8x8xbf16>,
    %40 = arith.truncf %35 : vector<8x8xf32> to vector<8x8xbf16>
    %cst_24 = arith.constant dense<0.000000e+00> : vector<8x8xf32>
    %41 = tpu.matmul %40, %23, %cst_24 {dimension_numbers = #tpu.dot_dimension_numbers<[1], [0], [0], [1], [0, 0, 1, 1], [], []>} : vector<8x8xbf16>, vector<8x8xbf16>, vector<8x8xf32> -> vector<8x8xf32>
    %c0_25 = arith.constant 0 : index
    %c0_26 = arith.constant 0 : index
    %42 = vector.load %arg18[%c0_25, %c0_26] : memref<8x32xf32, #tpu.memory_space<vmem>>, vector<8x8xf32>
    tpu.vector_store %arg18[%c0_25, %c0_26], %41 {strides = array<i32>} : memref<8x32xf32, #tpu.memory_space<vmem>>, vector<8x8xf32>,
    %43 = vector.extract_strided_slice %9 {offsets = [0, 8], sizes = [8, 8], strides = [1, 1]} : vector<8x32xf32> to vector<8x8xf32>
    %44 = arith.truncf %43 : vector<8x8xf32> to vector<8x8xbf16>
    %45 = vector.extract_strided_slice %18 {offsets = [0, 8], sizes = [8, 8], strides = [1, 1]} : vector<8x32xbf16> to vector<8x8xbf16>
    %46 = vector.extract_strided_slice %19 {offsets = [0, 8], sizes = [8, 8], strides = [1, 1]} : vector<8x32xbf16> to vector<8x8xbf16>
    %cst_27 = arith.constant dense<0.000000e+00> : vector<8x8xf32>
    %47 = tpu.matmul %44, %45, %cst_27 {dimension_numbers = #tpu.dot_dimension_numbers<[1], [1], [0], [0], [0, 0, 1, 0], [], []>} : vector<8x8xbf16>, vector<8x8xbf16>, vector<8x8xf32> -> vector<8x8xf32>
    %48 = arith.addf %47, %17 : vector<8x8xf32>
    %cst_28 = arith.constant dense<0xFF800000> : vector<8xf32>
    %49 = vector.multi_reduction <maximumf>, %48, %cst_28 [1] : vector<8x8xf32> to vector<8xf32>
    %50 = vector.shape_cast %49 : vector<8xf32> to vector<8x1xf32>
    %51 = vector.broadcast %50 : vector<8x1xf32> to vector<8x8xf32>
    %52 = arith.subf %48, %51 : vector<8x8xf32>
    %53 = math.exp %52 : vector<8x8xf32>
    %cst_29 = arith.constant dense<0.000000e+00> : vector<8xf32>
    %54 = vector.multi_reduction <add>, %53, %cst_29 [1] : vector<8x8xf32> to vector<8xf32>
    %55 = vector.shape_cast %54 : vector<8xf32> to vector<8x1xf32>
    %56 = tpu.reciprocal %55 {approx = true} : vector<8x1xf32> -> vector<8x1xf32>
    %57 = vector.broadcast %56 : vector<8x1xf32> to vector<8x8xf32>
    %58 = arith.mulf %53, %57 : vector<8x8xf32>
    %59 = arith.truncf %58 : vector<8x8xf32> to vector<8x8xbf16>
    %c0_30 = arith.constant 0 : index
    %c1 = arith.constant 1 : index
    %c0_31 = arith.constant 0 : index
    %c0_32 = arith.constant 0 : index
    %60 = vector.load %arg15[%c0_30, %c1, %c0_31, %c0_32] : memref<1x4x8x8xbf16, #tpu.memory_space<vmem>>, vector<1x1x8x8xbf16>
    %61 = vector.shape_cast %60 : vector<1x1x8x8xbf16> to vector<8x8xbf16>
    %62 = vector.shape_cast %59 : vector<8x8xbf16> to vector<1x1x8x8xbf16>
    tpu.vector_store %arg15[%c0_30, %c1, %c0_31, %c0_32], %62 {strides = array<i32>} : memref<1x4x8x8xbf16, #tpu.memory_space<vmem>>, vector<1x1x8x8xbf16>,
    %63 = arith.truncf %58 : vector<8x8xf32> to vector<8x8xbf16>
    %cst_33 = arith.constant dense<0.000000e+00> : vector<8x8xf32>
    %64 = tpu.matmul %63, %46, %cst_33 {dimension_numbers = #tpu.dot_dimension_numbers<[1], [0], [0], [1], [0, 0, 1, 1], [], []>} : vector<8x8xbf16>, vector<8x8xbf16>, vector<8x8xf32> -> vector<8x8xf32>
    %c0_34 = arith.constant 0 : index
    %c8 = arith.constant 8 : index
    %65 = vector.load %arg18[%c0_34, %c8] : memref<8x32xf32, #tpu.memory_space<vmem>>, vector<8x8xf32>
    tpu.vector_store %arg18[%c0_34, %c8], %64 {strides = array<i32>} : memref<8x32xf32, #tpu.memory_space<vmem>>, vector<8x8xf32>,
    %66 = vector.extract_strided_slice %9 {offsets = [0, 16], sizes = [8, 8], strides = [1, 1]} : vector<8x32xf32> to vector<8x8xf32>
    %67 = arith.truncf %66 : vector<8x8xf32> to vector<8x8xbf16>
    %68 = vector.extract_strided_slice %18 {offsets = [0, 16], sizes = [8, 8], strides = [1, 1]} : vector<8x32xbf16> to vector<8x8xbf16>
    %69 = vector.extract_strided_slice %19 {offsets = [0, 16], sizes = [8, 8], strides = [1, 1]} : vector<8x32xbf16> to vector<8x8xbf16>
    %cst_35 = arith.constant dense<0.000000e+00> : vector<8x8xf32>
    %70 = tpu.matmul %67, %68, %cst_35 {dimension_numbers = #tpu.dot_dimension_numbers<[1], [1], [0], [0], [0, 0, 1, 0], [], []>} : vector<8x8xbf16>, vector<8x8xbf16>, vector<8x8xf32> -> vector<8x8xf32>
    %71 = arith.addf %70, %17 : vector<8x8xf32>
    %cst_36 = arith.constant dense<0xFF800000> : vector<8xf32>
    %72 = vector.multi_reduction <maximumf>, %71, %cst_36 [1] : vector<8x8xf32> to vector<8xf32>
    %73 = vector.shape_cast %72 : vector<8xf32> to vector<8x1xf32>
    %74 = vector.broadcast %73 : vector<8x1xf32> to vector<8x8xf32>
    %75 = arith.subf %71, %74 : vector<8x8xf32>
    %76 = math.exp %75 : vector<8x8xf32>
    %cst_37 = arith.constant dense<0.000000e+00> : vector<8xf32>
    %77 = vector.multi_reduction <add>, %76, %cst_37 [1] : vector<8x8xf32> to vector<8xf32>
    %78 = vector.shape_cast %77 : vector<8xf32> to vector<8x1xf32>
    %79 = tpu.reciprocal %78 {approx = true} : vector<8x1xf32> -> vector<8x1xf32>
    %80 = vector.broadcast %79 : vector<8x1xf32> to vector<8x8xf32>
    %81 = arith.mulf %76, %80 : vector<8x8xf32>
    %82 = arith.truncf %81 : vector<8x8xf32> to vector<8x8xbf16>
    %c0_38 = arith.constant 0 : index
    %c2 = arith.constant 2 : index
    %c0_39 = arith.constant 0 : index
    %c0_40 = arith.constant 0 : index
    %83 = vector.load %arg15[%c0_38, %c2, %c0_39, %c0_40] : memref<1x4x8x8xbf16, #tpu.memory_space<vmem>>, vector<1x1x8x8xbf16>
    %84 = vector.shape_cast %83 : vector<1x1x8x8xbf16> to vector<8x8xbf16>
    %85 = vector.shape_cast %82 : vector<8x8xbf16> to vector<1x1x8x8xbf16>
    tpu.vector_store %arg15[%c0_38, %c2, %c0_39, %c0_40], %85 {strides = array<i32>} : memref<1x4x8x8xbf16, #tpu.memory_space<vmem>>, vector<1x1x8x8xbf16>,
    %86 = arith.truncf %81 : vector<8x8xf32> to vector<8x8xbf16>
    %cst_41 = arith.constant dense<0.000000e+00> : vector<8x8xf32>
    %87 = tpu.matmul %86, %69, %cst_41 {dimension_numbers = #tpu.dot_dimension_numbers<[1], [0], [0], [1], [0, 0, 1, 1], [], []>} : vector<8x8xbf16>, vector<8x8xbf16>, vector<8x8xf32> -> vector<8x8xf32>
    %c0_42 = arith.constant 0 : index
    %c16 = arith.constant 16 : index
    %88 = vector.load %arg18[%c0_42, %c16] : memref<8x32xf32, #tpu.memory_space<vmem>>, vector<8x8xf32>
    tpu.vector_store %arg18[%c0_42, %c16], %87 {strides = array<i32>} : memref<8x32xf32, #tpu.memory_space<vmem>>, vector<8x8xf32>,
    %89 = vector.extract_strided_slice %9 {offsets = [0, 24], sizes = [8, 8], strides = [1, 1]} : vector<8x32xf32> to vector<8x8xf32>
    %90 = arith.truncf %89 : vector<8x8xf32> to vector<8x8xbf16>
    %91 = vector.extract_strided_slice %18 {offsets = [0, 24], sizes = [8, 8], strides = [1, 1]} : vector<8x32xbf16> to vector<8x8xbf16>
    %92 = vector.extract_strided_slice %19 {offsets = [0, 24], sizes = [8, 8], strides = [1, 1]} : vector<8x32xbf16> to vector<8x8xbf16>
    %cst_43 = arith.constant dense<0.000000e+00> : vector<8x8xf32>
    %93 = tpu.matmul %90, %91, %cst_43 {dimension_numbers = #tpu.dot_dimension_numbers<[1], [1], [0], [0], [0, 0, 1, 0], [], []>} : vector<8x8xbf16>, vector<8x8xbf16>, vector<8x8xf32> -> vector<8x8xf32>
    %94 = arith.addf %93, %17 : vector<8x8xf32>
    %cst_44 = arith.constant dense<0xFF800000> : vector<8xf32>
    %95 = vector.multi_reduction <maximumf>, %94, %cst_44 [1] : vector<8x8xf32> to vector<8xf32>
    %96 = vector.shape_cast %95 : vector<8xf32> to vector<8x1xf32>
    %97 = vector.broadcast %96 : vector<8x1xf32> to vector<8x8xf32>
    %98 = arith.subf %94, %97 : vector<8x8xf32>
    %99 = math.exp %98 : vector<8x8xf32>
    %cst_45 = arith.constant dense<0.000000e+00> : vector<8xf32>
    %100 = vector.multi_reduction <add>, %99, %cst_45 [1] : vector<8x8xf32> to vector<8xf32>
    %101 = vector.shape_cast %100 : vector<8xf32> to vector<8x1xf32>
    %102 = tpu.reciprocal %101 {approx = true} : vector<8x1xf32> -> vector<8x1xf32>
    %103 = vector.broadcast %102 : vector<8x1xf32> to vector<8x8xf32>
    %104 = arith.mulf %99, %103 : vector<8x8xf32>
    %105 = arith.truncf %104 : vector<8x8xf32> to vector<8x8xbf16>
    %c0_46 = arith.constant 0 : index
    %c3 = arith.constant 3 : index
    %c0_47 = arith.constant 0 : index
    %c0_48 = arith.constant 0 : index
    %106 = vector.load %arg15[%c0_46, %c3, %c0_47, %c0_48] : memref<1x4x8x8xbf16, #tpu.memory_space<vmem>>, vector<1x1x8x8xbf16>
    %107 = vector.shape_cast %106 : vector<1x1x8x8xbf16> to vector<8x8xbf16>
    %108 = vector.shape_cast %105 : vector<8x8xbf16> to vector<1x1x8x8xbf16>
    tpu.vector_store %arg15[%c0_46, %c3, %c0_47, %c0_48], %108 {strides = array<i32>} : memref<1x4x8x8xbf16, #tpu.memory_space<vmem>>, vector<1x1x8x8xbf16>,
    %109 = arith.truncf %104 : vector<8x8xf32> to vector<8x8xbf16>
    %cst_49 = arith.constant dense<0.000000e+00> : vector<8x8xf32>
    %110 = tpu.matmul %109, %92, %cst_49 {dimension_numbers = #tpu.dot_dimension_numbers<[1], [0], [0], [1], [0, 0, 1, 1], [], []>} : vector<8x8xbf16>, vector<8x8xbf16>, vector<8x8xf32> -> vector<8x8xf32>
    %c0_50 = arith.constant 0 : index
    %c24 = arith.constant 24 : index
    %111 = vector.load %arg18[%c0_50, %c24] : memref<8x32xf32, #tpu.memory_space<vmem>>, vector<8x8xf32>
    tpu.vector_store %arg18[%c0_50, %c24], %110 {strides = array<i32>} : memref<8x32xf32, #tpu.memory_space<vmem>>, vector<8x8xf32>,
    %c0_51 = arith.constant 0 : index
    %c0_52 = arith.constant 0 : index
    %112 = vector.load %arg18[%c0_51, %c0_52] : memref<8x32xf32, #tpu.memory_space<vmem>>, vector<8x32xf32>
    %113 = arith.truncf %112 : vector<8x32xf32> to vector<8x32xbf16>
    %c0_53 = arith.constant 0 : index
    %c0_54 = arith.constant 0 : index
    %114 = vector.load %arg12[%c0_53, %c0_54] : memref<32x32xbf16, #tpu.memory_space<vmem>>, vector<32x32xbf16>
    %cst_55 = arith.constant dense<0.000000e+00> : vector<8x32xf32>
    %115 = tpu.matmul %113, %114, %cst_55 {dimension_numbers = #tpu.dot_dimension_numbers<[1], [0], [0], [1], [0, 0, 1, 1], [], []>} : vector<8x32xbf16>, vector<32x32xbf16>, vector<8x32xf32> -> vector<8x32xf32>
    %c0_56 = arith.constant 0 : index
    %c0_57 = arith.constant 0 : index
    %116 = vector.load %arg13[%c0_56, %c0_57] : memref<1x32xf32, #tpu.memory_space<vmem>>, vector<1x32xf32>
    %117 = vector.broadcast %116 : vector<1x32xf32> to vector<8x32xf32>
    %118 = arith.addf %115, %117 : vector<8x32xf32>
    %c0_58 = arith.constant 0 : index
    %c0_59 = arith.constant 0 : index
    %c0_60 = arith.constant 0 : index
    %119 = vector.load %arg14[%c0_58, %c0_59, %c0_60] : memref<1x8x32xf32, #tpu.memory_space<vmem>>, vector<1x8x32xf32>
    %120 = vector.shape_cast %119 : vector<1x8x32xf32> to vector<8x32xf32>
    %121 = vector.shape_cast %118 : vector<8x32xf32> to vector<1x8x32xf32>
    tpu.vector_store %arg14[%c0_58, %c0_59, %c0_60], %121 {strides = array<i32>} : memref<1x8x32xf32, #tpu.memory_space<vmem>>, vector<1x8x32xf32>,
    return
  }
  func.func @transform_0(%arg0: i32, %arg1: i32) -> (i32, i32, i32) {
    %c0_i32 = arith.constant 0 : i32
    %c0_i32_0 = arith.constant 0 : i32
    return %arg0, %arg1, %c0_i32 : i32, i32, i32
  }
  func.func @transform_1(%arg0: i32, %arg1: i32) -> (i32, i32, i32) {
    %c0_i32 = arith.constant 0 : i32
    %c0_i32_0 = arith.constant 0 : i32
    %c0_i32_1 = arith.constant 0 : i32
    return %arg0, %c0_i32, %c0_i32_0 : i32, i32, i32
  }
  func.func @transform_2(%arg0: i32, %arg1: i32) -> (i32, i32, i32) {
    %c0_i32 = arith.constant 0 : i32
    %c0_i32_0 = arith.constant 0 : i32
    %c0_i32_1 = arith.constant 0 : i32
    return %arg0, %c0_i32, %c0_i32_0 : i32, i32, i32
  }
  func.func @transform_3(%arg0: i32, %arg1: i32) -> (i32, i32, i32) {
    %c0_i32 = arith.constant 0 : i32
    %c0_i32_0 = arith.constant 0 : i32
    return %arg0, %arg1, %c0_i32 : i32, i32, i32
  }
  func.func @transform_4(%arg0: i32, %arg1: i32) -> (i32, i32) {
    %c0_i32 = arith.constant 0 : i32
    %c0_i32_0 = arith.constant 0 : i32
    %c0_i32_1 = arith.constant 0 : i32
    return %c0_i32, %c0_i32_0 : i32, i32
  }
  func.func @transform_5(%arg0: i32, %arg1: i32) -> (i32, i32) {
    %c0_i32 = arith.constant 0 : i32
    %c0_i32_0 = arith.constant 0 : i32
    %c0_i32_1 = arith.constant 0 : i32
    return %c0_i32, %c0_i32_0 : i32, i32
  }
  func.func @transform_6(%arg0: i32, %arg1: i32) -> (i32, i32) {
    %c0_i32 = arith.constant 0 : i32
    %c0_i32_0 = arith.constant 0 : i32
    %c0_i32_1 = arith.constant 0 : i32
    return %c0_i32, %c0_i32_0 : i32, i32
  }
  func.func @transform_7(%arg0: i32, %arg1: i32) -> (i32, i32) {
    %c0_i32 = arith.constant 0 : i32
    %c0_i32_0 = arith.constant 0 : i32
    %c0_i32_1 = arith.constant 0 : i32
    return %c0_i32, %c0_i32_0 : i32, i32
  }
  func.func @transform_8(%arg0: i32, %arg1: i32) -> (i32, i32) {
    %c0_i32 = arith.constant 0 : i32
    %c0_i32_0 = arith.constant 0 : i32
    %c0_i32_1 = arith.constant 0 : i32
    return %c0_i32, %c0_i32_0 : i32, i32
  }
  func.func @transform_9(%arg0: i32, %arg1: i32) -> (i32, i32) {
    %c0_i32 = arith.constant 0 : i32
    %c0_i32_0 = arith.constant 0 : i32
    %c0_i32_1 = arith.constant 0 : i32
    return %c0_i32, %c0_i32_0 : i32, i32
  }
  func.func @transform_10(%arg0: i32, %arg1: i32) -> (i32, i32) {
    %c0_i32 = arith.constant 0 : i32
    %c0_i32_0 = arith.constant 0 : i32
    %c0_i32_1 = arith.constant 0 : i32
    return %c0_i32, %c0_i32_0 : i32, i32
  }
  func.func @transform_11(%arg0: i32, %arg1: i32) -> (i32, i32) {
    %c0_i32 = arith.constant 0 : i32
    %c0_i32_0 = arith.constant 0 : i32
    %c0_i32_1 = arith.constant 0 : i32
    return %c0_i32, %c0_i32_0 : i32, i32
  }
  func.func @transform_12(%arg0: i32, %arg1: i32) -> (i32, i32, i32) {
    %c0_i32 = arith.constant 0 : i32
    %c0_i32_0 = arith.constant 0 : i32
    return %arg0, %arg1, %c0_i32 : i32, i32, i32
  }
  func.func @transform_13(%arg0: i32, %arg1: i32) -> (i32, i32, i32, i32) {
    %c0_i32 = arith.constant 0 : i32
    %c0_i32_0 = arith.constant 0 : i32
    %c0_i32_1 = arith.constant 0 : i32
    return %arg0, %c0_i32, %arg1, %c0_i32_0 : i32, i32, i32, i32
  }
}

</mosaic_0001>

<llo_original>
// kernel: tpu_custom_call.1
$region0: #{tpu_custom_call.1}
  #allocation0 [shape = 'u32[]', space=smem, size = 0x4, offset = 0x4, fixed_abs, tag = 'smem constant byte address 0x4 - core index']
  #allocation1 [shape = 'u32[72,128]{1,0:T(1,128)}', space=vmem, size = 0x9000, scoped, tag = 'internal scratch']
  #allocation2 [shape = 'bf16[8,32]{1,0:T(8,128)(2,1)}', space=vmem, size = 0x800, scoped, tag = 'scratch operand']
  #allocation3 [shape = 'bf16[8,32]{1,0:T(8,128)(2,1)}', space=vmem, size = 0x800, scoped, tag = 'scratch operand']
  #allocation4 [shape = 'f32[8,32]{1,0:T(8,128)}', space=vmem, size = 0x1000, scoped, tag = 'scratch operand']
  %s0 = inlined_call_operand.hbm [shape: bf16[2,8,32], index: 0, kind: input, shape index: {}]
  %s1 = inlined_call_operand.hbm [shape: bf16[2,8,32], index: 1, kind: input, shape index: {}]
  %s2 = inlined_call_operand.hbm [shape: bf16[2,8,32], index: 2, kind: input, shape index: {}]
  %s3 = inlined_call_operand.hbm [shape: s8[2,8,8], index: 3, kind: input, shape index: {}]
  %s4 = inlined_call_operand.hbm [shape: bf16[32,32], index: 4, kind: input, shape index: {}]
  %s5 = inlined_call_operand.vmem [shape: f32[1,32], index: 5, kind: input, shape index: {}]
  %s6 = inlined_call_operand.hbm [shape: bf16[32,32], index: 6, kind: input, shape index: {}]
  %s7 = inlined_call_operand.vmem [shape: f32[1,32], index: 7, kind: input, shape index: {}]
  %s8 = inlined_call_operand.hbm [shape: bf16[32,32], index: 8, kind: input, shape index: {}]
  %s9 = inlined_call_operand.vmem [shape: f32[1,32], index: 9, kind: input, shape index: {}]
  %s10 = inlined_call_operand.hbm [shape: bf16[32,32], index: 10, kind: input, shape index: {}]
  %s11 = inlined_call_operand.vmem [shape: f32[1,32], index: 11, kind: input, shape index: {}]
  %s12 = inlined_call_operand.hbm [shape: f32[2,8,32], index: 12, kind: output, shape index: {0}]
  %s13 = inlined_call_operand.hbm [shape: bf16[2,4,8,8], index: 13, kind: output, shape index: {1}]
  %14 = xla_tuple %s12, %s13
  %s15 = sld [smem:[#allocation0]]
  $region125: #{tpu_custom_call.1} parent=0
    _
  %s17 = ssub.s32 1, %s15
  %s18 = scalar_select 0, %s17, %s15
  $region1: #{tpu_custom_call.1} parent=0
    #allocation5 [shape = 'u8[4096]{0}', space=vmem, size = 0x1000, scoped, tag = 'input window, operand 0']
    #allocation6 [shape = 's32[2]{0}', space=sflag, size = 0x8, scoped, tag = 'scoped memory for tpu_custom_call.1']
    #allocation7 [shape = 's32[2]{0}', space=sflag, size = 0x8, scoped, tag = 'scoped memory for tpu_custom_call.1']
    #allocation8 [shape = 'u8[4096]{0}', space=vmem, size = 0x1000, scoped, tag = 'input window, operand 1']
    #allocation9 [shape = 's32[2]{0}', space=sflag, size = 0x8, scoped, tag = 'scoped memory for tpu_custom_call.1']
    #allocation10 [shape = 'u8[4096]{0}', space=vmem, size = 0x1000, scoped, tag = 'input window, operand 2']
    #allocation11 [shape = 'u8[2048]{0}', space=vmem, size = 0x800, scoped, tag = 'input window, operand 3']
    #allocation12 [shape = 's32[2]{0}', space=sflag, size = 0x8, scoped, tag = 'scoped memory for tpu_custom_call.1']
    #allocation13 [shape = 'u8[8192]{0}', space=vmem, size = 0x2000, scoped, tag = 'input window, operand 4, single buffered']
    #allocation14 [shape = 'u8[8192]{0}', space=vmem, size = 0x2000, scoped, tag = 'input window, operand 6, single buffered']
    #allocation15 [shape = 's32[1]{0}', space=sflag, size = 0x4, scoped, tag = 'scoped memory for tpu_custom_call.1']
    #allocation16 [shape = 'u8[8192]{0}', space=vmem, size = 0x2000, scoped, tag = 'input window, operand 8, single buffered']
    #allocation17 [shape = 'u8[8192]{0}', space=vmem, size = 0x2000, scoped, tag = 'input window, operand 10, single buffered']
    #allocation18 [shape = 's32[1]{0}', space=sflag, size = 0x4, scoped, tag = 'scoped memory for tpu_custom_call.1']
    #allocation19 [shape = 'u8[8192]{0}', space=vmem, size = 0x2000, scoped, tag = 'output window, operand 0']
    #allocation20 [shape = 'u8[16384]{0}', space=vmem, size = 0x4000, scoped, tag = 'output window, operand 1']
    #allocation21 [shape = 's32[2]{0}', space=sflag, size = 0x8, scoped, tag = 'scoped memory for tpu_custom_call.1']
    %19 = vsyncpa [#allocation6], 0
    %s20 = scalar_lea.sflag [#allocation6], 1
    %21 = vsyncpa %s20, 0
    %22 = vsyncpa [#allocation9], 0
    %s23 = scalar_lea.sflag [#allocation9], 1
    %24 = vsyncpa %s23, 0
    %25 = vsyncpa [#allocation12], 0
    %s26 = scalar_lea.sflag [#allocation12], 1
    %27 = vsyncpa %s26, 0
    %28 = vsyncpa [#allocation15], 0
    %29 = vsyncpa [#allocation18], 0
    %30 = vsyncpa [#allocation7], 0
    %s31 = scalar_lea.sflag [#allocation7], 1
    %32 = vsyncpa %s31, 0
    %33 = vsyncpa [#allocation21], 0
    %s34 = scalar_lea.sflag [#allocation21], 1
    %35 = vsyncpa %s34, 0
    loop: start=0, step=1, limit=4
    $region2: #{tpu_custom_call.1} parent=1 // loop_pre_header
      _
    $region3: #{tpu_custom_call.1} parent=1 // loop_header
      %s37 = sphi 0, %s41
      %p38 = scmp.ge.s32.totalorder %s37, 4
      %s44 = sphi 0, %s56
      %s45 = sphi 0, %s52
      %s46 = sphi 0, %s44
      %s47 = sphi 0, %s45
      %s48 = sphi 0, %s46
      %s49 = sphi 0, %s47
      %s61 = sphi 0, %s63
      %s64 = sphi 0, %s61
      %s65 = sphi 0, %s64
      %s81 = sphi 0, %s65
      %s87 = sphi 0, %s89
      %s90 = sphi 0, %s87
      %s91 = sphi 0, %s90
      %s107 = sphi 0, %s91
      %s113 = sphi 0, %s115
      %s116 = sphi 0, %s113
      %s117 = sphi 0, %s116
      %s133 = sphi 0, %s117
      %s141 = sphi 0, %s143
      %s144 = sphi 0, %s141
      %s145 = sphi 0, %s144
      %s161 = sphi 0, %s145
      %s165 = sphi 0, %s165
      %s167 = sphi 0, %s165
      %s168 = sphi 0, %s167
      %s182 = sphi 0, %s168
      %s186 = sphi 0, %s186
      %s188 = sphi 0, %s186
      %s189 = sphi 0, %s188
      %s203 = sphi 0, %s189
      %s207 = sphi 0, %s207
      %s209 = sphi 0, %s207
      %s210 = sphi 0, %s209
      %s224 = sphi 0, %s210
      %s228 = sphi 0, %s228
      %s230 = sphi 0, %s228
      %s231 = sphi 0, %s230
      %s245 = sphi 0, %s231
      %s249 = sphi 0, %s249
      %s251 = sphi 0, %s249
      %s252 = sphi 0, %s251
      %s266 = sphi 0, %s252
      %s270 = sphi 0, %s270
      %s272 = sphi 0, %s270
      %s273 = sphi 0, %s272
      %s287 = sphi 0, %s273
      %s291 = sphi 0, %s291
      %s293 = sphi 0, %s291
      %s294 = sphi 0, %s293
      %s308 = sphi 0, %s294
      %s312 = sphi 0, %s312
      %s314 = sphi 0, %s312
      %s315 = sphi 0, %s314
      %s329 = sphi 0, %s315
      %s337 = sphi 0, %s339
      %s340 = sphi 0, %s337
      %s341 = sphi 0, %s340
      %s357 = sphi 0, %s341
      %s365 = sphi 0, %s367
      %s368 = sphi 0, %s365
      %s369 = sphi 0, %s368
      %s385 = sphi 0, %s369
    $region4: #{tpu_custom_call.1} parent=1 // loop_header_branch
      %40 = sbr.rel (%p38) target = $region8
    $region5: #{tpu_custom_call.1} parent=1 // loop_body
      %s42 = ssub.s32 %s37, 1
      %s43 = ssub.s32 %s37, 2
      %s50 = sadd.s32 1, %s45
      %p51 = scmp.ge.s32.totalorder %s50, 1
      %s52 = scalar_select %p51, 0, %s50
      %s53 = sadd.s32 1, %s44
      %s54 = scalar_select %p51, %s53, %s44
      %p55 = scmp.ge.s32.totalorder %s54, 2
      %s56 = scalar_select %p55, 0, %s54
      %s57 = ssub.s32 %s44, %s56
      %s58 = ssub.s32 %s45, %s52
      %s59 = sor.u32 %s57, %s58
      %p60 = scmp.eq.s32.totalorder %s59, 0
      %s62 = sadd.s32 %s61, 1
      %s63 = scalar_select %p60, %s61, %s62
      %p66 = pneg %p60
      %p67 = scmp.eq.s32.totalorder %s37, 1
      %p68 = por %p66, %p67
      %p69 = scmp.ne.s32.totalorder %s61, %s64
      %p70 = scmp.eq.s32.totalorder %s37, 0
      %p71 = por %p69, %p70
      %p72 = scmp.ne.s32.totalorder %s61, %s64
      %p73 = scmp.eq.s32.totalorder %s42, 1
      %p74 = por %p72, %p73
      %p75 = scmp.ne.s32.totalorder %s64, %s65
      %p76 = scmp.eq.s32.totalorder %s42, 0
      %p77 = por %p75, %p76
      %p78 = scmp.ne.s32.totalorder %s64, %s65
      %p79 = scmp.eq.s32.totalorder %s43, 1
      %p80 = por %p78, %p79
      %p82 = scmp.ne.s32.totalorder %s65, %s81
      %p83 = scmp.eq.s32.totalorder %s43, 0
      %p84 = por %p82, %p83
      %s85 = ssub.s32 %s44, %s56
      %p86 = scmp.eq.s32.totalorder %s85, 0
      %s88 = sadd.s32 %s87, 1
      %s89 = scalar_select %p86, %s87, %s88
      %p92 = pneg %p86
      %p93 = scmp.eq.s32.totalorder %s37, 1
      %p94 = por %p92, %p93
      %p95 = scmp.ne.s32.totalorder %s87, %s90
      %p96 = scmp.eq.s32.totalorder %s37, 0
      %p97 = por %p95, %p96
      %p98 = scmp.ne.s32.totalorder %s87, %s90
      %p99 = scmp.eq.s32.totalorder %s42, 1
      %p100 = por %p98, %p99
      %p101 = scmp.ne.s32.totalorder %s90, %s91
      %p102 = scmp.eq.s32.totalorder %s42, 0
      %p103 = por %p101, %p102
      %p104 = scmp.ne.s32.totalorder %s90, %s91
      %p105 = scmp.eq.s32.totalorder %s43, 1
      %p106 = por %p104, %p105
      %p108 = scmp.ne.s32.totalorder %s91, %s107
      %p109 = scmp.eq.s32.totalorder %s43, 0
      %p110 = por %p108, %p109
      %s111 = ssub.s32 %s44, %s56
      %p112 = scmp.eq.s32.totalorder %s111, 0
      %s114 = sadd.s32 %s113, 1
      %s115 = scalar_select %p112, %s113, %s114
      %p118 = pneg %p112
      %p119 = scmp.eq.s32.totalorder %s37, 1
      %p120 = por %p118, %p119
      %p121 = scmp.ne.s32.totalorder %s113, %s116
      %p122 = scmp.eq.s32.totalorder %s37, 0
      %p123 = por %p121, %p122
      %p124 = scmp.ne.s32.totalorder %s113, %s116
      %p125 = scmp.eq.s32.totalorder %s42, 1
      %p126 = por %p124, %p125
      %p127 = scmp.ne.s32.totalorder %s116, %s117
      %p128 = scmp.eq.s32.totalorder %s42, 0
      %p129 = por %p127, %p128
      %p130 = scmp.ne.s32.totalorder %s116, %s117
      %p131 = scmp.eq.s32.totalorder %s43, 1
      %p132 = por %p130, %p131
      %p134 = scmp.ne.s32.totalorder %s117, %s133
      %p135 = scmp.eq.s32.totalorder %s43, 0
      %p136 = por %p134, %p135
      %s137 = ssub.s32 %s44, %s56
      %s138 = ssub.s32 %s45, %s52
      %s139 = sor.u32 %s137, %s138
      %p140 = scmp.eq.s32.totalorder %s139, 0
      %s142 = sadd.s32 %s141, 1
      %s143 = scalar_select %p140, %s141, %s142
      %p146 = pneg %p140
      %p147 = scmp.eq.s32.totalorder %s37, 1
      %p148 = por %p146, %p147
      %p149 = scmp.ne.s32.totalorder %s141, %s144
      %p150 = scmp.eq.s32.totalorder %s37, 0
      %p151 = por %p149, %p150
      %p152 = scmp.ne.s32.totalorder %s141, %s144
      %p153 = scmp.eq.s32.totalorder %s42, 1
      %p154 = por %p152, %p153
      %p155 = scmp.ne.s32.totalorder %s144, %s145
      %p156 = scmp.eq.s32.totalorder %s42, 0
      %p157 = por %p155, %p156
      %p158 = scmp.ne.s32.totalorder %s144, %s145
      %p159 = scmp.eq.s32.totalorder %s43, 1
      %p160 = por %p158, %p159
      %p162 = scmp.ne.s32.totalorder %s145, %s161
      %p163 = scmp.eq.s32.totalorder %s43, 0
      %p164 = por %p162, %p163
      %s166 = sadd.s32 %s165, 1
      %p169 = scmp.eq.s32.totalorder %s37, 1
      %p170 = scmp.ne.s32.totalorder %s165, %s167
      %p171 = scmp.eq.s32.totalorder %s37, 0
      %p172 = por %p170, %p171
      %p173 = scmp.ne.s32.totalorder %s165, %s167
      %p174 = scmp.eq.s32.totalorder %s42, 1
      %p175 = por %p173, %p174
      %p176 = scmp.ne.s32.totalorder %s167, %s168
      %p177 = scmp.eq.s32.totalorder %s42, 0
      %p178 = por %p176, %p177
      %p179 = scmp.ne.s32.totalorder %s167, %s168
      %p180 = scmp.eq.s32.totalorder %s43, 1
      %p181 = por %p179, %p180
      %p183 = scmp.ne.s32.totalorder %s168, %s182
      %p184 = scmp.eq.s32.totalorder %s43, 0
      %p185 = por %p183, %p184
      %s187 = sadd.s32 %s186, 1
      %p190 = scmp.eq.s32.totalorder %s37, 1
      %p191 = scmp.ne.s32.totalorder %s186, %s188
      %p192 = scmp.eq.s32.totalorder %s37, 0
      %p193 = por %p191, %p192
      %p194 = scmp.ne.s32.totalorder %s186, %s188
      %p195 = scmp.eq.s32.totalorder %s42, 1
      %p196 = por %p194, %p195
      %p197 = scmp.ne.s32.totalorder %s188, %s189
      %p198 = scmp.eq.s32.totalorder %s42, 0
      %p199 = por %p197, %p198
      %p200 = scmp.ne.s32.totalorder %s188, %s189
      %p201 = scmp.eq.s32.totalorder %s43, 1
      %p202 = por %p200, %p201
      %p204 = scmp.ne.s32.totalorder %s189, %s203
      %p205 = scmp.eq.s32.totalorder %s43, 0
      %p206 = por %p204, %p205
      %s208 = sadd.s32 %s207, 1
      %p211 = scmp.eq.s32.totalorder %s37, 1
      %p212 = scmp.ne.s32.totalorder %s207, %s209
      %p213 = scmp.eq.s32.totalorder %s37, 0
      %p214 = por %p212, %p213
      %p215 = scmp.ne.s32.totalorder %s207, %s209
      %p216 = scmp.eq.s32.totalorder %s42, 1
      %p217 = por %p215, %p216
      %p218 = scmp.ne.s32.totalorder %s209, %s210
      %p219 = scmp.eq.s32.totalorder %s42, 0
      %p220 = por %p218, %p219
      %p221 = scmp.ne.s32.totalorder %s209, %s210
      %p222 = scmp.eq.s32.totalorder %s43, 1
      %p223 = por %p221, %p222
      %p225 = scmp.ne.s32.totalorder %s210, %s224
      %p226 = scmp.eq.s32.totalorder %s43, 0
      %p227 = por %p225, %p226
      %s229 = sadd.s32 %s228, 1
      %p232 = scmp.eq.s32.totalorder %s37, 1
      %p233 = scmp.ne.s32.totalorder %s228, %s230
      %p234 = scmp.eq.s32.totalorder %s37, 0
      %p235 = por %p233, %p234
      %p236 = scmp.ne.s32.totalorder %s228, %s230
      %p237 = scmp.eq.s32.totalorder %s42, 1
      %p238 = por %p236, %p237
      %p239 = scmp.ne.s32.totalorder %s230, %s231
      %p240 = scmp.eq.s32.totalorder %s42, 0
      %p241 = por %p239, %p240
      %p242 = scmp.ne.s32.totalorder %s230, %s231
      %p243 = scmp.eq.s32.totalorder %s43, 1
      %p244 = por %p242, %p243
      %p246 = scmp.ne.s32.totalorder %s231, %s245
      %p247 = scmp.eq.s32.totalorder %s43, 0
      %p248 = por %p246, %p247
      %s250 = sadd.s32 %s249, 1
      %p253 = scmp.eq.s32.totalorder %s37, 1
      %p254 = scmp.ne.s32.totalorder %s249, %s251
      %p255 = scmp.eq.s32.totalorder %s37, 0
      %p256 = por %p254, %p255
      %p257 = scmp.ne.s32.totalorder %s249, %s251
      %p258 = scmp.eq.s32.totalorder %s42, 1
      %p259 = por %p257, %p258
      %p260 = scmp.ne.s32.totalorder %s251, %s252
      %p261 = scmp.eq.s32.totalorder %s42, 0
      %p262 = por %p260, %p261
      %p263 = scmp.ne.s32.totalorder %s251, %s252
      %p264 = scmp.eq.s32.totalorder %s43, 1
      %p265 = por %p263, %p264
      %p267 = scmp.ne.s32.totalorder %s252, %s266
      %p268 = scmp.eq.s32.totalorder %s43, 0
      %p269 = por %p267, %p268
      %s271 = sadd.s32 %s270, 1
      %p274 = scmp.eq.s32.totalorder %s37, 1
      %p275 = scmp.ne.s32.totalorder %s270, %s272
      %p276 = scmp.eq.s32.totalorder %s37, 0
      %p277 = por %p275, %p276
      %p278 = scmp.ne.s32.totalorder %s270, %s272
      %p279 = scmp.eq.s32.totalorder %s42, 1
      %p280 = por %p278, %p279
      %p281 = scmp.ne.s32.totalorder %s272, %s273
      %p282 = scmp.eq.s32.totalorder %s42, 0
      %p283 = por %p281, %p282
      %p284 = scmp.ne.s32.totalorder %s272, %s273
      %p285 = scmp.eq.s32.totalorder %s43, 1
      %p286 = por %p284, %p285
      %p288 = scmp.ne.s32.totalorder %s273, %s287
      %p289 = scmp.eq.s32.totalorder %s43, 0
      %p290 = por %p288, %p289
      %s292 = sadd.s32 %s291, 1
      %p295 = scmp.eq.s32.totalorder %s37, 1
      %p296 = scmp.ne.s32.totalorder %s291, %s293
      %p297 = scmp.eq.s32.totalorder %s37, 0
      %p298 = por %p296, %p297
      %p299 = scmp.ne.s32.totalorder %s291, %s293
      %p300 = scmp.eq.s32.totalorder %s42, 1
      %p301 = por %p299, %p300
      %p302 = scmp.ne.s32.totalorder %s293, %s294
      %p303 = scmp.eq.s32.totalorder %s42, 0
      %p304 = por %p302, %p303
      %p305 = scmp.ne.s32.totalorder %s293, %s294
      %p306 = scmp.eq.s32.totalorder %s43, 1
      %p307 = por %p305, %p306
      %p309 = scmp.ne.s32.totalorder %s294, %s308
      %p310 = scmp.eq.s32.totalorder %s43, 0
      %p311 = por %p309, %p310
      %s313 = sadd.s32 %s312, 1
      %p316 = scmp.eq.s32.totalorder %s37, 1
      %p317 = scmp.ne.s32.totalorder %s312, %s314
      %p318 = scmp.eq.s32.totalorder %s37, 0
      %p319 = por %p317, %p318
      %p320 = scmp.ne.s32.totalorder %s312, %s314
      %p321 = scmp.eq.s32.totalorder %s42, 1
      %p322 = por %p320, %p321
      %p323 = scmp.ne.s32.totalorder %s314, %s315
      %p324 = scmp.eq.s32.totalorder %s42, 0
      %p325 = por %p323, %p324
      %p326 = scmp.ne.s32.totalorder %s314, %s315
      %p327 = scmp.eq.s32.totalorder %s43, 1
      %p328 = por %p326, %p327
      %p330 = scmp.ne.s32.totalorder %s315, %s329
      %p331 = scmp.eq.s32.totalorder %s43, 0
      %p332 = por %p330, %p331
      %s333 = ssub.s32 %s44, %s56
      %s334 = ssub.s32 %s45, %s52
      %s335 = sor.u32 %s333, %s334
      %p336 = scmp.eq.s32.totalorder %s335, 0
      %s338 = sadd.s32 %s337, 1
      %s339 = scalar_select %p336, %s337, %s338
      %p342 = pneg %p336
      %p343 = scmp.eq.s32.totalorder %s37, 1
      %p344 = por %p342, %p343
      %p345 = scmp.ne.s32.totalorder %s337, %s340
      %p346 = scmp.eq.s32.totalorder %s37, 0
      %p347 = por %p345, %p346
      %p348 = scmp.ne.s32.totalorder %s337, %s340
      %p349 = scmp.eq.s32.totalorder %s42, 1
      %p350 = por %p348, %p349
      %p351 = scmp.ne.s32.totalorder %s340, %s341
      %p352 = scmp.eq.s32.totalorder %s42, 0
      %p353 = por %p351, %p352
      %p354 = scmp.ne.s32.totalorder %s340, %s341
      %p355 = scmp.eq.s32.totalorder %s43, 1
      %p356 = por %p354, %p355
      %p358 = scmp.ne.s32.totalorder %s341, %s357
      %p359 = scmp.eq.s32.totalorder %s43, 0
      %p360 = por %p358, %p359
      %s361 = ssub.s32 %s44, %s56
      %s362 = ssub.s32 %s45, %s52
      %s363 = sor.u32 %s361, %s362
      %p364 = scmp.eq.s32.totalorder %s363, 0
      %s366 = sadd.s32 %s365, 1
      %s367 = scalar_select %p364, %s365, %s366
      %p370 = pneg %p364
      %p371 = scmp.eq.s32.totalorder %s37, 1
      %p372 = por %p370, %p371
      %p373 = scmp.ne.s32.totalorder %s365, %s368
      %p374 = scmp.eq.s32.totalorder %s37, 0
      %p375 = por %p373, %p374
      %p376 = scmp.ne.s32.totalorder %s365, %s368
      %p377 = scmp.eq.s32.totalorder %s42, 1
      %p378 = por %p376, %p377
      %p379 = scmp.ne.s32.totalorder %s368, %s369
      %p380 = scmp.eq.s32.totalorder %s42, 0
      %p381 = por %p379, %p380
      %p382 = scmp.ne.s32.totalorder %s368, %s369
      %p383 = scmp.eq.s32.totalorder %s43, 1
      %p384 = por %p382, %p383
      %p386 = scmp.ne.s32.totalorder %s369, %s385
      %p387 = scmp.eq.s32.totalorder %s43, 0
      %p388 = por %p386, %p387
      %p389 = scmp.le.s32.totalorder 1, %s37
      %p390 = scmp.lt.s32.totalorder %s37, 3
      %p391 = pnand %p389, %p390
      %p392 = pneg %p391
      // Predicated region
      $region9: #{tpu_custom_call.1} parent=5 // pred_check
        _
      $region10: #{tpu_custom_call.1} parent=5 // pred_check_branch
        %394 = sbr.rel (%p391) target = $region12
      $region11: #{tpu_custom_call.1} parent=5 // pred_region
        %s395 = ssub.s32 %s37, 1
        // Predicated region
        $region13: #{tpu_custom_call.1} parent=11 // pred_check
          %p396 = pneg %p178
        $region14: #{tpu_custom_call.1} parent=11 // pred_check_branch
          %398 = sbr.rel (%p396) target = $region16
        $region15: #{tpu_custom_call.1} parent=11 // pred_region
          %400 = vsyncadd [#allocation12], 0
          %s401 = sshll.u32 %s4, 4
          %s402 = int_to_ptr.hbm [resolvable:$true] %s401
          %s403 = sshll.u32 [#allocation13], 4
          %s404 = int_to_ptr.vmem [resolvable:$true] %s403
          %409 = dma.hbm_to_vmem [thread:$0]  %s402, 256, %s404, [#allocation12], 64, 64, 4
        $region16: #{tpu_custom_call.1} parent=11 // pred_fallthru
          _
        // Predicated region
        $region17: #{tpu_custom_call.1} parent=11 // pred_check
          %p410 = pneg %p199
        $region18: #{tpu_custom_call.1} parent=11 // pred_check_branch
          %412 = sbr.rel (%p410) target = $region20
        $region19: #{tpu_custom_call.1} parent=11 // pred_region
          _
        $region20: #{tpu_custom_call.1} parent=11 // pred_fallthru
          _
        // Predicated region
        $region21: #{tpu_custom_call.1} parent=11 // pred_check
          %p413 = pneg %p220
        $region22: #{tpu_custom_call.1} parent=11 // pred_check_branch
          %415 = sbr.rel (%p413) target = $region24
        $region23: #{tpu_custom_call.1} parent=11 // pred_region
          %417 = vsyncadd [#allocation15], 0
          %s418 = sshll.u32 %s6, 4
          %s419 = int_to_ptr.hbm [resolvable:$true] %s418
          %s420 = sshll.u32 [#allocation14], 4
          %s421 = int_to_ptr.vmem [resolvable:$true] %s420
          %426 = dma.hbm_to_vmem [thread:$0]  %s419, 256, %s421, [#allocation15], 64, 64, 4
        $region24: #{tpu_custom_call.1} parent=11 // pred_fallthru
          _
        // Predicated region
        $region25: #{tpu_custom_call.1} parent=11 // pred_check
          %p427 = pneg %p241
        $region26: #{tpu_custom_call.1} parent=11 // pred_check_branch
          %429 = sbr.rel (%p427) target = $region28
        $region27: #{tpu_custom_call.1} parent=11 // pred_region
          _
        $region28: #{tpu_custom_call.1} parent=11 // pred_fallthru
          _
        // Predicated region
        $region29: #{tpu_custom_call.1} parent=11 // pred_check
          %p430 = pneg %p262
        $region30: #{tpu_custom_call.1} parent=11 // pred_check_branch
          %432 = sbr.rel (%p430) target = $region32
        $region31: #{tpu_custom_call.1} parent=11 // pred_region
          %434 = vsyncadd [#allocation15], 0
          %s435 = sshll.u32 %s8, 4
          %s436 = int_to_ptr.hbm [resolvable:$true] %s435
          %s437 = sshll.u32 [#allocation16], 4
          %s438 = int_to_ptr.vmem [resolvable:$true] %s437
          %443 = dma.hbm_to_vmem [thread:$0]  %s436, 256, %s438, [#allocation15], 64, 64, 4
        $region32: #{tpu_custom_call.1} parent=11 // pred_fallthru
          _
        // Predicated region
        $region33: #{tpu_custom_call.1} parent=11 // pred_check
          %p444 = pneg %p283
        $region34: #{tpu_custom_call.1} parent=11 // pred_check_branch
          %446 = sbr.rel (%p444) target = $region36
        $region35: #{tpu_custom_call.1} parent=11 // pred_region
          _
        $region36: #{tpu_custom_call.1} parent=11 // pred_fallthru
          _
        // Predicated region
        $region37: #{tpu_custom_call.1} parent=11 // pred_check
          %p447 = pneg %p304
        $region38: #{tpu_custom_call.1} parent=11 // pred_check_branch
          %449 = sbr.rel (%p447) target = $region40
        $region39: #{tpu_custom_call.1} parent=11 // pred_region
          %451 = vsyncadd [#allocation18], 0
          %s452 = sshll.u32 %s10, 4
          %s453 = int_to_ptr.hbm [resolvable:$true] %s452
          %s454 = sshll.u32 [#allocation17], 4
          %s455 = int_to_ptr.vmem [resolvable:$true] %s454
          %460 = dma.hbm_to_vmem [thread:$0]  %s453, 256, %s455, [#allocation18], 64, 64, 4
        $region40: #{tpu_custom_call.1} parent=11 // pred_fallthru
          _
        // Predicated region
        $region41: #{tpu_custom_call.1} parent=11 // pred_check
          %p461 = pneg %p325
        $region42: #{tpu_custom_call.1} parent=11 // pred_check_branch
          %463 = sbr.rel (%p461) target = $region44
        $region43: #{tpu_custom_call.1} parent=11 // pred_region
          _
        $region44: #{tpu_custom_call.1} parent=11 // pred_fallthru
          _
      $region12: #{tpu_custom_call.1} parent=5 // pred_fallthru
        _
      %p464 = scmp.lt.s32.totalorder %s37, 2
      // Predicated region
      $region45: #{tpu_custom_call.1} parent=5 // pred_check
        %p465 = pneg %p464
      $region46: #{tpu_custom_call.1} parent=5 // pred_check_branch
        %467 = sbr.rel (%p465) target = $region48
      $region47: #{tpu_custom_call.1} parent=5 // pred_region
        // Predicated region
        $region49: #{tpu_custom_call.1} parent=47 // pred_check
          %p468 = pneg %p71
        $region50: #{tpu_custom_call.1} parent=47 // pred_check_branch
          %470 = sbr.rel (%p468) target = $region52
        $region51: #{tpu_custom_call.1} parent=47 // pred_region
          %s471 = sand.u32 %s61, 1
          %s472 = scalar_lea.sflag [#allocation6], %s471
          %s473 = sand.u32 %s61, 1
          %s474 = smul.addr %s473, 4
          %s475 = scalar_lea.vmem [#allocation5], %s474
          %477 = vsyncadd %s472, 0
          %s478 = sadd.s32 %s45, %s44
          %s479 = smul.addr %s478, 4
          %s480 = scalar_lea.hbm %s0, %s479
          %s482 = sshll.u32 %s480, 4
          %s483 = int_to_ptr.hbm [resolvable:$true] %s482
          %s484 = sshll.u32 %s475, 4
          %s485 = int_to_ptr.vmem [resolvable:$true] %s484
          %487 = dma.hbm_to_vmem [thread:$0]  %s483, 64, %s485, %s472
        $region52: #{tpu_custom_call.1} parent=47 // pred_fallthru
          _
        // Predicated region
        $region53: #{tpu_custom_call.1} parent=47 // pred_check
          %p488 = pneg %p97
        $region54: #{tpu_custom_call.1} parent=47 // pred_check_branch
          %490 = sbr.rel (%p488) target = $region56
        $region55: #{tpu_custom_call.1} parent=47 // pred_region
          %s491 = sand.u32 %s37, 1
          %s492 = scalar_lea.sflag [#allocation9], %s491
          %s493 = sand.u32 %s87, 1
          %s494 = smul.addr %s493, 4
          %s495 = scalar_lea.vmem [#allocation8], %s494
          %497 = vsyncadd %s492, 0
          %s498 = smul.addr %s44, 4
          %s499 = scalar_lea.hbm %s1, %s498
          %s501 = sshll.u32 %s499, 4
          %s502 = int_to_ptr.hbm [resolvable:$true] %s501
          %s503 = sshll.u32 %s495, 4
          %s504 = int_to_ptr.vmem [resolvable:$true] %s503
          %506 = dma.hbm_to_vmem [thread:$0]  %s502, 64, %s504, %s492
        $region56: #{tpu_custom_call.1} parent=47 // pred_fallthru
          _
        // Predicated region
        $region57: #{tpu_custom_call.1} parent=47 // pred_check
          %p507 = pneg %p123
        $region58: #{tpu_custom_call.1} parent=47 // pred_check_branch
          %509 = sbr.rel (%p507) target = $region60
        $region59: #{tpu_custom_call.1} parent=47 // pred_region
          %s510 = sand.u32 %s37, 1
          %s511 = scalar_lea.sflag [#allocation9], %s510
          %s512 = sand.u32 %s113, 1
          %s513 = smul.addr %s512, 4
          %s514 = scalar_lea.vmem [#allocation10], %s513
          %516 = vsyncadd %s511, 0
          %s517 = smul.addr %s44, 4
          %s518 = scalar_lea.hbm %s2, %s517
          %s520 = sshll.u32 %s518, 4
          %s521 = int_to_ptr.hbm [resolvable:$true] %s520
          %s522 = sshll.u32 %s514, 4
          %s523 = int_to_ptr.vmem [resolvable:$true] %s522
          %525 = dma.hbm_to_vmem [thread:$0]  %s521, 64, %s523, %s511
        $region60: #{tpu_custom_call.1} parent=47 // pred_fallthru
          _
        // Predicated region
        $region61: #{tpu_custom_call.1} parent=47 // pred_check
          %p526 = pneg %p151
        $region62: #{tpu_custom_call.1} parent=47 // pred_check_branch
          %528 = sbr.rel (%p526) target = $region64
        $region63: #{tpu_custom_call.1} parent=47 // pred_region
          %s529 = sand.u32 %s37, 1
          %s530 = scalar_lea.sflag [#allocation12], %s529
          %s531 = sand.u32 %s141, 1
          %s532 = smul.addr %s531, 2
          %s533 = scalar_lea.vmem [#allocation11], %s532
          %535 = vsyncadd %s530, 0
          %s536 = sadd.s32 %s45, %s44
          %s537 = smul.addr %s536, 2
          %s538 = scalar_lea.hbm %s3, %s537
          %s540 = sshll.u32 %s538, 4
          %s541 = int_to_ptr.hbm [resolvable:$true] %s540
          %s542 = sshll.u32 %s533, 4
          %s543 = int_to_ptr.vmem [resolvable:$true] %s542
          %545 = dma.hbm_to_vmem [thread:$0]  %s541, 32, %s543, %s530
        $region64: #{tpu_custom_call.1} parent=47 // pred_fallthru
          _
      $region48: #{tpu_custom_call.1} parent=5 // pred_fallthru
        _
      %p546 = scmp.le.s32.totalorder 1, %s37
      %p547 = scmp.lt.s32.totalorder %s37, 3
      %p548 = pnand %p546, %p547
      %p549 = pneg %p548
      // Predicated region
      $region65: #{tpu_custom_call.1} parent=5 // pred_check
        _
      $region66: #{tpu_custom_call.1} parent=5 // pred_check_branch
        %551 = sbr.rel (%p548) target = $region68
      $region67: #{tpu_custom_call.1} parent=5 // pred_region
        %s552 = ssub.s32 %s37, 1
        %s553 = sand.u32 %s64, 1
        %s554 = scalar_lea.sflag [#allocation6], %s553
        %s555 = sand.u32 %s64, 1
        %s556 = smul.addr %s555, 4
        %s557 = scalar_lea.vmem [#allocation5], %s556
        // Predicated region
        $region69: #{tpu_custom_call.1} parent=67 // pred_check
          %p558 = pneg %p77
        $region70: #{tpu_custom_call.1} parent=67 // pred_check_branch
          %560 = sbr.rel (%p558) target = $region72
        $region71: #{tpu_custom_call.1} parent=67 // pred_region
          %562 = dma.done %s554, 64
        $region72: #{tpu_custom_call.1} parent=67 // pred_fallthru
          _
        %s563 = sand.u32 %s42, 1
        %s564 = scalar_lea.sflag [#allocation9], %s563
        %s565 = sand.u32 %s90, 1
        %s566 = smul.addr %s565, 4
        %s567 = scalar_lea.vmem [#allocation8], %s566
        // Predicated region
        $region73: #{tpu_custom_call.1} parent=67 // pred_check
          %p568 = pneg %p103
        $region74: #{tpu_custom_call.1} parent=67 // pred_check_branch
          %570 = sbr.rel (%p568) target = $region76
        $region75: #{tpu_custom_call.1} parent=67 // pred_region
          %572 = dma.done %s564, 64
        $region76: #{tpu_custom_call.1} parent=67 // pred_fallthru
          _
        %s573 = sand.u32 %s42, 1
        %s574 = scalar_lea.sflag [#allocation9], %s573
        %s575 = sand.u32 %s116, 1
        %s576 = smul.addr %s575, 4
        %s577 = scalar_lea.vmem [#allocation10], %s576
        // Predicated region
        $region77: #{tpu_custom_call.1} parent=67 // pred_check
          %p578 = pneg %p129
        $region78: #{tpu_custom_call.1} parent=67 // pred_check_branch
          %580 = sbr.rel (%p578) target = $region80
        $region79: #{tpu_custom_call.1} parent=67 // pred_region
          %582 = dma.done %s574, 64
        $region80: #{tpu_custom_call.1} parent=67 // pred_fallthru
          _
        %s583 = sand.u32 %s42, 1
        %s584 = scalar_lea.sflag [#allocation12], %s583
        %s585 = sand.u32 %s144, 1
        %s586 = smul.addr %s585, 2
        %s587 = scalar_lea.vmem [#allocation11], %s586
        // Predicated region
        $region81: #{tpu_custom_call.1} parent=67 // pred_check
          %p588 = pneg %p157
        $region82: #{tpu_custom_call.1} parent=67 // pred_check_branch
          %590 = sbr.rel (%p588) target = $region84
        $region83: #{tpu_custom_call.1} parent=67 // pred_region
          %592 = dma.done %s584, 32
        $region84: #{tpu_custom_call.1} parent=67 // pred_fallthru
          _
        // Predicated region
        $region85: #{tpu_custom_call.1} parent=67 // pred_check
          %p593 = pneg %p178
        $region86: #{tpu_custom_call.1} parent=67 // pred_check_branch
          %595 = sbr.rel (%p593) target = $region88
        $region87: #{tpu_custom_call.1} parent=67 // pred_region
          %597 = dma.done [#allocation12], 256
        $region88: #{tpu_custom_call.1} parent=67 // pred_fallthru
          _
        // Predicated region
        $region89: #{tpu_custom_call.1} parent=67 // pred_check
          %p598 = pneg %p220
        $region90: #{tpu_custom_call.1} parent=67 // pred_check_branch
          %600 = sbr.rel (%p598) target = $region92
        $region91: #{tpu_custom_call.1} parent=67 // pred_region
          %602 = dma.done [#allocation15], 256
        $region92: #{tpu_custom_call.1} parent=67 // pred_fallthru
          _
        // Predicated region
        $region93: #{tpu_custom_call.1} parent=67 // pred_check
          %p603 = pneg %p262
        $region94: #{tpu_custom_call.1} parent=67 // pred_check_branch
          %605 = sbr.rel (%p603) target = $region96
        $region95: #{tpu_custom_call.1} parent=67 // pred_region
          %607 = dma.done [#allocation15], 256
        $region96: #{tpu_custom_call.1} parent=67 // pred_fallthru
          _
        // Predicated region
        $region97: #{tpu_custom_call.1} parent=67 // pred_check
          %p608 = pneg %p304
        $region98: #{tpu_custom_call.1} parent=67 // pred_check_branch
          %610 = sbr.rel (%p608) target = $region100
        $region99: #{tpu_custom_call.1} parent=67 // pred_region
          %612 = dma.done [#allocation18], 256
        $region100: #{tpu_custom_call.1} parent=67 // pred_fallthru
          _
        %s613 = sand.u32 %s64, 1
        %s614 = scalar_lea.sflag [#allocation6], %s613
        %s615 = sand.u32 %s64, 1
        %s616 = smul.addr %s615, 4
        %s617 = scalar_lea.vmem [#allocation5], %s616
        %p618 = pneg %p77
        %p619 = pneg %p74
        %s620 = sand.u32 %s42, 1
        %s621 = scalar_lea.sflag [#allocation9], %s620
        %s622 = sand.u32 %s90, 1
        %s623 = smul.addr %s622, 4
        %s624 = scalar_lea.vmem [#allocation8], %s623
        %p625 = pneg %p103
        %p626 = pneg %p100
        %s627 = sand.u32 %s42, 1
        %s628 = scalar_lea.sflag [#allocation9], %s627
        %s629 = sand.u32 %s116, 1
        %s630 = smul.addr %s629, 4
        %s631 = scalar_lea.vmem [#allocation10], %s630
        %p632 = pneg %p129
        %p633 = pneg %p126
        %s634 = sand.u32 %s42, 1
        %s635 = scalar_lea.sflag [#allocation12], %s634
        %s636 = sand.u32 %s144, 1
        %s637 = smul.addr %s636, 2
        %s638 = scalar_lea.vmem [#allocation11], %s637
        %p639 = pneg %p157
        %p640 = pneg %p154
        %p641 = pneg %p178
        %p642 = pneg %p175
        %p643 = pneg %p199
        %p644 = pneg %p196
        %p645 = pneg %p220
        %p646 = pneg %p217
        %p647 = pneg %p241
        %p648 = pneg %p238
        %p649 = pneg %p262
        %p650 = pneg %p259
        %p651 = pneg %p283
        %p652 = pneg %p280
        %p653 = pneg %p304
        %p654 = pneg %p301
        %p655 = pneg %p325
        %p656 = pneg %p322
        %p657 = pneg %p353
        %p658 = pneg %p350
        %s659 = sand.u32 %s340, 1
        %s660 = scalar_lea.sflag [#allocation7], %s659
        %s661 = sand.u32 %s340, 1
        %s662 = smul.addr %s661, 8
        %s663 = scalar_lea.vmem [#allocation19], %s662
        %p664 = pneg %p381
        %p665 = pneg %p378
        %s666 = sand.u32 %s368, 1
        %s667 = scalar_lea.sflag [#allocation21], %s666
        %s668 = sand.u32 %s368, 1
        %s669 = smul.addr %s668, 16
        %s670 = scalar_lea.vmem [#allocation20], %s669
        %p672 = scmp.eq.s32.totalorder %s47, 0
        // Predicated region
        $region101: #{tpu_custom_call.1} parent=67 // pred_check
          %p673 = pneg %p672
        $region102: #{tpu_custom_call.1} parent=67 // pred_check_branch
          %675 = sbr.rel (%p673) target = $region104
        $region103: #{tpu_custom_call.1} parent=67 // pred_region
          %v676 = vld [vmem:[%s567] sm:$0xf]
          %v677 = vld [vmem:[#allocation14] sm:$0xf]
          %v678 = vld [vmem:[#allocation14 + $0x4] sm:$0xf]
          %v679 = vld [vmem:[#allocation14 + $0x8] sm:$0xf]
          %v680 = vld [vmem:[#allocation14 + $0xc] sm:$0xf]
          %v681 = vld [vmem:[%s7] sm:$0x1]
          %v683 = vperm.slane %v681, 0
          %v689 = vunpack.c.l.b16 %v677
          %v690 = vunpack.c.l.b16 %v678
          %v691 = vunpack.c.l.b16 %v679
          %v692 = vunpack.c.l.b16 %v680
          %v693 = vpack.c.b16 %v690, %v689
          %v694 = vpack.c.b16 %v692, %v691
          %vm697 = vcmask 261120
          %v699 = vsel %vm697, %v676, 0
          %701 = vmatpush.bf16.msra.mxu0 0
          %702 = vmatpush.bf16.msra.mxu0 0
          %703 = vmatpush.bf16.msra.mxu0 0
          %704 = vmatpush.bf16.msra.mxu0 0
          %705 = vmatpush.bf16.msra.mxu0 0
          %706 = vmatpush.bf16.msra.mxu0 0
          %707 = vmatpush.bf16.msra.mxu0 %v694
          %708 = vmatpush.bf16.msra.mxu0 %v693
          %709 = vmatmul.bf16.gmra.mxu0 %v699
          %v710 = vpop.f32.mrf.mxu0
          %v711 = vadd.f32 %v683, %v710
          %v712 = vpop.f32.mrf.mxu0
          %713 = vdwg.mxu0
          %v714 = vld [vmem:[%s577] sm:$0xf]
          %v715 = vld [vmem:[#allocation16] sm:$0xf]
          %v716 = vld [vmem:[#allocation16 + $0x4] sm:$0xf]
          %v717 = vld [vmem:[#allocation16 + $0x8] sm:$0xf]
          %v718 = vld [vmem:[#allocation16 + $0xc] sm:$0xf]
          %v719 = vld [vmem:[%s9] sm:$0x1]
          %v721 = vperm.slane %v719, 0
          %v727 = vunpack.c.l.b16 %v715
          %v728 = vunpack.c.l.b16 %v716
          %v729 = vunpack.c.l.b16 %v717
          %v730 = vunpack.c.l.b16 %v718
          %v731 = vpack.c.b16 %v728, %v727
          %v732 = vpack.c.b16 %v730, %v729
          %v736 = vsel %vm697, %v714, 0
          %738 = vmatpush.bf16.msra.mxu0 0
          %739 = vmatpush.bf16.msra.mxu0 0
          %740 = vmatpush.bf16.msra.mxu0 0
          %741 = vmatpush.bf16.msra.mxu0 0
          %742 = vmatpush.bf16.msra.mxu0 0
          %743 = vmatpush.bf16.msra.mxu0 0
          %744 = vmatpush.bf16.msra.mxu0 %v732
          %745 = vmatpush.bf16.msra.mxu0 %v731
          %746 = vmatmul.bf16.gmra.mxu0 %v736
          %v747 = vpop.f32.mrf.mxu0
          %v748 = vadd.f32 %v721, %v747
          %v749 = vpop.f32.mrf.mxu0
          %750 = vdwg.mxu0
          %v751 = vpack.c.bf16 %v711, %v711
          %vm752 = vcmask 257024
          %753 = vst.msk [vmem:[#allocation2] sm:$0xf] %vm752, %v751
          %v754 = vpack.c.bf16 %v748, %v748
          %755 = vst.msk [vmem:[#allocation3] sm:$0xf] %vm752, %v754
        $region104: #{tpu_custom_call.1} parent=67 // pred_fallthru
          _
        %v756 = vld [vmem:[%s557] sm:$0xf]
        %v757 = vld [vmem:[#allocation13] sm:$0xf]
        %v758 = vld [vmem:[#allocation13 + $0x4] sm:$0xf]
        %v759 = vld [vmem:[#allocation13 + $0x8] sm:$0xf]
        %v760 = vld [vmem:[#allocation13 + $0xc] sm:$0xf]
        %v761 = vld [vmem:[%s5] sm:$0x1]
        %v763 = vperm.slane %v761, 0
        %v769 = vunpack.c.l.b16 %v757
        %v770 = vunpack.c.l.b16 %v758
        %v771 = vunpack.c.l.b16 %v759
        %v772 = vunpack.c.l.b16 %v760
        %v773 = vpack.c.b16 %v770, %v769
        %v774 = vpack.c.b16 %v772, %v771
        %vm777 = vcmask 261120
        %v779 = vsel %vm777, %v756, 0
        %781 = vmatpush.bf16.msra.mxu0 0
        %782 = vmatpush.bf16.msra.mxu0 0
        %783 = vmatpush.bf16.msra.mxu0 0
        %784 = vmatpush.bf16.msra.mxu0 0
        %785 = vmatpush.bf16.msra.mxu0 0
        %786 = vmatpush.bf16.msra.mxu0 0
        %787 = vmatpush.bf16.msra.mxu0 %v774
        %788 = vmatpush.bf16.msra.mxu0 %v773
        %789 = vmatmul.bf16.gmra.mxu0 %v779
        %v790 = vpop.f32.mrf.mxu0
        %v791 = vadd.f32 %v763, %v790
        %v792 = vpop.f32.mrf.mxu0
        %793 = vdwg.mxu0
        %v794 = vld [vmem:[%s587] sm:$0x3]
        %v795 = vunpack.c.0.s8 %v794
        %vm796 = vcmp.eq.s32.totalorder %v795, 0
        %v797 = vsel %vm796, -1e+09, 0.0
        %v798 = vld [vmem:[#allocation2] sm:$0xf]
        %v799 = vld [vmem:[#allocation3] sm:$0xf]
        %v800 = vpack.c.bf16 %v791, %v791
        %vm801 = vcmask 64512
        %v803 = vsel %vm801, %v800, 0
        %v806 = vsel %vm801, %v798, 0
        %808 = vmatpush.bf16.xpose.msra.mxu0 0
        %809 = vmatpush.bf16.xpose.msra.mxu0 0
        %810 = vmatpush.bf16.xpose.msra.mxu0 0
        %811 = vmatpush.bf16.xpose.msra.mxu0 0
        %812 = vmatpush.bf16.xpose.msra.mxu0 0
        %813 = vmatpush.bf16.xpose.msra.mxu0 0
        %814 = vmatpush.bf16.xpose.msra.mxu0 0
        %815 = vmatpush.bf16.xpose.msra.mxu0 %v806
        %816 = vmatmul.bf16.gmra.mxu0 %v803
        %v817 = vpop.f32.mrf.mxu0
        %v818 = vadd.f32 %v797, %v817
        %v819 = vpop.f32.mrf.mxu0
        %820 = vdwg.mxu0
        %v821 = vsel %vm801, %v818, -inf
        %822 = vmax.xlane.f32.xlu0 %v821
        %v823 = vpop.xlane.xlu0 %822
        %v824 = vsub.f32 %v818, %v823
        %v825 = vmul.f32 %v824, 1.442695
        %v826 = vpow.pop %v825
        %v827 = vsel %vm801, %v826, 0.0
        %828 = vadd.xlane.f32.xlu0 %v827
        %v829 = vpop.xlane.xlu0 %828
        %v830 = vrcp.pop %v829
        %v831 = vmul.f32 %v826, %v830
        %v832 = vpack.c.bf16 %v831, %v831
        %vm833 = vcmask 60416
        %834 = vst.msk [vmem:[%s670] sm:$0xf] %vm833, %v832
        %v836 = vsel %vm801, %v832, 0
        %vm838 = vcmask 1043456
        %v840 = vsel %vm838, %v799, 0
        %842 = vmatpush.bf16.msra.mxu0 0
        %843 = vmatpush.bf16.msra.mxu0 0
        %844 = vmatpush.bf16.msra.mxu0 0
        %845 = vmatpush.bf16.msra.mxu0 0
        %846 = vmatpush.bf16.msra.mxu0 0
        %847 = vmatpush.bf16.msra.mxu0 0
        %848 = vmatpush.bf16.msra.mxu0 0
        %849 = vmatpush.bf16.msra.mxu0 %v840
        %850 = vmatmul.bf16.gmra.mxu0 %v836
        %v851 = vpop.f32.mrf.mxu0
        %v852 = vadd.f32 0.0, %v851
        %v853 = vpop.f32.mrf.mxu0
        %854 = vdwg.mxu0
        %855 = vst.msk [vmem:[#allocation4] sm:$0xff] %vm801, %v852
        %857 = vrot.lane.b32.xlu0 %v800, 120
        %v858 = vpop.permute.xlu0 %857
        %v860 = vunpack.c.l.b16 %v798
        %v861 = vpack.c.b16 %v860, %v860
        %862 = vrot.lane.b32.xlu0 %v861, 120
        %v863 = vpop.permute.xlu0 %862
        %v865 = vsel %vm801, %v858, 0
        %v868 = vsel %vm801, %v863, 0
        %870 = vmatpush.bf16.xpose.msra.mxu0 0
        %871 = vmatpush.bf16.xpose.msra.mxu0 0
        %872 = vmatpush.bf16.xpose.msra.mxu0 0
        %873 = vmatpush.bf16.xpose.msra.mxu0 0
        %874 = vmatpush.bf16.xpose.msra.mxu0 0
        %875 = vmatpush.bf16.xpose.msra.mxu0 0
        %876 = vmatpush.bf16.xpose.msra.mxu0 0
        %877 = vmatpush.bf16.xpose.msra.mxu0 %v868
        %878 = vmatmul.bf16.gmra.mxu0 %v865
        %v879 = vpop.f32.mrf.mxu0
        %v880 = vadd.f32 %v797, %v879
        %v881 = vpop.f32.mrf.mxu0
        %882 = vdwg.mxu0
        %v883 = vsel %vm801, %v880, -inf
        %884 = vmax.xlane.f32.xlu0 %v883
        %v885 = vpop.xlane.xlu0 %884
        %v886 = vsub.f32 %v880, %v885
        %v887 = vmul.f32 %v886, 1.442695
        %v888 = vpow.pop %v887
        %v889 = vsel %vm801, %v888, 0.0
        %890 = vadd.xlane.f32.xlu0 %v889
        %v891 = vpop.xlane.xlu0 %890
        %v892 = vrcp.pop %v891
        %v893 = vmul.f32 %v888, %v892
        %v894 = vpack.c.bf16 %v893, %v893
        %s895 = scalar_lea.vmem %s670, 4 [#allocation20]
        %896 = vst.msk [vmem:[%s895] sm:$0xf] %vm833, %v894
        %v898 = vunpack.c.l.b16 %v799
        %v899 = vpack.c.b16 %v898, %v898
        %900 = vrot.lane.b32.xlu0 %v899, 120
        %v901 = vpop.permute.xlu0 %900
        %v903 = vsel %vm801, %v894, 0
        %v906 = vsel %vm838, %v901, 0
        %908 = vmatpush.bf16.msra.mxu0 0
        %909 = vmatpush.bf16.msra.mxu0 0
        %910 = vmatpush.bf16.msra.mxu0 0
        %911 = vmatpush.bf16.msra.mxu0 0
        %912 = vmatpush.bf16.msra.mxu0 0
        %913 = vmatpush.bf16.msra.mxu0 0
        %914 = vmatpush.bf16.msra.mxu0 0
        %915 = vmatpush.bf16.msra.mxu0 %v906
        %916 = vmatmul.bf16.gmra.mxu0 %v903
        %v917 = vpop.f32.mrf.mxu0
        %v918 = vadd.f32 0.0, %v917
        %v919 = vpop.f32.mrf.mxu0
        %920 = vdwg.mxu0
        %922 = vrot.lane.b32.xlu0 %v918, 8
        %v923 = vpop.permute.xlu0 %922
        %vm925 = vcmask 130112
        %926 = vst.msk [vmem:[#allocation4] sm:$0xff] %vm925, %v923
        %927 = vrot.lane.b32.xlu0 %v800, 112
        %v928 = vpop.permute.xlu0 %927
        %929 = vrot.lane.b32.xlu0 %v861, 112
        %v930 = vpop.permute.xlu0 %929
        %v932 = vsel %vm801, %v928, 0
        %v935 = vsel %vm801, %v930, 0
        %937 = vmatpush.bf16.xpose.msra.mxu0 0
        %938 = vmatpush.bf16.xpose.msra.mxu0 0
        %939 = vmatpush.bf16.xpose.msra.mxu0 0
        %940 = vmatpush.bf16.xpose.msra.mxu0 0
        %941 = vmatpush.bf16.xpose.msra.mxu0 0
        %942 = vmatpush.bf16.xpose.msra.mxu0 0
        %943 = vmatpush.bf16.xpose.msra.mxu0 0
        %944 = vmatpush.bf16.xpose.msra.mxu0 %v935
        %945 = vmatmul.bf16.gmra.mxu0 %v932
        %v946 = vpop.f32.mrf.mxu0
        %v947 = vadd.f32 %v797, %v946
        %v948 = vpop.f32.mrf.mxu0
        %949 = vdwg.mxu0
        %v950 = vsel %vm801, %v947, -inf
        %951 = vmax.xlane.f32.xlu0 %v950
        %v952 = vpop.xlane.xlu0 %951
        %v953 = vsub.f32 %v947, %v952
        %v954 = vmul.f32 %v953, 1.442695
        %v955 = vpow.pop %v954
        %v956 = vsel %vm801, %v955, 0.0
        %957 = vadd.xlane.f32.xlu0 %v956
        %v958 = vpop.xlane.xlu0 %957
        %v959 = vrcp.pop %v958
        %v960 = vmul.f32 %v955, %v959
        %v961 = vpack.c.bf16 %v960, %v960
        %s962 = scalar_lea.vmem %s670, 8 [#allocation20]
        %963 = vst.msk [vmem:[%s962] sm:$0xf] %vm833, %v961
        %964 = vrot.lane.b32.xlu0 %v899, 112
        %v965 = vpop.permute.xlu0 %964
        %v967 = vsel %vm801, %v961, 0
        %v970 = vsel %vm838, %v965, 0
        %972 = vmatpush.bf16.msra.mxu0 0
        %973 = vmatpush.bf16.msra.mxu0 0
        %974 = vmatpush.bf16.msra.mxu0 0
        %975 = vmatpush.bf16.msra.mxu0 0
        %976 = vmatpush.bf16.msra.mxu0 0
        %977 = vmatpush.bf16.msra.mxu0 0
        %978 = vmatpush.bf16.msra.mxu0 0
        %979 = vmatpush.bf16.msra.mxu0 %v970
        %980 = vmatmul.bf16.gmra.mxu0 %v967
        %v981 = vpop.f32.mrf.mxu0
        %v982 = vadd.f32 0.0, %v981
        %v983 = vpop.f32.mrf.mxu0
        %984 = vdwg.mxu0
        %986 = vrot.lane.b32.xlu0 %v982, 16
        %v987 = vpop.permute.xlu0 %986
        %vm989 = vcmask 195712
        %990 = vst.msk [vmem:[#allocation4] sm:$0xff] %vm989, %v987
        %991 = vrot.lane.b32.xlu0 %v800, 104
        %v992 = vpop.permute.xlu0 %991
        %993 = vrot.lane.b32.xlu0 %v861, 104
        %v994 = vpop.permute.xlu0 %993
        %v996 = vsel %vm801, %v992, 0
        %v999 = vsel %vm801, %v994, 0
        %1001 = vmatpush.bf16.xpose.msra.mxu0 0
        %1002 = vmatpush.bf16.xpose.msra.mxu0 0
        %1003 = vmatpush.bf16.xpose.msra.mxu0 0
        %1004 = vmatpush.bf16.xpose.msra.mxu0 0
        %1005 = vmatpush.bf16.xpose.msra.mxu0 0
        %1006 = vmatpush.bf16.xpose.msra.mxu0 0
        %1007 = vmatpush.bf16.xpose.msra.mxu0 0
        %1008 = vmatpush.bf16.xpose.msra.mxu0 %v999
        %1009 = vmatmul.bf16.gmra.mxu0 %v996
        %v1010 = vpop.f32.mrf.mxu0
        %v1011 = vadd.f32 %v797, %v1010
        %v1012 = vpop.f32.mrf.mxu0
        %1013 = vdwg.mxu0
        %v1014 = vsel %vm801, %v1011, -inf
        %1015 = vmax.xlane.f32.xlu0 %v1014
        %v1016 = vpop.xlane.xlu0 %1015
        %v1017 = vsub.f32 %v1011, %v1016
        %v1018 = vmul.f32 %v1017, 1.442695
        %v1019 = vpow.pop %v1018
        %v1020 = vsel %vm801, %v1019, 0.0
        %1021 = vadd.xlane.f32.xlu0 %v1020
        %v1022 = vpop.xlane.xlu0 %1021
        %v1023 = vrcp.pop %v1022
        %v1024 = vmul.f32 %v1019, %v1023
        %v1025 = vpack.c.bf16 %v1024, %v1024
        %s1026 = scalar_lea.vmem %s670, 12 [#allocation20]
        %1027 = vst.msk [vmem:[%s1026] sm:$0xf] %vm833, %v1025
        %1028 = vrot.lane.b32.xlu0 %v899, 104
        %v1029 = vpop.permute.xlu0 %1028
        %v1031 = vsel %vm801, %v1025, 0
        %v1034 = vsel %vm838, %v1029, 0
        %1036 = vmatpush.bf16.msra.mxu0 0
        %1037 = vmatpush.bf16.msra.mxu0 0
        %1038 = vmatpush.bf16.msra.mxu0 0
        %1039 = vmatpush.bf16.msra.mxu0 0
        %1040 = vmatpush.bf16.msra.mxu0 0
        %1041 = vmatpush.bf16.msra.mxu0 0
        %1042 = vmatpush.bf16.msra.mxu0 0
        %1043 = vmatpush.bf16.msra.mxu0 %v1034
        %1044 = vmatmul.bf16.gmra.mxu0 %v1031
        %v1045 = vpop.f32.mrf.mxu0
        %v1046 = vadd.f32 0.0, %v1045
        %v1047 = vpop.f32.mrf.mxu0
        %1048 = vdwg.mxu0
        %1050 = vrot.lane.b32.xlu0 %v1046, 24
        %v1051 = vpop.permute.xlu0 %1050
        %vm1053 = vcmask 261312
        %1054 = vst.msk [vmem:[#allocation4] sm:$0xff] %vm1053, %v1051
        %v1055 = vld [vmem:[#allocation4] sm:$0xff]
        %v1056 = vpack.c.bf16 %v1055, %v1055
        %v1057 = vld [vmem:[#allocation17] sm:$0xf]
        %v1058 = vld [vmem:[#allocation17 + $0x4] sm:$0xf]
        %v1059 = vld [vmem:[#allocation17 + $0x8] sm:$0xf]
        %v1060 = vld [vmem:[#allocation17 + $0xc] sm:$0xf]
        %v1061 = vld [vmem:[%s11] sm:$0x1]
        %v1063 = vperm.slane %v1061, 0
        %v1069 = vunpack.c.l.b16 %v1057
        %v1070 = vunpack.c.l.b16 %v1058
        %v1071 = vunpack.c.l.b16 %v1059
        %v1072 = vunpack.c.l.b16 %v1060
        %v1073 = vpack.c.b16 %v1070, %v1069
        %v1074 = vpack.c.b16 %v1072, %v1071
        %v1078 = vsel %vm777, %v1056, 0
        %1080 = vmatpush.bf16.msra.mxu0 0
        %1081 = vmatpush.bf16.msra.mxu0 0
        %1082 = vmatpush.bf16.msra.mxu0 0
        %1083 = vmatpush.bf16.msra.mxu0 0
        %1084 = vmatpush.bf16.msra.mxu0 0
        %1085 = vmatpush.bf16.msra.mxu0 0
        %1086 = vmatpush.bf16.msra.mxu0 %v1074
        %1087 = vmatpush.bf16.msra.mxu0 %v1073
        %1088 = vmatmul.bf16.gmra.mxu0 %v1078
        %v1089 = vpop.f32.mrf.mxu0
        %v1090 = vadd.f32 %v1063, %v1089
        %v1091 = vpop.f32.mrf.mxu0
        %1092 = vdwg.mxu0
        %1093 = vst.msk [vmem:[%s663] sm:$0xff] %vm777, %v1090
        %s1094 = sand.u32 %s340, 1
        %s1095 = scalar_lea.sflag [#allocation7], %s1094
        %s1096 = sand.u32 %s340, 1
        %s1097 = smul.addr %s1096, 8
        %s1098 = scalar_lea.vmem [#allocation19], %s1097
        %s1099 = sand.u32 %s368, 1
        %s1100 = scalar_lea.sflag [#allocation21], %s1099
        %s1101 = sand.u32 %s368, 1
        %s1102 = smul.addr %s1101, 16
        %s1103 = scalar_lea.vmem [#allocation20], %s1102
        // Predicated region
        $region105: #{tpu_custom_call.1} parent=67 // pred_check
          %p1104 = pneg %p350
        $region106: #{tpu_custom_call.1} parent=67 // pred_check_branch
          %1106 = sbr.rel (%p1104) target = $region108
        $region107: #{tpu_custom_call.1} parent=67 // pred_region
          %1108 = vsyncadd %s1095, 0
          %s1109 = sadd.s32 %s47, %s46
          %s1110 = smul.addr %s1109, 8
          %s1111 = scalar_lea.hbm %s12, %s1110
          %s1113 = sshll.u32 %s1098, 4
          %s1114 = int_to_ptr.vmem [resolvable:$true] %s1113
          %s1115 = sshll.u32 %s1111, 4
          %s1116 = int_to_ptr.hbm [resolvable:$true] %s1115
          %1118 = dma.vmem_to_hbm [thread:$0]  %s1114, 128, %s1116, %s1095
        $region108: #{tpu_custom_call.1} parent=67 // pred_fallthru
          _
        // Predicated region
        $region109: #{tpu_custom_call.1} parent=67 // pred_check
          %p1119 = pneg %p378
        $region110: #{tpu_custom_call.1} parent=67 // pred_check_branch
          %1121 = sbr.rel (%p1119) target = $region112
        $region111: #{tpu_custom_call.1} parent=67 // pred_region
          %1123 = vsyncadd %s1100, 0
          %s1124 = smul.addr %s46, 4
          %s1125 = sadd.s32 %s47, %s1124
          %s1126 = smul.addr %s1125, 4
          %s1127 = scalar_lea.hbm %s13, %s1126
          %s1128 = sshll.u32 %s1103, 4
          %s1129 = int_to_ptr.vmem [resolvable:$true] %s1128
          %s1130 = sshll.u32 %s1127, 4
          %s1131 = int_to_ptr.hbm [resolvable:$true] %s1130
          %1136 = dma.vmem_to_hbm [thread:$0]  %s1129, 256, %s1131, %s1100, 64, 64, 4
        $region112: #{tpu_custom_call.1} parent=67 // pred_fallthru
          _
      $region68: #{tpu_custom_call.1} parent=5 // pred_fallthru
        _
      %p1137 = scmp.le.s32.totalorder 2, %s37
      // Predicated region
      $region113: #{tpu_custom_call.1} parent=5 // pred_check
        %p1138 = pneg %p1137
      $region114: #{tpu_custom_call.1} parent=5 // pred_check_branch
        %1140 = sbr.rel (%p1138) target = $region116
      $region115: #{tpu_custom_call.1} parent=5 // pred_region
        %s1141 = ssub.s32 %s37, 2
        // Predicated region
        $region117: #{tpu_custom_call.1} parent=115 // pred_check
          %p1142 = pneg %p356
        $region118: #{tpu_custom_call.1} parent=115 // pred_check_branch
          %1144 = sbr.rel (%p1142) target = $region120
        $region119: #{tpu_custom_call.1} parent=115 // pred_region
          %s1145 = sand.u32 %s341, 1
          %s1146 = scalar_lea.sflag [#allocation7], %s1145
          %s1147 = sand.u32 %s341, 1
          %s1148 = smul.addr %s1147, 8
          %s1149 = scalar_lea.vmem [#allocation19], %s1148
          %1151 = dma.done %s1146, 128
        $region120: #{tpu_custom_call.1} parent=115 // pred_fallthru
          _
        // Predicated region
        $region121: #{tpu_custom_call.1} parent=115 // pred_check
          %p1152 = pneg %p384
        $region122: #{tpu_custom_call.1} parent=115 // pred_check_branch
          %1154 = sbr.rel (%p1152) target = $region124
        $region123: #{tpu_custom_call.1} parent=115 // pred_region
          %s1155 = sand.u32 %s369, 1
          %s1156 = scalar_lea.sflag [#allocation21], %s1155
          %s1157 = sand.u32 %s369, 1
          %s1158 = smul.addr %s1157, 16
          %s1159 = scalar_lea.vmem [#allocation20], %s1158
          %1161 = dma.done %s1156, 256
        $region124: #{tpu_custom_call.1} parent=115 // pred_fallthru
          _
      $region116: #{tpu_custom_call.1} parent=5 // pred_fallthru
        _
    $region6: #{tpu_custom_call.1} parent=1 // loop_footer
      %s41 = sadd.s32 1, %s37
    $region7: #{tpu_custom_call.1} parent=1 // loop_footer_branch
      %36 = sbr.rel target = $region3
    $region8: #{tpu_custom_call.1} parent=1 // loop_exit
      _
    %1162 = vsyncpa [#allocation6], 1
    %s1163 = scalar_lea.sflag [#allocation6], 1
    %1164 = vsyncpa %s1163, 1
    %1165 = vsyncpa [#allocation9], 1
    %s1166 = scalar_lea.sflag [#allocation9], 1
    %1167 = vsyncpa %s1166, 1
    %1168 = vsyncpa [#allocation12], 1
    %s1169 = scalar_lea.sflag [#allocation12], 1
    %1170 = vsyncpa %s1169, 1
    %1171 = vsyncpa [#allocation15], 1
    %1172 = vsyncpa [#allocation18], 1
    %1173 = vsyncpa [#allocation7], 1
    %s1174 = scalar_lea.sflag [#allocation7], 1
    %1175 = vsyncpa %s1174, 1
    %1176 = vsyncpa [#allocation21], 1
    %s1177 = scalar_lea.sflag [#allocation21], 1
    %1178 = vsyncpa %s1177, 1

// kernel: tpu_custom_call.1
$region0: #{tpu_custom_call.1}
  #allocation0 [shape = 'u32[]', space=smem, size = 0x4, offset = 0x4, fixed_abs, tag = 'smem constant byte address 0x4 - core index']
  #allocation1 [shape = 'u32[72,128]{1,0:T(1,128)}', space=vmem, size = 0x9000, scoped, tag = 'internal scratch']
  #allocation2 [shape = 'bf16[8,32]{1,0:T(8,128)(2,1)}', space=vmem, size = 0x800, scoped, tag = 'scratch operand']
  #allocation3 [shape = 'bf16[8,32]{1,0:T(8,128)(2,1)}', space=vmem, size = 0x800, scoped, tag = 'scratch operand']
  #allocation4 [shape = 'f32[8,32]{1,0:T(8,128)}', space=vmem, size = 0x1000, scoped, tag = 'scratch operand']
  %s0 = inlined_call_operand.hbm [shape: bf16[2,8,32], index: 0, kind: input, shape index: {}]
  %s1 = inlined_call_operand.hbm [shape: bf16[2,8,32], index: 1, kind: input, shape index: {}]
  %s2 = inlined_call_operand.hbm [shape: bf16[2,8,32], index: 2, kind: input, shape index: {}]
  %s3 = inlined_call_operand.hbm [shape: s8[2,8,8], index: 3, kind: input, shape index: {}]
  %s4 = inlined_call_operand.hbm [shape: bf16[32,32], index: 4, kind: input, shape index: {}]
  %s5 = inlined_call_operand.vmem [shape: f32[1,32], index: 5, kind: input, shape index: {}]
  %s6 = inlined_call_operand.hbm [shape: bf16[32,32], index: 6, kind: input, shape index: {}]
  %s7 = inlined_call_operand.vmem [shape: f32[1,32], index: 7, kind: input, shape index: {}]
  %s8 = inlined_call_operand.hbm [shape: bf16[32,32], index: 8, kind: input, shape index: {}]
  %s9 = inlined_call_operand.vmem [shape: f32[1,32], index: 9, kind: input, shape index: {}]
  %s10 = inlined_call_operand.hbm [shape: bf16[32,32], index: 10, kind: input, shape index: {}]
  %s11 = inlined_call_operand.vmem [shape: f32[1,32], index: 11, kind: input, shape index: {}]
  %s12 = inlined_call_operand.hbm [shape: f32[2,8,32], index: 12, kind: output, shape index: {0}]
  %s13 = inlined_call_operand.hbm [shape: bf16[2,4,8,8], index: 13, kind: output, shape index: {1}]
  %14 = xla_tuple %s12, %s13
  %s15 = sld [smem:[#allocation0]]
  $region125: #{tpu_custom_call.1} parent=0
    _
  %s17 = ssub.s32 1, %s15
  %s18 = scalar_select 0, %s17, %s15
  $region1: #{tpu_custom_call.1} parent=0
    #allocation5 [shape = 'u8[4096]{0}', space=vmem, size = 0x1000, scoped, tag = 'input window, operand 0']
    #allocation6 [shape = 's32[2]{0}', space=sflag, size = 0x8, scoped, tag = 'scoped memory for tpu_custom_call.1']
    #allocation7 [shape = 's32[2]{0}', space=sflag, size = 0x8, scoped, tag = 'scoped memory for tpu_custom_call.1']
    #allocation8 [shape = 'u8[4096]{0}', space=vmem, size = 0x1000, scoped, tag = 'input window, operand 1']
    #allocation9 [shape = 's32[2]{0}', space=sflag, size = 0x8, scoped, tag = 'scoped memory for tpu_custom_call.1']
    #allocation10 [shape = 'u8[4096]{0}', space=vmem, size = 0x1000, scoped, tag = 'input window, operand 2']
    #allocation11 [shape = 'u8[2048]{0}', space=vmem, size = 0x800, scoped, tag = 'input window, operand 3']
    #allocation12 [shape = 's32[2]{0}', space=sflag, size = 0x8, scoped, tag = 'scoped memory for tpu_custom_call.1']
    #allocation13 [shape = 'u8[8192]{0}', space=vmem, size = 0x2000, scoped, tag = 'input window, operand 4, single buffered']
    #allocation14 [shape = 'u8[8192]{0}', space=vmem, size = 0x2000, scoped, tag = 'input window, operand 6, single buffered']
    #allocation15 [shape = 's32[1]{0}', space=sflag, size = 0x4, scoped, tag = 'scoped memory for tpu_custom_call.1']
    #allocation16 [shape = 'u8[8192]{0}', space=vmem, size = 0x2000, scoped, tag = 'input window, operand 8, single buffered']
    #allocation17 [shape = 'u8[8192]{0}', space=vmem, size = 0x2000, scoped, tag = 'input window, operand 10, single buffered']
    #allocation18 [shape = 's32[1]{0}', space=sflag, size = 0x4, scoped, tag = 'scoped memory for tpu_custom_call.1']
    #allocation19 [shape = 'u8[8192]{0}', space=vmem, size = 0x2000, scoped, tag = 'output window, operand 0']
    #allocation20 [shape = 'u8[16384]{0}', space=vmem, size = 0x4000, scoped, tag = 'output window, operand 1']
    #allocation21 [shape = 's32[2]{0}', space=sflag, size = 0x8, scoped, tag = 'scoped memory for tpu_custom_call.1']
    %19 = vsyncpa [#allocation6], 0
    %s20 = scalar_lea.sflag [#allocation6], 1
    %21 = vsyncpa %s20, 0
    %22 = vsyncpa [#allocation9], 0
    %s23 = scalar_lea.sflag [#allocation9], 1
    %24 = vsyncpa %s23, 0
    %25 = vsyncpa [#allocation12], 0
    %s26 = scalar_lea.sflag [#allocation12], 1
    %27 = vsyncpa %s26, 0
    %28 = vsyncpa [#allocation15], 0
    %29 = vsyncpa [#allocation18], 0
    %30 = vsyncpa [#allocation7], 0
    %s31 = scalar_lea.sflag [#allocation7], 1
    %32 = vsyncpa %s31, 0
    %33 = vsyncpa [#allocation21], 0
    %s34 = scalar_lea.sflag [#allocation21], 1
    %35 = vsyncpa %s34, 0
    loop: start=0, step=1, limit=4
    $region2: #{tpu_custom_call.1} parent=1 // loop_pre_header
      _
    $region3: #{tpu_custom_call.1} parent=1 // loop_header
      %s37 = sphi 0, %s41
      %p38 = scmp.ge.s32.totalorder %s37, 4
      %s44 = sphi 0, %s56
      %s45 = sphi 0, %s52
      %s46 = sphi 0, %s44
      %s47 = sphi 0, %s45
      %s48 = sphi 0, %s46
      %s49 = sphi 0, %s47
      %s61 = sphi 0, %s63
      %s64 = sphi 0, %s61
      %s65 = sphi 0, %s64
      %s81 = sphi 0, %s65
      %s87 = sphi 0, %s89
      %s90 = sphi 0, %s87
      %s91 = sphi 0, %s90
      %s107 = sphi 0, %s91
      %s113 = sphi 0, %s115
      %s116 = sphi 0, %s113
      %s117 = sphi 0, %s116
      %s133 = sphi 0, %s117
      %s141 = sphi 0, %s143
      %s144 = sphi 0, %s141
      %s145 = sphi 0, %s144
      %s161 = sphi 0, %s145
      %s165 = sphi 0, %s165
      %s167 = sphi 0, %s165
      %s168 = sphi 0, %s167
      %s182 = sphi 0, %s168
      %s186 = sphi 0, %s186
      %s188 = sphi 0, %s186
      %s189 = sphi 0, %s188
      %s203 = sphi 0, %s189
      %s207 = sphi 0, %s207
      %s209 = sphi 0, %s207
      %s210 = sphi 0, %s209
      %s224 = sphi 0, %s210
      %s228 = sphi 0, %s228
      %s230 = sphi 0, %s228
      %s231 = sphi 0, %s230
      %s245 = sphi 0, %s231
      %s249 = sphi 0, %s249
      %s251 = sphi 0, %s249
      %s252 = sphi 0, %s251
      %s266 = sphi 0, %s252
      %s270 = sphi 0, %s270
      %s272 = sphi 0, %s270
      %s273 = sphi 0, %s272
      %s287 = sphi 0, %s273
      %s291 = sphi 0, %s291
      %s293 = sphi 0, %s291
      %s294 = sphi 0, %s293
      %s308 = sphi 0, %s294
      %s312 = sphi 0, %s312
      %s314 = sphi 0, %s312
      %s315 = sphi 0, %s314
      %s329 = sphi 0, %s315
      %s337 = sphi 0, %s339
      %s340 = sphi 0, %s337
      %s341 = sphi 0, %s340
      %s357 = sphi 0, %s341
      %s365 = sphi 0, %s367
      %s368 = sphi 0, %s365
      %s369 = sphi 0, %s368
      %s385 = sphi 0, %s369
    $region4: #{tpu_custom_call.1} parent=1 // loop_header_branch
      %40 = sbr.rel (%p38) target = $region8
    $region5: #{tpu_custom_call.1} parent=1 // loop_body
      %s42 = ssub.s32 %s37, 1
      %s43 = ssub.s32 %s37, 2
      %s50 = sadd.s32 1, %s45
      %p51 = scmp.ge.s32.totalorder %s50, 1
      %s52 = scalar_select %p51, 0, %s50
      %s53 = sadd.s32 1, %s44
      %s54 = scalar_select %p51, %s53, %s44
      %p55 = scmp.ge.s32.totalorder %s54, 2
      %s56 = scalar_select %p55, 0, %s54
      %s57 = ssub.s32 %s44, %s56
      %s58 = ssub.s32 %s45, %s52
      %s59 = sor.u32 %s57, %s58
      %p60 = scmp.eq.s32.totalorder %s59, 0
      %s62 = sadd.s32 %s61, 1
      %s63 = scalar_select %p60, %s61, %s62
      %p66 = pneg %p60
      %p67 = scmp.eq.s32.totalorder %s37, 1
      %p68 = por %p66, %p67
      %p69 = scmp.ne.s32.totalorder %s61, %s64
      %p70 = scmp.eq.s32.totalorder %s37, 0
      %p71 = por %p69, %p70
      %p72 = scmp.ne.s32.totalorder %s61, %s64
      %p73 = scmp.eq.s32.totalorder %s42, 1
      %p74 = por %p72, %p73
      %p75 = scmp.ne.s32.totalorder %s64, %s65
      %p76 = scmp.eq.s32.totalorder %s42, 0
      %p77 = por %p75, %p76
      %p78 = scmp.ne.s32.totalorder %s64, %s65
      %p79 = scmp.eq.s32.totalorder %s43, 1
      %p80 = por %p78, %p79
      %p82 = scmp.ne.s32.totalorder %s65, %s81
      %p83 = scmp.eq.s32.totalorder %s43, 0
      %p84 = por %p82, %p83
      %s85 = ssub.s32 %s44, %s56
      %p86 = scmp.eq.s32.totalorder %s85, 0
      %s88 = sadd.s32 %s87, 1
      %s89 = scalar_select %p86, %s87, %s88
      %p92 = pneg %p86
      %p93 = scmp.eq.s32.totalorder %s37, 1
      %p94 = por %p92, %p93
      %p95 = scmp.ne.s32.totalorder %s87, %s90
      %p96 = scmp.eq.s32.totalorder %s37, 0
      %p97 = por %p95, %p96
      %p98 = scmp.ne.s32.totalorder %s87, %s90
      %p99 = scmp.eq.s32.totalorder %s42, 1
      %p100 = por %p98, %p99
      %p101 = scmp.ne.s32.totalorder %s90, %s91
      %p102 = scmp.eq.s32.totalorder %s42, 0
      %p103 = por %p101, %p102
      %p104 = scmp.ne.s32.totalorder %s90, %s91
      %p105 = scmp.eq.s32.totalorder %s43, 1
      %p106 = por %p104, %p105
      %p108 = scmp.ne.s32.totalorder %s91, %s107
      %p109 = scmp.eq.s32.totalorder %s43, 0
      %p110 = por %p108, %p109
      %s111 = ssub.s32 %s44, %s56
      %p112 = scmp.eq.s32.totalorder %s111, 0
      %s114 = sadd.s32 %s113, 1
      %s115 = scalar_select %p112, %s113, %s114
      %p118 = pneg %p112
      %p119 = scmp.eq.s32.totalorder %s37, 1
      %p120 = por %p118, %p119
      %p121 = scmp.ne.s32.totalorder %s113, %s116
      %p122 = scmp.eq.s32.totalorder %s37, 0
      %p123 = por %p121, %p122
      %p124 = scmp.ne.s32.totalorder %s113, %s116
      %p125 = scmp.eq.s32.totalorder %s42, 1
      %p126 = por %p124, %p125
      %p127 = scmp.ne.s32.totalorder %s116, %s117
      %p128 = scmp.eq.s32.totalorder %s42, 0
      %p129 = por %p127, %p128
      %p130 = scmp.ne.s32.totalorder %s116, %s117
      %p131 = scmp.eq.s32.totalorder %s43, 1
      %p132 = por %p130, %p131
      %p134 = scmp.ne.s32.totalorder %s117, %s133
      %p135 = scmp.eq.s32.totalorder %s43, 0
      %p136 = por %p134, %p135
      %s137 = ssub.s32 %s44, %s56
      %s138 = ssub.s32 %s45, %s52
      %s139 = sor.u32 %s137, %s138
      %p140 = scmp.eq.s32.totalorder %s139, 0
      %s142 = sadd.s32 %s141, 1
      %s143 = scalar_select %p140, %s141, %s142
      %p146 = pneg %p140
      %p147 = scmp.eq.s32.totalorder %s37, 1
      %p148 = por %p146, %p147
      %p149 = scmp.ne.s32.totalorder %s141, %s144
      %p150 = scmp.eq.s32.totalorder %s37, 0
      %p151 = por %p149, %p150
      %p152 = scmp.ne.s32.totalorder %s141, %s144
      %p153 = scmp.eq.s32.totalorder %s42, 1
      %p154 = por %p152, %p153
      %p155 = scmp.ne.s32.totalorder %s144, %s145
      %p156 = scmp.eq.s32.totalorder %s42, 0
      %p157 = por %p155, %p156
      %p158 = scmp.ne.s32.totalorder %s144, %s145
      %p159 = scmp.eq.s32.totalorder %s43, 1
      %p160 = por %p158, %p159
      %p162 = scmp.ne.s32.totalorder %s145, %s161
      %p163 = scmp.eq.s32.totalorder %s43, 0
      %p164 = por %p162, %p163
      %s166 = sadd.s32 %s165, 1
      %p169 = scmp.eq.s32.totalorder %s37, 1
      %p170 = scmp.ne.s32.totalorder %s165, %s167
      %p171 = scmp.eq.s32.totalorder %s37, 0
      %p172 = por %p170, %p171
      %p173 = scmp.ne.s32.totalorder %s165, %s167
      %p174 = scmp.eq.s32.totalorder %s42, 1
      %p175 = por %p173, %p174
      %p176 = scmp.ne.s32.totalorder %s167, %s168
      %p177 = scmp.eq.s32.totalorder %s42, 0
      %p178 = por %p176, %p177
      %p179 = scmp.ne.s32.totalorder %s167, %s168
      %p180 = scmp.eq.s32.totalorder %s43, 1
      %p181 = por %p179, %p180
      %p183 = scmp.ne.s32.totalorder %s168, %s182
      %p184 = scmp.eq.s32.totalorder %s43, 0
      %p185 = por %p183, %p184
      %s187 = sadd.s32 %s186, 1
      %p190 = scmp.eq.s32.totalorder %s37, 1
      %p191 = scmp.ne.s32.totalorder %s186, %s188
      %p192 = scmp.eq.s32.totalorder %s37, 0
      %p193 = por %p191, %p192
      %p194 = scmp.ne.s32.totalorder %s186, %s188
      %p195 = scmp.eq.s32.totalorder %s42, 1
      %p196 = por %p194, %p195
      %p197 = scmp.ne.s32.totalorder %s188, %s189
      %p198 = scmp.eq.s32.totalorder %s42, 0
      %p199 = por %p197, %p198
      %p200 = scmp.ne.s32.totalorder %s188, %s189
      %p201 = scmp.eq.s32.totalorder %s43, 1
      %p202 = por %p200, %p201
      %p204 = scmp.ne.s32.totalorder %s189, %s203
      %p205 = scmp.eq.s32.totalorder %s43, 0
      %p206 = por %p204, %p205
      %s208 = sadd.s32 %s207, 1
      %p211 = scmp.eq.s32.totalorder %s37, 1
      %p212 = scmp.ne.s32.totalorder %s207, %s209
      %p213 = scmp.eq.s32.totalorder %s37, 0
      %p214 = por %p212, %p213
      %p215 = scmp.ne.s32.totalorder %s207, %s209
      %p216 = scmp.eq.s32.totalorder %s42, 1
      %p217 = por %p215, %p216
      %p218 = scmp.ne.s32.totalorder %s209, %s210
      %p219 = scmp.eq.s32.totalorder %s42, 0
      %p220 = por %p218, %p219
      %p221 = scmp.ne.s32.totalorder %s209, %s210
      %p222 = scmp.eq.s32.totalorder %s43, 1
      %p223 = por %p221, %p222
      %p225 = scmp.ne.s32.totalorder %s210, %s224
      %p226 = scmp.eq.s32.totalorder %s43, 0
      %p227 = por %p225, %p226
      %s229 = sadd.s32 %s228, 1
      %p232 = scmp.eq.s32.totalorder %s37, 1
      %p233 = scmp.ne.s32.totalorder %s228, %s230
      %p234 = scmp.eq.s32.totalorder %s37, 0
      %p235 = por %p233, %p234
      %p236 = scmp.ne.s32.totalorder %s228, %s230
      %p237 = scmp.eq.s32.totalorder %s42, 1
      %p238 = por %p236, %p237
      %p239 = scmp.ne.s32.totalorder %s230, %s231
      %p240 = scmp.eq.s32.totalorder %s42, 0
      %p241 = por %p239, %p240
      %p242 = scmp.ne.s32.totalorder %s230, %s231
      %p243 = scmp.eq.s32.totalorder %s43, 1
      %p244 = por %p242, %p243
      %p246 = scmp.ne.s32.totalorder %s231, %s245
      %p247 = scmp.eq.s32.totalorder %s43, 0
      %p248 = por %p246, %p247
      %s250 = sadd.s32 %s249, 1
      %p253 = scmp.eq.s32.totalorder %s37, 1
      %p254 = scmp.ne.s32.totalorder %s249, %s251
      %p255 = scmp.eq.s32.totalorder %s37, 0
      %p256 = por %p254, %p255
      %p257 = scmp.ne.s32.totalorder %s249, %s251
      %p258 = scmp.eq.s32.totalorder %s42, 1
      %p259 = por %p257, %p258
      %p260 = scmp.ne.s32.totalorder %s251, %s252
      %p261 = scmp.eq.s32.totalorder %s42, 0
      %p262 = por %p260, %p261
      %p263 = scmp.ne.s32.totalorder %s251, %s252
      %p264 = scmp.eq.s32.totalorder %s43, 1
      %p265 = por %p263, %p264
      %p267 = scmp.ne.s32.totalorder %s252, %s266
      %p268 = scmp.eq.s32.totalorder %s43, 0
      %p269 = por %p267, %p268
      %s271 = sadd.s32 %s270, 1
      %p274 = scmp.eq.s32.totalorder %s37, 1
      %p275 = scmp.ne.s32.totalorder %s270, %s272
      %p276 = scmp.eq.s32.totalorder %s37, 0
      %p277 = por %p275, %p276
      %p278 = scmp.ne.s32.totalorder %s270, %s272
      %p279 = scmp.eq.s32.totalorder %s42, 1
      %p280 = por %p278, %p279
      %p281 = scmp.ne.s32.totalorder %s272, %s273
      %p282 = scmp.eq.s32.totalorder %s42, 0
      %p283 = por %p281, %p282
      %p284 = scmp.ne.s32.totalorder %s272, %s273
      %p285 = scmp.eq.s32.totalorder %s43, 1
      %p286 = por %p284, %p285
      %p288 = scmp.ne.s32.totalorder %s273, %s287
      %p289 = scmp.eq.s32.totalorder %s43, 0
      %p290 = por %p288, %p289
      %s292 = sadd.s32 %s291, 1
      %p295 = scmp.eq.s32.totalorder %s37, 1
      %p296 = scmp.ne.s32.totalorder %s291, %s293
      %p297 = scmp.eq.s32.totalorder %s37, 0
      %p298 = por %p296, %p297
      %p299 = scmp.ne.s32.totalorder %s291, %s293
      %p300 = scmp.eq.s32.totalorder %s42, 1
      %p301 = por %p299, %p300
      %p302 = scmp.ne.s32.totalorder %s293, %s294
      %p303 = scmp.eq.s32.totalorder %s42, 0
      %p304 = por %p302, %p303
      %p305 = scmp.ne.s32.totalorder %s293, %s294
      %p306 = scmp.eq.s32.totalorder %s43, 1
      %p307 = por %p305, %p306
      %p309 = scmp.ne.s32.totalorder %s294, %s308
      %p310 = scmp.eq.s32.totalorder %s43, 0
      %p311 = por %p309, %p310
      %s313 = sadd.s32 %s312, 1
      %p316 = scmp.eq.s32.totalorder %s37, 1
      %p317 = scmp.ne.s32.totalorder %s312, %s314
      %p318 = scmp.eq.s32.totalorder %s37, 0
      %p319 = por %p317, %p318
      %p320 = scmp.ne.s32.totalorder %s312, %s314
      %p321 = scmp.eq.s32.totalorder %s42, 1
      %p322 = por %p320, %p321
      %p323 = scmp.ne.s32.totalorder %s314, %s315
      %p324 = scmp.eq.s32.totalorder %s42, 0
      %p325 = por %p323, %p324
      %p326 = scmp.ne.s32.totalorder %s314, %s315
      %p327 = scmp.eq.s32.totalorder %s43, 1
      %p328 = por %p326, %p327
      %p330 = scmp.ne.s32.totalorder %s315, %s329
      %p331 = scmp.eq.s32.totalorder %s43, 0
      %p332 = por %p330, %p331
      %s333 = ssub.s32 %s44, %s56
      %s334 = ssub.s32 %s45, %s52
      %s335 = sor.u32 %s333, %s334
      %p336 = scmp.eq.s32.totalorder %s335, 0
      %s338 = sadd.s32 %s337, 1
      %s339 = scalar_select %p336, %s337, %s338
      %p342 = pneg %p336
      %p343 = scmp.eq.s32.totalorder %s37, 1
      %p344 = por %p342, %p343
      %p345 = scmp.ne.s32.totalorder %s337, %s340
      %p346 = scmp.eq.s32.totalorder %s37, 0
      %p347 = por %p345, %p346
      %p348 = scmp.ne.s32.totalorder %s337, %s340
      %p349 = scmp.eq.s32.totalorder %s42, 1
      %p350 = por %p348, %p349
      %p351 = scmp.ne.s32.totalorder %s340, %s341
      %p352 = scmp.eq.s32.totalorder %s42, 0
      %p353 = por %p351, %p352
      %p354 = scmp.ne.s32.totalorder %s340, %s341
      %p355 = scmp.eq.s32.totalorder %s43, 1
      %p356 = por %p354, %p355
      %p358 = scmp.ne.s32.totalorder %s341, %s357
      %p359 = scmp.eq.s32.totalorder %s43, 0
      %p360 = por %p358, %p359
      %s361 = ssub.s32 %s44, %s56
      %s362 = ssub.s32 %s45, %s52
      %s363 = sor.u32 %s361, %s362
      %p364 = scmp.eq.s32.totalorder %s363, 0
      %s366 = sadd.s32 %s365, 1
      %s367 = scalar_select %p364, %s365, %s366
      %p370 = pneg %p364
      %p371 = scmp.eq.s32.totalorder %s37, 1
      %p372 = por %p370, %p371
      %p373 = scmp.ne.s32.totalorder %s365, %s368
      %p374 = scmp.eq.s32.totalorder %s37, 0
      %p375 = por %p373, %p374
      %p376 = scmp.ne.s32.totalorder %s365, %s368
      %p377 = scmp.eq.s32.totalorder %s42, 1
      %p378 = por %p376, %p377
      %p379 = scmp.ne.s32.totalorder %s368, %s369
      %p380 = scmp.eq.s32.totalorder %s42, 0
      %p381 = por %p379, %p380
      %p382 = scmp.ne.s32.totalorder %s368, %s369
      %p383 = scmp.eq.s32.totalorder %s43, 1
      %p384 = por %p382, %p383
      %p386 = scmp.ne.s32.totalorder %s369, %s385
      %p387 = scmp.eq.s32.totalorder %s43, 0
      %p388 = por %p386, %p387
      %p389 = scmp.le.s32.totalorder 1, %s37
      %p390 = scmp.lt.s32.totalorder %s37, 3
      %p391 = pnand %p389, %p390
      %p392 = pneg %p391
      // Predicated region
      $region9: #{tpu_custom_call.1} parent=5 // pred_check
        _
      $region10: #{tpu_custom_call.1} parent=5 // pred_check_branch
        %394 = sbr.rel (%p391) target = $region12
      $region11: #{tpu_custom_call.1} parent=5 // pred_region
        %s395 = ssub.s32 %s37, 1
        // Predicated region
        $region13: #{tpu_custom_call.1} parent=11 // pred_check
          %p396 = pneg %p178
        $region14: #{tpu_custom_call.1} parent=11 // pred_check_branch
          %398 = sbr.rel (%p396) target = $region16
        $region15: #{tpu_custom_call.1} parent=11 // pred_region
          %400 = vsyncadd [#allocation12], 0
          %s401 = sshll.u32 %s4, 4
          %s402 = int_to_ptr.hbm [resolvable:$true] %s401
          %s403 = sshll.u32 [#allocation13], 4
          %s404 = int_to_ptr.vmem [resolvable:$true] %s403
          %409 = dma.hbm_to_vmem [thread:$0]  %s402, 256, %s404, [#allocation12], 64, 64, 4
        $region16: #{tpu_custom_call.1} parent=11 // pred_fallthru
          _
        // Predicated region
        $region17: #{tpu_custom_call.1} parent=11 // pred_check
          %p410 = pneg %p199
        $region18: #{tpu_custom_call.1} parent=11 // pred_check_branch
          %412 = sbr.rel (%p410) target = $region20
        $region19: #{tpu_custom_call.1} parent=11 // pred_region
          _
        $region20: #{tpu_custom_call.1} parent=11 // pred_fallthru
          _
        // Predicated region
        $region21: #{tpu_custom_call.1} parent=11 // pred_check
          %p413 = pneg %p220
        $region22: #{tpu_custom_call.1} parent=11 // pred_check_branch
          %415 = sbr.rel (%p413) target = $region24
        $region23: #{tpu_custom_call.1} parent=11 // pred_region
          %417 = vsyncadd [#allocation15], 0
          %s418 = sshll.u32 %s6, 4
          %s419 = int_to_ptr.hbm [resolvable:$true] %s418
          %s420 = sshll.u32 [#allocation14], 4
          %s421 = int_to_ptr.vmem [resolvable:$true] %s420
          %426 = dma.hbm_to_vmem [thread:$0]  %s419, 256, %s421, [#allocation15], 64, 64, 4
        $region24: #{tpu_custom_call.1} parent=11 // pred_fallthru
          _
        // Predicated region
        $region25: #{tpu_custom_call.1} parent=11 // pred_check
          %p427 = pneg %p241
        $region26: #{tpu_custom_call.1} parent=11 // pred_check_branch
          %429 = sbr.rel (%p427) target = $region28
        $region27: #{tpu_custom_call.1} parent=11 // pred_region
          _
        $region28: #{tpu_custom_call.1} parent=11 // pred_fallthru
          _
        // Predicated region
        $region29: #{tpu_custom_call.1} parent=11 // pred_check
          %p430 = pneg %p262
        $region30: #{tpu_custom_call.1} parent=11 // pred_check_branch
          %432 = sbr.rel (%p430) target = $region32
        $region31: #{tpu_custom_call.1} parent=11 // pred_region
          %434 = vsyncadd [#allocation15], 0
          %s435 = sshll.u32 %s8, 4
          %s436 = int_to_ptr.hbm [resolvable:$true] %s435
          %s437 = sshll.u32 [#allocation16], 4
          %s438 = int_to_ptr.vmem [resolvable:$true] %s437
          %443 = dma.hbm_to_vmem [thread:$0]  %s436, 256, %s438, [#allocation15], 64, 64, 4
        $region32: #{tpu_custom_call.1} parent=11 // pred_fallthru
          _
        // Predicated region
        $region33: #{tpu_custom_call.1} parent=11 // pred_check
          %p444 = pneg %p283
        $region34: #{tpu_custom_call.1} parent=11 // pred_check_branch
          %446 = sbr.rel (%p444) target = $region36
        $region35: #{tpu_custom_call.1} parent=11 // pred_region
          _
        $region36: #{tpu_custom_call.1} parent=11 // pred_fallthru
          _
        // Predicated region
        $region37: #{tpu_custom_call.1} parent=11 // pred_check
          %p447 = pneg %p304
        $region38: #{tpu_custom_call.1} parent=11 // pred_check_branch
          %449 = sbr.rel (%p447) target = $region40
        $region39: #{tpu_custom_call.1} parent=11 // pred_region
          %451 = vsyncadd [#allocation18], 0
          %s452 = sshll.u32 %s10, 4
          %s453 = int_to_ptr.hbm [resolvable:$true] %s452
          %s454 = sshll.u32 [#allocation17], 4
          %s455 = int_to_ptr.vmem [resolvable:$true] %s454
          %460 = dma.hbm_to_vmem [thread:$0]  %s453, 256, %s455, [#allocation18], 64, 64, 4
        $region40: #{tpu_custom_call.1} parent=11 // pred_fallthru
          _
        // Predicated region
        $region41: #{tpu_custom_call.1} parent=11 // pred_check
          %p461 = pneg %p325
        $region42: #{tpu_custom_call.1} parent=11 // pred_check_branch
          %463 = sbr.rel (%p461) target = $region44
        $region43: #{tpu_custom_call.1} parent=11 // pred_region
          _
        $region44: #{tpu_custom_call.1} parent=11 // pred_fallthru
          _
      $region12: #{tpu_custom_call.1} parent=5 // pred_fallthru
        _
      %p464 = scmp.lt.s32.totalorder %s37, 2
      // Predicated region
      $region45: #{tpu_custom_call.1} parent=5 // pred_check
        %p465 = pneg %p464
      $region46: #{tpu_custom_call.1} parent=5 // pred_check_branch
        %467 = sbr.rel (%p465) target = $region48
      $region47: #{tpu_custom_call.1} parent=5 // pred_region
        // Predicated region
        $region49: #{tpu_custom_call.1} parent=47 // pred_check
          %p468 = pneg %p71
        $region50: #{tpu_custom_call.1} parent=47 // pred_check_branch
          %470 = sbr.rel (%p468) target = $region52
        $region51: #{tpu_custom_call.1} parent=47 // pred_region
          %s471 = sand.u32 %s61, 1
          %s472 = scalar_lea.sflag [#allocation6], %s471
          %s473 = sand.u32 %s61, 1
          %s474 = smul.addr %s473, 4
          %s475 = scalar_lea.vmem [#allocation5], %s474
          %477 = vsyncadd %s472, 0
          %s478 = sadd.s32 %s45, %s44
          %s479 = smul.addr %s478, 4
          %s480 = scalar_lea.hbm %s0, %s479
          %s482 = sshll.u32 %s480, 4
          %s483 = int_to_ptr.hbm [resolvable:$true] %s482
          %s484 = sshll.u32 %s475, 4
          %s485 = int_to_ptr.vmem [resolvable:$true] %s484
          %487 = dma.hbm_to_vmem [thread:$0]  %s483, 64, %s485, %s472
        $region52: #{tpu_custom_call.1} parent=47 // pred_fallthru
          _
        // Predicated region
        $region53: #{tpu_custom_call.1} parent=47 // pred_check
          %p488 = pneg %p97
        $region54: #{tpu_custom_call.1} parent=47 // pred_check_branch
          %490 = sbr.rel (%p488) target = $region56
        $region55: #{tpu_custom_call.1} parent=47 // pred_region
          %s491 = sand.u32 %s37, 1
          %s492 = scalar_lea.sflag [#allocation9], %s491
          %s493 = sand.u32 %s87, 1
          %s494 = smul.addr %s493, 4
          %s495 = scalar_lea.vmem [#allocation8], %s494
          %497 = vsyncadd %s492, 0
          %s498 = smul.addr %s44, 4
          %s499 = scalar_lea.hbm %s1, %s498
          %s501 = sshll.u32 %s499, 4
          %s502 = int_to_ptr.hbm [resolvable:$true] %s501
          %s503 = sshll.u32 %s495, 4
          %s504 = int_to_ptr.vmem [resolvable:$true] %s503
          %506 = dma.hbm_to_vmem [thread:$0]  %s502, 64, %s504, %s492
        $region56: #{tpu_custom_call.1} parent=47 // pred_fallthru
          _
        // Predicated region
        $region57: #{tpu_custom_call.1} parent=47 // pred_check
          %p507 = pneg %p123
        $region58: #{tpu_custom_call.1} parent=47 // pred_check_branch
          %509 = sbr.rel (%p507) target = $region60
        $region59: #{tpu_custom_call.1} parent=47 // pred_region
          %s510 = sand.u32 %s37, 1
          %s511 = scalar_lea.sflag [#allocation9], %s510
          %s512 = sand.u32 %s113, 1
          %s513 = smul.addr %s512, 4
          %s514 = scalar_lea.vmem [#allocation10], %s513
          %516 = vsyncadd %s511, 0
          %s517 = smul.addr %s44, 4
          %s518 = scalar_lea.hbm %s2, %s517
          %s520 = sshll.u32 %s518, 4
          %s521 = int_to_ptr.hbm [resolvable:$true] %s520
          %s522 = sshll.u32 %s514, 4
          %s523 = int_to_ptr.vmem [resolvable:$true] %s522
          %525 = dma.hbm_to_vmem [thread:$0]  %s521, 64, %s523, %s511
        $region60: #{tpu_custom_call.1} parent=47 // pred_fallthru
          _
        // Predicated region
        $region61: #{tpu_custom_call.1} parent=47 // pred_check
          %p526 = pneg %p151
        $region62: #{tpu_custom_call.1} parent=47 // pred_check_branch
          %528 = sbr.rel (%p526) target = $region64
        $region63: #{tpu_custom_call.1} parent=47 // pred_region
          %s529 = sand.u32 %s37, 1
          %s530 = scalar_lea.sflag [#allocation12], %s529
          %s531 = sand.u32 %s141, 1
          %s532 = smul.addr %s531, 2
          %s533 = scalar_lea.vmem [#allocation11], %s532
          %535 = vsyncadd %s530, 0
          %s536 = sadd.s32 %s45, %s44
          %s537 = smul.addr %s536, 2
          %s538 = scalar_lea.hbm %s3, %s537
          %s540 = sshll.u32 %s538, 4
          %s541 = int_to_ptr.hbm [resolvable:$true] %s540
          %s542 = sshll.u32 %s533, 4
          %s543 = int_to_ptr.vmem [resolvable:$true] %s542
          %545 = dma.hbm_to_vmem [thread:$0]  %s541, 32, %s543, %s530
        $region64: #{tpu_custom_call.1} parent=47 // pred_fallthru
          _
      $region48: #{tpu_custom_call.1} parent=5 // pred_fallthru
        _
      %p546 = scmp.le.s32.totalorder 1, %s37
      %p547 = scmp.lt.s32.totalorder %s37, 3
      %p548 = pnand %p546, %p547
      %p549 = pneg %p548
      // Predicated region
      $region65: #{tpu_custom_call.1} parent=5 // pred_check
        _
      $region66: #{tpu_custom_call.1} parent=5 // pred_check_branch
        %551 = sbr.rel (%p548) target = $region68
      $region67: #{tpu_custom_call.1} parent=5 // pred_region
        %s552 = ssub.s32 %s37, 1
        %s553 = sand.u32 %s64, 1
        %s554 = scalar_lea.sflag [#allocation6], %s553
        %s555 = sand.u32 %s64, 1
        %s556 = smul.addr %s555, 4
        %s557 = scalar_lea.vmem [#allocation5], %s556
        // Predicated region
        $region69: #{tpu_custom_call.1} parent=67 // pred_check
          %p558 = pneg %p77
        $region70: #{tpu_custom_call.1} parent=67 // pred_check_branch
          %560 = sbr.rel (%p558) target = $region72
        $region71: #{tpu_custom_call.1} parent=67 // pred_region
          %562 = dma.done %s554, 64
        $region72: #{tpu_custom_call.1} parent=67 // pred_fallthru
          _
        %s563 = sand.u32 %s42, 1
        %s564 = scalar_lea.sflag [#allocation9], %s563
        %s565 = sand.u32 %s90, 1
        %s566 = smul.addr %s565, 4
        %s567 = scalar_lea.vmem [#allocation8], %s566
        // Predicated region
        $region73: #{tpu_custom_call.1} parent=67 // pred_check
          %p568 = pneg %p103
        $region74: #{tpu_custom_call.1} parent=67 // pred_check_branch
          %570 = sbr.rel (%p568) target = $region76
        $region75: #{tpu_custom_call.1} parent=67 // pred_region
          %572 = dma.done %s564, 64
        $region76: #{tpu_custom_call.1} parent=67 // pred_fallthru
          _
        %s573 = sand.u32 %s42, 1
        %s574 = scalar_lea.sflag [#allocation9], %s573
        %s575 = sand.u32 %s116, 1
        %s576 = smul.addr %s575, 4
        %s577 = scalar_lea.vmem [#allocation10], %s576
        // Predicated region
        $region77: #{tpu_custom_call.1} parent=67 // pred_check
          %p578 = pneg %p129
        $region78: #{tpu_custom_call.1} parent=67 // pred_check_branch
          %580 = sbr.rel (%p578) target = $region80
        $region79: #{tpu_custom_call.1} parent=67 // pred_region
          %582 = dma.done %s574, 64
        $region80: #{tpu_custom_call.1} parent=67 // pred_fallthru
          _
        %s583 = sand.u32 %s42, 1
        %s584 = scalar_lea.sflag [#allocation12], %s583
        %s585 = sand.u32 %s144, 1
        %s586 = smul.addr %s585, 2
        %s587 = scalar_lea.vmem [#allocation11], %s586
        // Predicated region
        $region81: #{tpu_custom_call.1} parent=67 // pred_check
          %p588 = pneg %p157
        $region82: #{tpu_custom_call.1} parent=67 // pred_check_branch
          %590 = sbr.rel (%p588) target = $region84
        $region83: #{tpu_custom_call.1} parent=67 // pred_region
          %592 = dma.done %s584, 32
        $region84: #{tpu_custom_call.1} parent=67 // pred_fallthru
          _
        // Predicated region
        $region85: #{tpu_custom_call.1} parent=67 // pred_check
          %p593 = pneg %p178
        $region86: #{tpu_custom_call.1} parent=67 // pred_check_branch
          %595 = sbr.rel (%p593) target = $region88
        $region87: #{tpu_custom_call.1} parent=67 // pred_region
          %597 = dma.done [#allocation12], 256
        $region88: #{tpu_custom_call.1} parent=67 // pred_fallthru
          _
        // Predicated region
        $region89: #{tpu_custom_call.1} parent=67 // pred_check
          %p598 = pneg %p220
        $region90: #{tpu_custom_call.1} parent=67 // pred_check_branch
          %600 = sbr.rel (%p598) target = $region92
        $region91: #{tpu_custom_call.1} parent=67 // pred_region
          %602 = dma.done [#allocation15], 256
        $region92: #{tpu_custom_call.1} parent=67 // pred_fallthru
          _
        // Predicated region
        $region93: #{tpu_custom_call.1} parent=67 // pred_check
          %p603 = pneg %p262
        $region94: #{tpu_custom_call.1} parent=67 // pred_check_branch
          %605 = sbr.rel (%p603) target = $region96
        $region95: #{tpu_custom_call.1} parent=67 // pred_region
          %607 = dma.done [#allocation15], 256
        $region96: #{tpu_custom_call.1} parent=67 // pred_fallthru
          _
        // Predicated region
        $region97: #{tpu_custom_call.1} parent=67 // pred_check
          %p608 = pneg %p304
        $region98: #{tpu_custom_call.1} parent=67 // pred_check_branch
          %610 = sbr.rel (%p608) target = $region100
        $region99: #{tpu_custom_call.1} parent=67 // pred_region
          %612 = dma.done [#allocation18], 256
        $region100: #{tpu_custom_call.1} parent=67 // pred_fallthru
          _
        %s613 = sand.u32 %s64, 1
        %s614 = scalar_lea.sflag [#allocation6], %s613
        %s615 = sand.u32 %s64, 1
        %s616 = smul.addr %s615, 4
        %s617 = scalar_lea.vmem [#allocation5], %s616
        %p618 = pneg %p77
        %p619 = pneg %p74
        %s620 = sand.u32 %s42, 1
        %s621 = scalar_lea.sflag [#allocation9], %s620
        %s622 = sand.u32 %s90, 1
        %s623 = smul.addr %s622, 4
        %s624 = scalar_lea.vmem [#allocation8], %s623
        %p625 = pneg %p103
        %p626 = pneg %p100
        %s627 = sand.u32 %s42, 1
        %s628 = scalar_lea.sflag [#allocation9], %s627
        %s629 = sand.u32 %s116, 1
        %s630 = smul.addr %s629, 4
        %s631 = scalar_lea.vmem [#allocation10], %s630
        %p632 = pneg %p129
        %p633 = pneg %p126
        %s634 = sand.u32 %s42, 1
        %s635 = scalar_lea.sflag [#allocation12], %s634
        %s636 = sand.u32 %s144, 1
        %s637 = smul.addr %s636, 2
        %s638 = scalar_lea.vmem [#allocation11], %s637
        %p639 = pneg %p157
        %p640 = pneg %p154
        %p641 = pneg %p178
        %p642 = pneg %p175
        %p643 = pneg %p199
        %p644 = pneg %p196
        %p645 = pneg %p220
        %p646 = pneg %p217
        %p647 = pneg %p241
        %p648 = pneg %p238
        %p649 = pneg %p262
        %p650 = pneg %p259
        %p651 = pneg %p283
        %p652 = pneg %p280
        %p653 = pneg %p304
        %p654 = pneg %p301
        %p655 = pneg %p325
        %p656 = pneg %p322
        %p657 = pneg %p353
        %p658 = pneg %p350
        %s659 = sand.u32 %s340, 1
        %s660 = scalar_lea.sflag [#allocation7], %s659
        %s661 = sand.u32 %s340, 1
        %s662 = smul.addr %s661, 8
        %s663 = scalar_lea.vmem [#allocation19], %s662
        %p664 = pneg %p381
        %p665 = pneg %p378
        %s666 = sand.u32 %s368, 1
        %s667 = scalar_lea.sflag [#allocation21], %s666
        %s668 = sand.u32 %s368, 1
        %s669 = smul.addr %s668, 16
        %s670 = scalar_lea.vmem [#allocation20], %s669
        %p672 = scmp.eq.s32.totalorder %s47, 0
        // Predicated region
        $region101: #{tpu_custom_call.1} parent=67 // pred_check
          %p673 = pneg %p672
        $region102: #{tpu_custom_call.1} parent=67 // pred_check_branch
          %675 = sbr.rel (%p673) target = $region104
        $region103: #{tpu_custom_call.1} parent=67 // pred_region
          %v676 = vld [vmem:[%s567] sm:$0xf]
          %v677 = vld [vmem:[#allocation14] sm:$0xf]
          %v678 = vld [vmem:[#allocation14 + $0x4] sm:$0xf]
          %v679 = vld [vmem:[#allocation14 + $0x8] sm:$0xf]
          %v680 = vld [vmem:[#allocation14 + $0xc] sm:$0xf]
          %v681 = vld [vmem:[%s7] sm:$0x1]
          %v683 = vperm.slane %v681, 0
          %v689 = vunpack.c.l.b16 %v677
          %v690 = vunpack.c.l.b16 %v678
          %v691 = vunpack.c.l.b16 %v679
          %v692 = vunpack.c.l.b16 %v680
          %v693 = vpack.c.b16 %v690, %v689
          %v694 = vpack.c.b16 %v692, %v691
          %vm697 = vcmask 261120
          %v699 = vsel %vm697, %v676, 0
          %701 = vmatpush.bf16.msra.mxu0 0
          %702 = vmatpush.bf16.msra.mxu0 0
          %703 = vmatpush.bf16.msra.mxu0 0
          %704 = vmatpush.bf16.msra.mxu0 0
          %705 = vmatpush.bf16.msra.mxu0 0
          %706 = vmatpush.bf16.msra.mxu0 0
          %707 = vmatpush.bf16.msra.mxu0 %v694
          %708 = vmatpush.bf16.msra.mxu0 %v693
          %709 = vmatmul.bf16.gmra.mxu0 %v699
          %v710 = vpop.f32.mrf.mxu0
          %v711 = vadd.f32 %v683, %v710
          %v712 = vpop.f32.mrf.mxu0
          %713 = vdwg.mxu0
          %v714 = vld [vmem:[%s577] sm:$0xf]
          %v715 = vld [vmem:[#allocation16] sm:$0xf]
          %v716 = vld [vmem:[#allocation16 + $0x4] sm:$0xf]
          %v717 = vld [vmem:[#allocation16 + $0x8] sm:$0xf]
          %v718 = vld [vmem:[#allocation16 + $0xc] sm:$0xf]
          %v719 = vld [vmem:[%s9] sm:$0x1]
          %v721 = vperm.slane %v719, 0
          %v727 = vunpack.c.l.b16 %v715
          %v728 = vunpack.c.l.b16 %v716
          %v729 = vunpack.c.l.b16 %v717
          %v730 = vunpack.c.l.b16 %v718
          %v731 = vpack.c.b16 %v728, %v727
          %v732 = vpack.c.b16 %v730, %v729
          %v736 = vsel %vm697, %v714, 0
          %738 = vmatpush.bf16.msra.mxu0 0
          %739 = vmatpush.bf16.msra.mxu0 0
          %740 = vmatpush.bf16.msra.mxu0 0
          %741 = vmatpush.bf16.msra.mxu0 0
          %742 = vmatpush.bf16.msra.mxu0 0
          %743 = vmatpush.bf16.msra.mxu0 0
          %744 = vmatpush.bf16.msra.mxu0 %v732
          %745 = vmatpush.bf16.msra.mxu0 %v731
          %746 = vmatmul.bf16.gmra.mxu0 %v736
          %v747 = vpop.f32.mrf.mxu0
          %v748 = vadd.f32 %v721, %v747
          %v749 = vpop.f32.mrf.mxu0
          %750 = vdwg.mxu0
          %v751 = vpack.c.bf16 %v711, %v711
          %vm752 = vcmask 257024
          %753 = vst.msk [vmem:[#allocation2] sm:$0xf] %vm752, %v751
          %v754 = vpack.c.bf16 %v748, %v748
          %755 = vst.msk [vmem:[#allocation3] sm:$0xf] %vm752, %v754
        $region104: #{tpu_custom_call.1} parent=67 // pred_fallthru
          _
        %v756 = vld [vmem:[%s557] sm:$0xf]
        %v757 = vld [vmem:[#allocation13] sm:$0xf]
        %v758 = vld [vmem:[#allocation13 + $0x4] sm:$0xf]
        %v759 = vld [vmem:[#allocation13 + $0x8] sm:$0xf]
        %v760 = vld [vmem:[#allocation13 + $0xc] sm:$0xf]
        %v761 = vld [vmem:[%s5] sm:$0x1]
        %v763 = vperm.slane %v761, 0
        %v769 = vunpack.c.l.b16 %v757
        %v770 = vunpack.c.l.b16 %v758
        %v771 = vunpack.c.l.b16 %v759
        %v772 = vunpack.c.l.b16 %v760
        %v773 = vpack.c.b16 %v770, %v769
        %v774 = vpack.c.b16 %v772, %v771
        %vm777 = vcmask 261120
        %v779 = vsel %vm777, %v756, 0
        %781 = vmatpush.bf16.msra.mxu0 0
        %782 = vmatpush.bf16.msra.mxu0 0
        %783 = vmatpush.bf16.msra.mxu0 0
        %784 = vmatpush.bf16.msra.mxu0 0
        %785 = vmatpush.bf16.msra.mxu0 0
        %786 = vmatpush.bf16.msra.mxu0 0
        %787 = vmatpush.bf16.msra.mxu0 %v774
        %788 = vmatpush.bf16.msra.mxu0 %v773
        %789 = vmatmul.bf16.gmra.mxu0 %v779
        %v790 = vpop.f32.mrf.mxu0
        %v791 = vadd.f32 %v763, %v790
        %v792 = vpop.f32.mrf.mxu0
        %793 = vdwg.mxu0
        %v794 = vld [vmem:[%s587] sm:$0x3]
        %v795 = vunpack.c.0.s8 %v794
        %vm796 = vcmp.eq.s32.totalorder %v795, 0
        %v797 = vsel %vm796, -1e+09, 0.0
        %v798 = vld [vmem:[#allocation2] sm:$0xf]
        %v799 = vld [vmem:[#allocation3] sm:$0xf]
        %v800 = vpack.c.bf16 %v791, %v791
        %vm801 = vcmask 64512
        %v803 = vsel %vm801, %v800, 0
        %v806 = vsel %vm801, %v798, 0
        %808 = vmatpush.bf16.xpose.msra.mxu0 0
        %809 = vmatpush.bf16.xpose.msra.mxu0 0
        %810 = vmatpush.bf16.xpose.msra.mxu0 0
        %811 = vmatpush.bf16.xpose.msra.mxu0 0
        %812 = vmatpush.bf16.xpose.msra.mxu0 0
        %813 = vmatpush.bf16.xpose.msra.mxu0 0
        %814 = vmatpush.bf16.xpose.msra.mxu0 0
        %815 = vmatpush.bf16.xpose.msra.mxu0 %v806
        %816 = vmatmul.bf16.gmra.mxu0 %v803
        %v817 = vpop.f32.mrf.mxu0
        %v818 = vadd.f32 %v797, %v817
        %v819 = vpop.f32.mrf.mxu0
        %820 = vdwg.mxu0
        %v821 = vsel %vm801, %v818, -inf
        %822 = vmax.xlane.f32.xlu0 %v821
        %v823 = vpop.xlane.xlu0 %822
        %v824 = vsub.f32 %v818, %v823
        %v825 = vmul.f32 %v824, 1.442695
        %v826 = vpow.pop %v825
        %v827 = vsel %vm801, %v826, 0.0
        %828 = vadd.xlane.f32.xlu0 %v827
        %v829 = vpop.xlane.xlu0 %828
        %v830 = vrcp.pop %v829
        %v831 = vmul.f32 %v826, %v830
        %v832 = vpack.c.bf16 %v831, %v831
        %vm833 = vcmask 60416
        %834 = vst.msk [vmem:[%s670] sm:$0xf] %vm833, %v832
        %v836 = vsel %vm801, %v832, 0
        %vm838 = vcmask 1043456
        %v840 = vsel %vm838, %v799, 0
        %842 = vmatpush.bf16.msra.mxu0 0
        %843 = vmatpush.bf16.msra.mxu0 0
        %844 = vmatpush.bf16.msra.mxu0 0
        %845 = vmatpush.bf16.msra.mxu0 0
        %846 = vmatpush.bf16.msra.mxu0 0
        %847 = vmatpush.bf16.msra.mxu0 0
        %848 = vmatpush.bf16.msra.mxu0 0
        %849 = vmatpush.bf16.msra.mxu0 %v840
        %850 = vmatmul.bf16.gmra.mxu0 %v836
        %v851 = vpop.f32.mrf.mxu0
        %v852 = vadd.f32 0.0, %v851
        %v853 = vpop.f32.mrf.mxu0
        %854 = vdwg.mxu0
        %855 = vst.msk [vmem:[#allocation4] sm:$0xff] %vm801, %v852
        %857 = vrot.lane.b32.xlu0 %v800, 120
        %v858 = vpop.permute.xlu0 %857
        %v860 = vunpack.c.l.b16 %v798
        %v861 = vpack.c.b16 %v860, %v860
        %862 = vrot.lane.b32.xlu0 %v861, 120
        %v863 = vpop.permute.xlu0 %862
        %v865 = vsel %vm801, %v858, 0
        %v868 = vsel %vm801, %v863, 0
        %870 = vmatpush.bf16.xpose.msra.mxu0 0
        %871 = vmatpush.bf16.xpose.msra.mxu0 0
        %872 = vmatpush.bf16.xpose.msra.mxu0 0
        %873 = vmatpush.bf16.xpose.msra.mxu0 0
        %874 = vmatpush.bf16.xpose.msra.mxu0 0
        %875 = vmatpush.bf16.xpose.msra.mxu0 0
        %876 = vmatpush.bf16.xpose.msra.mxu0 0
        %877 = vmatpush.bf16.xpose.msra.mxu0 %v868
        %878 = vmatmul.bf16.gmra.mxu0 %v865
        %v879 = vpop.f32.mrf.mxu0
        %v880 = vadd.f32 %v797, %v879
        %v881 = vpop.f32.mrf.mxu0
        %882 = vdwg.mxu0
        %v883 = vsel %vm801, %v880, -inf
        %884 = vmax.xlane.f32.xlu0 %v883
        %v885 = vpop.xlane.xlu0 %884
        %v886 = vsub.f32 %v880, %v885
        %v887 = vmul.f32 %v886, 1.442695
        %v888 = vpow.pop %v887
        %v889 = vsel %vm801, %v888, 0.0
        %890 = vadd.xlane.f32.xlu0 %v889
        %v891 = vpop.xlane.xlu0 %890
        %v892 = vrcp.pop %v891
        %v893 = vmul.f32 %v888, %v892
        %v894 = vpack.c.bf16 %v893, %v893
        %s895 = scalar_lea.vmem %s670, 4 [#allocation20]
        %896 = vst.msk [vmem:[%s895] sm:$0xf] %vm833, %v894
        %v898 = vunpack.c.l.b16 %v799
        %v899 = vpack.c.b16 %v898, %v898
        %900 = vrot.lane.b32.xlu0 %v899, 120
        %v901 = vpop.permute.xlu0 %900
        %v903 = vsel %vm801, %v894, 0
        %v906 = vsel %vm838, %v901, 0
        %908 = vmatpush.bf16.msra.mxu0 0
        %909 = vmatpush.bf16.msra.mxu0 0
        %910 = vmatpush.bf16.msra.mxu0 0
        %911 = vmatpush.bf16.msra.mxu0 0
        %912 = vmatpush.bf16.msra.mxu0 0
        %913 = vmatpush.bf16.msra.mxu0 0
        %914 = vmatpush.bf16.msra.mxu0 0
        %915 = vmatpush.bf16.msra.mxu0 %v906
        %916 = vmatmul.bf16.gmra.mxu0 %v903
        %v917 = vpop.f32.mrf.mxu0
        %v918 = vadd.f32 0.0, %v917
        %v919 = vpop.f32.mrf.mxu0
        %920 = vdwg.mxu0
        %922 = vrot.lane.b32.xlu0 %v918, 8
        %v923 = vpop.permute.xlu0 %922
        %vm925 = vcmask 130112
        %926 = vst.msk [vmem:[#allocation4] sm:$0xff] %vm925, %v923
        %927 = vrot.lane.b32.xlu0 %v800, 112
        %v928 = vpop.permute.xlu0 %927
        %929 = vrot.lane.b32.xlu0 %v861, 112
        %v930 = vpop.permute.xlu0 %929
        %v932 = vsel %vm801, %v928, 0
        %v935 = vsel %vm801, %v930, 0
        %937 = vmatpush.bf16.xpose.msra.mxu0 0
        %938 = vmatpush.bf16.xpose.msra.mxu0 0
        %939 = vmatpush.bf16.xpose.msra.mxu0 0
        %940 = vmatpush.bf16.xpose.msra.mxu0 0
        %941 = vmatpush.bf16.xpose.msra.mxu0 0
        %942 = vmatpush.bf16.xpose.msra.mxu0 0
        %943 = vmatpush.bf16.xpose.msra.mxu0 0
        %944 = vmatpush.bf16.xpose.msra.mxu0 %v935
        %945 = vmatmul.bf16.gmra.mxu0 %v932
        %v946 = vpop.f32.mrf.mxu0
        %v947 = vadd.f32 %v797, %v946
        %v948 = vpop.f32.mrf.mxu0
        %949 = vdwg.mxu0
        %v950 = vsel %vm801, %v947, -inf
        %951 = vmax.xlane.f32.xlu0 %v950
        %v952 = vpop.xlane.xlu0 %951
        %v953 = vsub.f32 %v947, %v952
        %v954 = vmul.f32 %v953, 1.442695
        %v955 = vpow.pop %v954
        %v956 = vsel %vm801, %v955, 0.0
        %957 = vadd.xlane.f32.xlu0 %v956
        %v958 = vpop.xlane.xlu0 %957
        %v959 = vrcp.pop %v958
        %v960 = vmul.f32 %v955, %v959
        %v961 = vpack.c.bf16 %v960, %v960
        %s962 = scalar_lea.vmem %s670, 8 [#allocation20]
        %963 = vst.msk [vmem:[%s962] sm:$0xf] %vm833, %v961
        %964 = vrot.lane.b32.xlu0 %v899, 112
        %v965 = vpop.permute.xlu0 %964
        %v967 = vsel %vm801, %v961, 0
        %v970 = vsel %vm838, %v965, 0
        %972 = vmatpush.bf16.msra.mxu0 0
        %973 = vmatpush.bf16.msra.mxu0 0
        %974 = vmatpush.bf16.msra.mxu0 0
        %975 = vmatpush.bf16.msra.mxu0 0
        %976 = vmatpush.bf16.msra.mxu0 0
        %977 = vmatpush.bf16.msra.mxu0 0
        %978 = vmatpush.bf16.msra.mxu0 0
        %979 = vmatpush.bf16.msra.mxu0 %v970
        %980 = vmatmul.bf16.gmra.mxu0 %v967
        %v981 = vpop.f32.mrf.mxu0
        %v982 = vadd.f32 0.0, %v981
        %v983 = vpop.f32.mrf.mxu0
        %984 = vdwg.mxu0
        %986 = vrot.lane.b32.xlu0 %v982, 16
        %v987 = vpop.permute.xlu0 %986
        %vm989 = vcmask 195712
        %990 = vst.msk [vmem:[#allocation4] sm:$0xff] %vm989, %v987
        %991 = vrot.lane.b32.xlu0 %v800, 104
        %v992 = vpop.permute.xlu0 %991
        %993 = vrot.lane.b32.xlu0 %v861, 104
        %v994 = vpop.permute.xlu0 %993
        %v996 = vsel %vm801, %v992, 0
        %v999 = vsel %vm801, %v994, 0
        %1001 = vmatpush.bf16.xpose.msra.mxu0 0
        %1002 = vmatpush.bf16.xpose.msra.mxu0 0
        %1003 = vmatpush.bf16.xpose.msra.mxu0 0
        %1004 = vmatpush.bf16.xpose.msra.mxu0 0
        %1005 = vmatpush.bf16.xpose.msra.mxu0 0
        %1006 = vmatpush.bf16.xpose.msra.mxu0 0
        %1007 = vmatpush.bf16.xpose.msra.mxu0 0
        %1008 = vmatpush.bf16.xpose.msra.mxu0 %v999
        %1009 = vmatmul.bf16.gmra.mxu0 %v996
        %v1010 = vpop.f32.mrf.mxu0
        %v1011 = vadd.f32 %v797, %v1010
        %v1012 = vpop.f32.mrf.mxu0
        %1013 = vdwg.mxu0
        %v1014 = vsel %vm801, %v1011, -inf
        %1015 = vmax.xlane.f32.xlu0 %v1014
        %v1016 = vpop.xlane.xlu0 %1015
        %v1017 = vsub.f32 %v1011, %v1016
        %v1018 = vmul.f32 %v1017, 1.442695
        %v1019 = vpow.pop %v1018
        %v1020 = vsel %vm801, %v1019, 0.0
        %1021 = vadd.xlane.f32.xlu0 %v1020
        %v1022 = vpop.xlane.xlu0 %1021
        %v1023 = vrcp.pop %v1022
        %v1024 = vmul.f32 %v1019, %v1023
        %v1025 = vpack.c.bf16 %v1024, %v1024
        %s1026 = scalar_lea.vmem %s670, 12 [#allocation20]
        %1027 = vst.msk [vmem:[%s1026] sm:$0xf] %vm833, %v1025
        %1028 = vrot.lane.b32.xlu0 %v899, 104
        %v1029 = vpop.permute.xlu0 %1028
        %v1031 = vsel %vm801, %v1025, 0
        %v1034 = vsel %vm838, %v1029, 0
        %1036 = vmatpush.bf16.msra.mxu0 0
        %1037 = vmatpush.bf16.msra.mxu0 0
        %1038 = vmatpush.bf16.msra.mxu0 0
        %1039 = vmatpush.bf16.msra.mxu0 0
        %1040 = vmatpush.bf16.msra.mxu0 0
        %1041 = vmatpush.bf16.msra.mxu0 0
        %1042 = vmatpush.bf16.msra.mxu0 0
        %1043 = vmatpush.bf16.msra.mxu0 %v1034
        %1044 = vmatmul.bf16.gmra.mxu0 %v1031
        %v1045 = vpop.f32.mrf.mxu0
        %v1046 = vadd.f32 0.0, %v1045
        %v1047 = vpop.f32.mrf.mxu0
        %1048 = vdwg.mxu0
        %1050 = vrot.lane.b32.xlu0 %v1046, 24
        %v1051 = vpop.permute.xlu0 %1050
        %vm1053 = vcmask 261312
        %1054 = vst.msk [vmem:[#allocation4] sm:$0xff] %vm1053, %v1051
        %v1055 = vld [vmem:[#allocation4] sm:$0xff]
        %v1056 = vpack.c.bf16 %v1055, %v1055
        %v1057 = vld [vmem:[#allocation17] sm:$0xf]
        %v1058 = vld [vmem:[#allocation17 + $0x4] sm:$0xf]
        %v1059 = vld [vmem:[#allocation17 + $0x8] sm:$0xf]
        %v1060 = vld [vmem:[#allocation17 + $0xc] sm:$0xf]
        %v1061 = vld [vmem:[%s11] sm:$0x1]
        %v1063 = vperm.slane %v1061, 0
        %v1069 = vunpack.c.l.b16 %v1057
        %v1070 = vunpack.c.l.b16 %v1058
        %v1071 = vunpack.c.l.b16 %v1059
        %v1072 = vunpack.c.l.b16 %v1060
        %v1073 = vpack.c.b16 %v1070, %v1069
        %v1074 = vpack.c.b16 %v1072, %v1071
        %v1078 = vsel %vm777, %v1056, 0
        %1080 = vmatpush.bf16.msra.mxu0 0
        %1081 = vmatpush.bf16.msra.mxu0 0
        %1082 = vmatpush.bf16.msra.mxu0 0
        %1083 = vmatpush.bf16.msra.mxu0 0
        %1084 = vmatpush.bf16.msra.mxu0 0
        %1085 = vmatpush.bf16.msra.mxu0 0
        %1086 = vmatpush.bf16.msra.mxu0 %v1074
        %1087 = vmatpush.bf16.msra.mxu0 %v1073
        %1088 = vmatmul.bf16.gmra.mxu0 %v1078
        %v1089 = vpop.f32.mrf.mxu0
        %v1090 = vadd.f32 %v1063, %v1089
        %v1091 = vpop.f32.mrf.mxu0
        %1092 = vdwg.mxu0
        %1093 = vst.msk [vmem:[%s663] sm:$0xff] %vm777, %v1090
        %s1094 = sand.u32 %s340, 1
        %s1095 = scalar_lea.sflag [#allocation7], %s1094
        %s1096 = sand.u32 %s340, 1
        %s1097 = smul.addr %s1096, 8
        %s1098 = scalar_lea.vmem [#allocation19], %s1097
        %s1099 = sand.u32 %s368, 1
        %s1100 = scalar_lea.sflag [#allocation21], %s1099
        %s1101 = sand.u32 %s368, 1
        %s1102 = smul.addr %s1101, 16
        %s1103 = scalar_lea.vmem [#allocation20], %s1102
        // Predicated region
        $region105: #{tpu_custom_call.1} parent=67 // pred_check
          %p1104 = pneg %p350
        $region106: #{tpu_custom_call.1} parent=67 // pred_check_branch
          %1106 = sbr.rel (%p1104) target = $region108
        $region107: #{tpu_custom_call.1} parent=67 // pred_region
          %1108 = vsyncadd %s1095, 0
          %s1109 = sadd.s32 %s47, %s46
          %s1110 = smul.addr %s1109, 8
          %s1111 = scalar_lea.hbm %s12, %s1110
          %s1113 = sshll.u32 %s1098, 4
          %s1114 = int_to_ptr.vmem [resolvable:$true] %s1113
          %s1115 = sshll.u32 %s1111, 4
          %s1116 = int_to_ptr.hbm [resolvable:$true] %s1115
          %1118 = dma.vmem_to_hbm [thread:$0]  %s1114, 128, %s1116, %s1095
        $region108: #{tpu_custom_call.1} parent=67 // pred_fallthru
          _
        // Predicated region
        $region109: #{tpu_custom_call.1} parent=67 // pred_check
          %p1119 = pneg %p378
        $region110: #{tpu_custom_call.1} parent=67 // pred_check_branch
          %1121 = sbr.rel (%p1119) target = $region112
        $region111: #{tpu_custom_call.1} parent=67 // pred_region
          %1123 = vsyncadd %s1100, 0
          %s1124 = smul.addr %s46, 4
          %s1125 = sadd.s32 %s47, %s1124
          %s1126 = smul.addr %s1125, 4
          %s1127 = scalar_lea.hbm %s13, %s1126
          %s1128 = sshll.u32 %s1103, 4
          %s1129 = int_to_ptr.vmem [resolvable:$true] %s1128
          %s1130 = sshll.u32 %s1127, 4
          %s1131 = int_to_ptr.hbm [resolvable:$true] %s1130
          %1136 = dma.vmem_to_hbm [thread:$0]  %s1129, 256, %s1131, %s1100, 64, 64, 4
        $region112: #{tpu_custom_call.1} parent=67 // pred_fallthru
          _
      $region68: #{tpu_custom_call.1} parent=5 // pred_fallthru
        _
      %p1137 = scmp.le.s32.totalorder 2, %s37
      // Predicated region
      $region113: #{tpu_custom_call.1} parent=5 // pred_check
        %p1138 = pneg %p1137
      $region114: #{tpu_custom_call.1} parent=5 // pred_check_branch
        %1140 = sbr.rel (%p1138) target = $region116
      $region115: #{tpu_custom_call.1} parent=5 // pred_region
        %s1141 = ssub.s32 %s37, 2
        // Predicated region
        $region117: #{tpu_custom_call.1} parent=115 // pred_check
          %p1142 = pneg %p356
        $region118: #{tpu_custom_call.1} parent=115 // pred_check_branch
          %1144 = sbr.rel (%p1142) target = $region120
        $region119: #{tpu_custom_call.1} parent=115 // pred_region
          %s1145 = sand.u32 %s341, 1
          %s1146 = scalar_lea.sflag [#allocation7], %s1145
          %s1147 = sand.u32 %s341, 1
          %s1148 = smul.addr %s1147, 8
          %s1149 = scalar_lea.vmem [#allocation19], %s1148
          %1151 = dma.done %s1146, 128
        $region120: #{tpu_custom_call.1} parent=115 // pred_fallthru
          _
        // Predicated region
        $region121: #{tpu_custom_call.1} parent=115 // pred_check
          %p1152 = pneg %p384
        $region122: #{tpu_custom_call.1} parent=115 // pred_check_branch
          %1154 = sbr.rel (%p1152) target = $region124
        $region123: #{tpu_custom_call.1} parent=115 // pred_region
          %s1155 = sand.u32 %s369, 1
          %s1156 = scalar_lea.sflag [#allocation21], %s1155
          %s1157 = sand.u32 %s369, 1
          %s1158 = smul.addr %s1157, 16
          %s1159 = scalar_lea.vmem [#allocation20], %s1158
          %1161 = dma.done %s1156, 256
        $region124: #{tpu_custom_call.1} parent=115 // pred_fallthru
          _
      $region116: #{tpu_custom_call.1} parent=5 // pred_fallthru
        _
    $region6: #{tpu_custom_call.1} parent=1 // loop_footer
      %s41 = sadd.s32 1, %s37
    $region7: #{tpu_custom_call.1} parent=1 // loop_footer_branch
      %36 = sbr.rel target = $region3
    $region8: #{tpu_custom_call.1} parent=1 // loop_exit
      _
    %1162 = vsyncpa [#allocation6], 1
    %s1163 = scalar_lea.sflag [#allocation6], 1
    %1164 = vsyncpa %s1163, 1
    %1165 = vsyncpa [#allocation9], 1
    %s1166 = scalar_lea.sflag [#allocation9], 1
    %1167 = vsyncpa %s1166, 1
    %1168 = vsyncpa [#allocation12], 1
    %s1169 = scalar_lea.sflag [#allocation12], 1
    %1170 = vsyncpa %s1169, 1
    %1171 = vsyncpa [#allocation15], 1
    %1172 = vsyncpa [#allocation18], 1
    %1173 = vsyncpa [#allocation7], 1
    %s1174 = scalar_lea.sflag [#allocation7], 1
    %1175 = vsyncpa %s1174, 1
    %1176 = vsyncpa [#allocation21], 1
    %s1177 = scalar_lea.sflag [#allocation21], 1
    %1178 = vsyncpa %s1177, 1

</llo_original>
